<compile_context>
chip_gen: v7x
topology: tpu7x:2x2x1
jax: 0.10.0
libtpu: 0.0.40
codegen_flags: <defaults>
</compile_context>

<pallas_src>
import math
import functools

import jax
import jax.numpy as jnp
from jax import lax
from jax.experimental import pallas as pl
from jax.experimental.pallas import tpu as pltpu

_NEG_INF = -1e30


# ----------------------------------------------------------------------------
# Kernel 1: RMSNorm + QKV projections (bf16 MXU) + RoPE (+ 1/sqrt(Dh) folded into q)
# grid = (batch, seq_tiles, dmodel_tiles)
# ----------------------------------------------------------------------------
def _qkv_rope_kernel(x_ref, gamma_ref, wq_ref, wk_ref, wv_ref,
                     cos_ref, sinf_ref, sinb_ref,
                     q_ref, k_ref, v_ref,
                     h_scratch, *, head_dim, eps, scale):
    # Normalize once per (batch, seq-tile); reuse across the d_model-tile axis.
    @pl.when(pl.program_id(2) == 0)
    def _normalize():
        x = x_ref[...]                                          # (bs, Dm) f32
        var = jnp.mean(x * x, axis=-1, keepdims=True)
        h = x * lax.rsqrt(var + eps) * gamma_ref[...]
        h_scratch[...] = h.astype(jnp.bfloat16)                 # bf16 only at MXU input

    hb = h_scratch[...]                                         # (bs, Dm) bf16
    q = jnp.dot(hb, wq_ref[...], preferred_element_type=jnp.float32)   # (bs, bd) f32
    k = jnp.dot(hb, wk_ref[...], preferred_element_type=jnp.float32)
    v = jnp.dot(hb, wv_ref[...], preferred_element_type=jnp.float32)

    # RoPE, vectorized over the full packed-head width: rotate-half is a lane roll in
    # each direction; sign and half-selection are folded into the precomputed sin
    # tables (their zeros kill the cross-head wraparound lanes).  The roll lowers to
    # two static lane slices + concat (pltpu.roll is a drop-in XLU alternative); the
    # key win is doing it once on (bs, bd) instead of per-head slice/negate/concat.
    cos = cos_ref[...]
    s_f = sinf_ref[...]
    s_b = sinb_ref[...]
    half = head_dim // 2

    def _rope(t):
        return (t * cos
                + jnp.roll(t, -half, axis=-1) * s_f
                + jnp.roll(t, half, axis=-1) * s_b)

    q_ref[...] = (_rope(q) * scale).astype(jnp.bfloat16)        # fold 1/sqrt(Dh) into q
    k_ref[...] = _rope(k).astype(jnp.bfloat16)
    v_ref[...] = v.astype(jnp.bfloat16)


# ----------------------------------------------------------------------------
# Kernel 2: flash attention (online softmax) + output projection + residual
# grid = (batch, q_tiles, kv_tiles)   (kv innermost / "arbitrary")
# ----------------------------------------------------------------------------
def _flash_attn_kernel(x_ref, q_ref, k_ref, v_ref, wo_ref, o_ref,
                       acc_ref, m_ref, l_ref, *,
                       n_heads, head_dim, block_q, block_kv):
    qi = pl.program_id(1)
    ki = pl.program_id(2)

    @pl.when(ki == 0)
    def _init():
        acc_ref[...] = jnp.zeros(acc_ref.shape, jnp.float32)
        m_ref[...] = jnp.full(m_ref.shape, _NEG_INF, jnp.float32)
        l_ref[...] = jnp.zeros(l_ref.shape, jnp.float32)

    # Skip kv tiles that lie entirely above the causal diagonal.
    @pl.when(ki <= qi)
    def _compute():
        q = q_ref[...]           # (bq, Dm) bf16 (RoPE'd, pre-scaled)
        k = k_ref[...]           # (bkv, Dm) bf16
        v = v_ref[...]           # (bkv, Dm) bf16

        q_pos = qi * block_q + lax.broadcasted_iota(jnp.int32, (block_q, block_kv), 0)
        k_pos = ki * block_kv + lax.broadcasted_iota(jnp.int32, (block_q, block_kv), 1)
        causal = k_pos <= q_pos

        for h in range(n_heads):
            lo = h * head_dim
            q_h = q[:, lo:lo + head_dim]
            k_h = k[:, lo:lo + head_dim]
            v_h = v[:, lo:lo + head_dim]

            # Contract on the last dims -> no explicit k.T relayout.
            s = lax.dot_general(q_h, k_h, (((1,), (1,)), ((), ())),
                                preferred_element_type=jnp.float32)     # (bq, bkv) f32
            s = jnp.where(causal, s, _NEG_INF)

            m_prev = m_ref[h]                                           # (bq, 1)
            m_new = jnp.maximum(m_prev, jnp.max(s, axis=-1, keepdims=True))
            alpha = jnp.exp(m_prev - m_new)
            p = jnp.exp(s - m_new)

            l_ref[h] = alpha * l_ref[h] + jnp.sum(p, axis=-1, keepdims=True)
            acc_ref[:, lo:lo + head_dim] = (
                alpha * acc_ref[:, lo:lo + head_dim]
                + jnp.dot(p.astype(jnp.bfloat16), v_h,
                          preferred_element_type=jnp.float32))
            m_ref[h] = m_new

    # Last contributing kv tile: normalize, output projection, residual add.
    @pl.when(ki == qi)
    def _finalize():
        for h in range(n_heads):
            lo = h * head_dim
            inv_l = pl.reciprocal(l_ref[h], approx=True)                # EUP slot
            acc_ref[:, lo:lo + head_dim] = acc_ref[:, lo:lo + head_dim] * inv_l
        ctx = acc_ref[...].astype(jnp.bfloat16)                         # (bq, Dm)
        proj = jnp.dot(ctx, wo_ref[...], preferred_element_type=jnp.float32)
        o_ref[...] = x_ref[...] + proj


# ----------------------------------------------------------------------------
# One-time (hoisted) preparation helpers.
# ----------------------------------------------------------------------------
def make_rope_tables(seq_len, n_heads, head_dim, theta=10000.0):
    """RoPE tables tiled over packed heads, with rotate-half sign folded in.

    cos_t : cos(theta) on every lane.
    sin_f : -sin(theta) on the first-half lanes of each head, 0 elsewhere
            (multiplies roll(x, -half) == x[j + half]).
    sin_b : +sin(theta) on the second-half lanes of each head, 0 elsewhere
            (multiplies roll(x, +half) == x[j - half]).
    """
    half = head_dim // 2
    inv_freq = 1.0 / (theta ** (jnp.arange(0, head_dim, 2, dtype=jnp.float32) / head_dim))
    pos = jnp.arange(seq_len, dtype=jnp.float32)
    freqs = jnp.outer(pos, inv_freq)                          # (S, half)
    emb = jnp.concatenate([freqs, freqs], axis=-1)            # (S, Dh)
    cos = jnp.cos(emb)
    sin = jnp.sin(emb)
    zeros = jnp.zeros((seq_len, half), jnp.float32)
    sin_f = jnp.concatenate([-sin[:, :half], zeros], axis=-1)
    sin_b = jnp.concatenate([zeros, sin[:, half:]], axis=-1)
    tile = lambda t: jnp.tile(t, (1, n_heads))                # pack across heads -> (S, Dm)
    return tile(cos), tile(sin_f), tile(sin_b)


def prepare_params(wq, wk, wv, wo, gamma):
    """One-time weight prep: transpose PyTorch (out, in) Linear weights to (in, out)
    and cast to bf16 MXU operands; reshape RMSNorm weight to (1, Dm)."""
    prep = lambda w: jnp.asarray(w, jnp.float32).T.astype(jnp.bfloat16)
    return (prep(wq), prep(wk), prep(wv), prep(wo),
            jnp.asarray(gamma, jnp.float32).reshape(1, -1))


# ----------------------------------------------------------------------------
# Forward pass (two pallas_calls), jitted with static config.
# ----------------------------------------------------------------------------
@functools.partial(jax.jit,
                   static_argnames=("n_heads", "head_dim", "eps", "block_s", "block_d"))
def attention_block(x, wq_t, wk_t, wv_t, wo_t, gamma, cos_t, sin_f, sin_b, *,
                    n_heads, head_dim, eps=1e-6, block_s=None, block_d=None):
    B, S, Dm = x.shape
    assert Dm == n_heads * head_dim and head_dim % 2 == 0

    if block_s is None:
        block_s = 128 if S % 128 == 0 else S
    if block_d is None:
        block_d = Dm
    assert S % block_s == 0
    assert Dm % block_d == 0 and block_d % head_dim == 0
    assert block_d % 128 == 0 or block_d == Dm

    scale = 1.0 / math.sqrt(head_dim)
    n_s = S // block_s
    n_d = Dm // block_d
    vmem_limit = 64 * 1024 * 1024

    # ---- kernel 1: RMSNorm + QKV + RoPE ----
    q, k, v = pl.pallas_call(
        functools.partial(_qkv_rope_kernel, head_dim=head_dim, eps=eps, scale=scale),
        out_shape=(jax.ShapeDtypeStruct((B, S, Dm), jnp.bfloat16),) * 3,
        grid_spec=pltpu.PrefetchScalarGridSpec(
            num_scalar_prefetch=0,
            grid=(B, n_s, n_d),
            in_specs=[
                pl.BlockSpec((None, block_s, Dm), lambda b, i, d: (b, i, 0)),   # x
                pl.BlockSpec((1, Dm), lambda b, i, d: (0, 0)),                  # gamma
                pl.BlockSpec((Dm, block_d), lambda b, i, d: (0, d)),            # Wq^T
                pl.BlockSpec((Dm, block_d), lambda b, i, d: (0, d)),            # Wk^T
                pl.BlockSpec((Dm, block_d), lambda b, i, d: (0, d)),            # Wv^T
                pl.BlockSpec((block_s, block_d), lambda b, i, d: (i, d)),       # cos
                pl.BlockSpec((block_s, block_d), lambda b, i, d: (i, d)),       # sin_f
                pl.BlockSpec((block_s, block_d), lambda b, i, d: (i, d)),       # sin_b
            ],
            out_specs=[
                pl.BlockSpec((None, block_s, block_d), lambda b, i, d: (b, i, d)),
                pl.BlockSpec((None, block_s, block_d), lambda b, i, d: (b, i, d)),
                pl.BlockSpec((None, block_s, block_d), lambda b, i, d: (b, i, d)),
            ],
            scratch_shapes=[pltpu.VMEM((block_s, Dm), jnp.bfloat16)],
        ),
        compiler_params=pltpu.CompilerParams(
            dimension_semantics=("parallel", "parallel", "arbitrary"),
            vmem_limit_bytes=vmem_limit),
        cost_estimate=pl.CostEstimate(
            flops=2 * 3 * B * S * Dm * Dm,
            transcendentals=0,
            bytes_accessed=4 * B * S * Dm + 3 * 2 * B * S * Dm + 3 * 2 * Dm * Dm
                           + 3 * 4 * S * Dm),
    )(x, gamma, wq_t, wk_t, wv_t, cos_t, sin_f, sin_b)

    # ---- kernel 2: flash attention + output projection + residual ----
    out = pl.pallas_call(
        functools.partial(_flash_attn_kernel, n_heads=n_heads, head_dim=head_dim,
                          block_q=block_s, block_kv=block_s),
        out_shape=jax.ShapeDtypeStruct((B, S, Dm), jnp.float32),
        grid_spec=pltpu.PrefetchScalarGridSpec(
            num_scalar_prefetch=0,
            grid=(B, n_s, n_s),
            in_specs=[
                pl.BlockSpec((None, block_s, Dm), lambda b, i, j: (b, i, 0)),   # x (residual)
                pl.BlockSpec((None, block_s, Dm), lambda b, i, j: (b, i, 0)),   # q
                pl.BlockSpec((None, block_s, Dm), lambda b, i, j: (b, j, 0)),   # k
                pl.BlockSpec((None, block_s, Dm), lambda b, i, j: (b, j, 0)),   # v
                pl.BlockSpec((Dm, Dm), lambda b, i, j: (0, 0)),                 # Wo^T
            ],
            out_specs=pl.BlockSpec((None, block_s, Dm), lambda b, i, j: (b, i, 0)),
            scratch_shapes=[
                pltpu.VMEM((block_s, Dm), jnp.float32),            # acc (per-head slices)
                pltpu.VMEM((n_heads, block_s, 1), jnp.float32),    # running max m
                pltpu.VMEM((n_heads, block_s, 1), jnp.float32),    # running sum l
            ],
        ),
        compiler_params=pltpu.CompilerParams(
            dimension_semantics=("parallel", "parallel", "arbitrary"),
            vmem_limit_bytes=vmem_limit),
        cost_estimate=pl.CostEstimate(
            flops=4 * B * S * S * Dm + 2 * B * S * Dm * Dm,
            transcendentals=B * n_heads * S * S,
            bytes_accessed=(4 + 3 * 2 + 4) * B * S * Dm + 2 * Dm * Dm),
    )(x, q, k, v, wo_t)
    return out


# ----------------------------------------------------------------------------
# Pure-JAX reference (mirrors the PyTorch module, eval mode).
# ----------------------------------------------------------------------------
def _reference_forward(x, wq, wk, wv, wo, gamma, *, n_heads, head_dim,
                       eps=1e-6, theta=10000.0):
    B, S, Dm = x.shape
    var = jnp.mean(x * x, axis=-1, keepdims=True)
    h = x * lax.rsqrt(var + eps) * gamma

    def heads(t):
        return t.reshape(B, S, n_heads, head_dim).transpose(0, 2, 1, 3)

    q = heads(h @ wq.T)
    k = heads(h @ wk.T)
    v = heads(h @ wv.T)

    inv_freq = 1.0 / (theta ** (jnp.arange(0, head_dim, 2, dtype=jnp.float32) / head_dim))
    freqs = jnp.outer(jnp.arange(S, dtype=jnp.float32), inv_freq)
    emb = jnp.concatenate([freqs, freqs], axis=-1)
    cos = jnp.cos(emb)[None, None]
    sin = jnp.sin(emb)[None, None]

    def rot(t):
        t1, t2 = jnp.split(t, 2, axis=-1)
        return jnp.concatenate([-t2, t1], axis=-1)

    q = q * cos + rot(q) * sin
    k = k * cos + rot(k) * sin

    scores = jnp.einsum("bhqd,bhkd->bhqk", q, k) / math.sqrt(head_dim)
    mask = jnp.tril(jnp.ones((S, S), dtype=bool))
    scores = jnp.where(mask, scores, -jnp.inf)
    attn = jax.nn.softmax(scores, axis=-1)
    ctx = jnp.einsum("bhqk,bhkd->bhqd", attn, v)
    ctx = ctx.transpose(0, 2, 1, 3).reshape(B, S, Dm)
    return x + ctx @ wo.T


if __name__ == "__main__":
    # Small config consistent with the module: d_model = n_heads * head_dim.
    B, S = 2, 256
    n_heads, head_dim = 2, 128
    Dm = n_heads * head_dim            # 256
    eps = 1e-6
    theta = 10000.0

    key = jax.random.PRNGKey(0)
    kx, kq, kk, kv, ko, kg = jax.random.split(key, 6)
    x = jax.random.normal(kx, (B, S, Dm), dtype=jnp.float32)

    # Deterministic nn.Linear-style init: U(-1/sqrt(in), 1/sqrt(in)), shape (out, in).
    bound = 1.0 / math.sqrt(Dm)
    init_w = lambda k_: jax.random.uniform(k_, (Dm, Dm), jnp.float32, -bound, bound)
    wq, wk, wv, wo = init_w(kq), init_w(kk), init_w(kv), init_w(ko)
    # RMSNorm weight is ones in the module; perturb slightly to exercise the path.
    gamma = 1.0 + 0.1 * jax.random.normal(kg, (Dm,), dtype=jnp.float32)

    # One-time (hoisted) parameter / RoPE-table preparation.
    wq_t, wk_t, wv_t, wo_t, gamma2d = prepare_params(wq, wk, wv, wo, gamma)
    cos_t, sin_f, sin_b = make_rope_tables(S, n_heads, head_dim, theta)

    out = attention_block(x, wq_t, wk_t, wv_t, wo_t, gamma2d, cos_t, sin_f, sin_b,
                          n_heads=n_heads, head_dim=head_dim, eps=eps,
                          block_s=128, block_d=128)
    out = jax.block_until_ready(out)
    assert out.shape == (B, S, Dm) and out.dtype == jnp.float32

    ref = _reference_forward(x, wq, wk, wv, wo, gamma, n_heads=n_heads,
                             head_dim=head_dim, eps=eps, theta=theta)
    max_err = float(jnp.max(jnp.abs(out - ref)))
    assert max_err < 6e-2, f"numerics mismatch vs reference: max_err={max_err}"
    print("KERNEL_OK")
</pallas_src>

<mosaic_0001>
module attributes {stable_mosaic.version = 11 : i64} {
  func.func @_qkv_rope_kernel(%arg0: i32, %arg1: i32, %arg2: i32, %arg3: memref<1x128x256xf32, #tpu.memory_space<vmem>>, %arg4: memref<1x256xf32, #tpu.memory_space<vmem>>, %arg5: memref<256x128xbf16, #tpu.memory_space<vmem>>, %arg6: memref<256x128xbf16, #tpu.memory_space<vmem>>, %arg7: memref<256x128xbf16, #tpu.memory_space<vmem>>, %arg8: memref<128x128xf32, #tpu.memory_space<vmem>>, %arg9: memref<128x128xf32, #tpu.memory_space<vmem>>, %arg10: memref<128x128xf32, #tpu.memory_space<vmem>>, %arg11: memref<1x128x128xbf16, #tpu.memory_space<vmem>>, %arg12: memref<1x128x128xbf16, #tpu.memory_space<vmem>>, %arg13: memref<1x128x128xbf16, #tpu.memory_space<vmem>>, %arg14: memref<128x256xbf16, #tpu.memory_space<vmem>>) attributes {dimension_semantics = [#tpu.dimension_semantics<parallel>, #tpu.dimension_semantics<parallel>, #tpu.dimension_semantics<arbitrary>], iteration_bounds = array<i64: 2, 2, 2>, scalar_prefetch = 0 : i64, scratch_operands = 1 : i64, tpu.core_type = #tpu.core_type<tc>, window_params = [{transform_indices = @transform_0, window_bounds = array<i64: 1, 128, 256>}, {pipeline_mode = #tpu.pipeline_mode<synchronous>, transform_indices = @transform_1, window_bounds = array<i64: 1, 256>}, {transform_indices = @transform_2, window_bounds = array<i64: 256, 128>}, {transform_indices = @transform_3, window_bounds = array<i64: 256, 128>}, {transform_indices = @transform_4, window_bounds = array<i64: 256, 128>}, {transform_indices = @transform_5, window_bounds = array<i64: 128, 128>}, {transform_indices = @transform_6, window_bounds = array<i64: 128, 128>}, {transform_indices = @transform_7, window_bounds = array<i64: 128, 128>}, {transform_indices = @transform_8, window_bounds = array<i64: 1, 128, 128>}, {transform_indices = @transform_9, window_bounds = array<i64: 1, 128, 128>}, {transform_indices = @transform_10, window_bounds = array<i64: 1, 128, 128>}]} {
    %c0_i32 = arith.constant 0 : i32
    %0 = arith.cmpi eq, %arg2, %c0_i32 : i32
    %1 = arith.extui %0 : i1 to i32
    %c0_i32_0 = arith.constant 0 : i32
    %2 = arith.cmpi ne, %1, %c0_i32_0 : i32
    scf.if %2 {
      %c0_26 = arith.constant 0 : index
      %c0_27 = arith.constant 0 : index
      %c0_28 = arith.constant 0 : index
      %49 = vector.load %arg3[%c0_26, %c0_27, %c0_28] : memref<1x128x256xf32, #tpu.memory_space<vmem>>, vector<1x128x256xf32>
      %50 = vector.shape_cast %49 : vector<1x128x256xf32> to vector<128x256xf32>
      %51 = arith.mulf %50, %50 : vector<128x256xf32>
      %cst_29 = arith.constant dense<0.000000e+00> : vector<128xf32>
      %52 = vector.multi_reduction <add>, %51, %cst_29 [1] : vector<128x256xf32> to vector<128xf32>
      %53 = vector.shape_cast %52 : vector<128xf32> to vector<128x1xf32>
      %cst_30 = arith.constant 2.560000e+02 : f32
      %54 = vector.broadcast %cst_30 : f32 to vector<128x1xf32>
      %55 = arith.divf %53, %54 : vector<128x1xf32>
      %cst_31 = arith.constant 9.99999997E-7 : f32
      %56 = vector.broadcast %cst_31 : f32 to vector<128x1xf32>
      %57 = arith.addf %55, %56 : vector<128x1xf32>
      %58 = math.rsqrt %57 : vector<128x1xf32>
      %59 = vector.broadcast %58 : vector<128x1xf32> to vector<128x256xf32>
      %60 = arith.mulf %50, %59 : vector<128x256xf32>
      %c0_32 = arith.constant 0 : index
      %c0_33 = arith.constant 0 : index
      %61 = vector.load %arg4[%c0_32, %c0_33] : memref<1x256xf32, #tpu.memory_space<vmem>>, vector<1x256xf32>
      %62 = vector.broadcast %61 : vector<1x256xf32> to vector<128x256xf32>
      %63 = arith.mulf %60, %62 : vector<128x256xf32>
      %64 = arith.truncf %63 : vector<128x256xf32> to vector<128x256xbf16>
      %c0_34 = arith.constant 0 : index
      %c0_35 = arith.constant 0 : index
      %65 = vector.load %arg14[%c0_34, %c0_35] : memref<128x256xbf16, #tpu.memory_space<vmem>>, vector<128x256xbf16>
      tpu.vector_store %arg14[%c0_34, %c0_35], %64 {strides = array<i32>} : memref<128x256xbf16, #tpu.memory_space<vmem>>, vector<128x256xbf16>,
    } else {
    }
    %c0 = arith.constant 0 : index
    %c0_1 = arith.constant 0 : index
    %3 = vector.load %arg14[%c0, %c0_1] : memref<128x256xbf16, #tpu.memory_space<vmem>>, vector<128x256xbf16>
    %c0_2 = arith.constant 0 : index
    %c0_3 = arith.constant 0 : index
    %4 = vector.load %arg5[%c0_2, %c0_3] : memref<256x128xbf16, #tpu.memory_space<vmem>>, vector<256x128xbf16>
    %cst = arith.constant dense<0.000000e+00> : vector<128x128xf32>
    %5 = tpu.matmul %3, %4, %cst {dimension_numbers = #tpu.dot_dimension_numbers<[1], [0], [0], [1], [0, 0, 1, 1], [], []>} : vector<128x256xbf16>, vector<256x128xbf16>, vector<128x128xf32> -> vector<128x128xf32>
    %c0_4 = arith.constant 0 : index
    %c0_5 = arith.constant 0 : index
    %6 = vector.load %arg6[%c0_4, %c0_5] : memref<256x128xbf16, #tpu.memory_space<vmem>>, vector<256x128xbf16>
    %cst_6 = arith.constant dense<0.000000e+00> : vector<128x128xf32>
    %7 = tpu.matmul %3, %6, %cst_6 {dimension_numbers = #tpu.dot_dimension_numbers<[1], [0], [0], [1], [0, 0, 1, 1], [], []>} : vector<128x256xbf16>, vector<256x128xbf16>, vector<128x128xf32> -> vector<128x128xf32>
    %c0_7 = arith.constant 0 : index
    %c0_8 = arith.constant 0 : index
    %8 = vector.load %arg7[%c0_7, %c0_8] : memref<256x128xbf16, #tpu.memory_space<vmem>>, vector<256x128xbf16>
    %cst_9 = arith.constant dense<0.000000e+00> : vector<128x128xf32>
    %9 = tpu.matmul %3, %8, %cst_9 {dimension_numbers = #tpu.dot_dimension_numbers<[1], [0], [0], [1], [0, 0, 1, 1], [], []>} : vector<128x256xbf16>, vector<256x128xbf16>, vector<128x128xf32> -> vector<128x128xf32>
    %c0_10 = arith.constant 0 : index
    %c0_11 = arith.constant 0 : index
    %10 = vector.load %arg8[%c0_10, %c0_11] : memref<128x128xf32, #tpu.memory_space<vmem>>, vector<128x128xf32>
    %c0_12 = arith.constant 0 : index
    %c0_13 = arith.constant 0 : index
    %11 = vector.load %arg9[%c0_12, %c0_13] : memref<128x128xf32, #tpu.memory_space<vmem>>, vector<128x128xf32>
    %c0_14 = arith.constant 0 : index
    %c0_15 = arith.constant 0 : index
    %12 = vector.load %arg10[%c0_14, %c0_15] : memref<128x128xf32, #tpu.memory_space<vmem>>, vector<128x128xf32>
    %13 = arith.mulf %5, %10 : vector<128x128xf32>
    %14 = vector.extract_strided_slice %5 {offsets = [0, 64], sizes = [128, 64], strides = [1, 1]} : vector<128x128xf32> to vector<128x64xf32>
    %15 = vector.extract_strided_slice %5 {offsets = [0, 0], sizes = [128, 64], strides = [1, 1]} : vector<128x128xf32> to vector<128x64xf32>
    %16 = tpu.concatenate %14, %15 in 1 : vector<128x64xf32>, vector<128x64xf32> -> vector<128x128xf32>
    %17 = arith.mulf %16, %11 : vector<128x128xf32>
    %18 = arith.addf %13, %17 : vector<128x128xf32>
    %19 = vector.extract_strided_slice %5 {offsets = [0, 64], sizes = [128, 64], strides = [1, 1]} : vector<128x128xf32> to vector<128x64xf32>
    %20 = vector.extract_strided_slice %5 {offsets = [0, 0], sizes = [128, 64], strides = [1, 1]} : vector<128x128xf32> to vector<128x64xf32>
    %21 = tpu.concatenate %19, %20 in 1 : vector<128x64xf32>, vector<128x64xf32> -> vector<128x128xf32>
    %22 = arith.mulf %21, %12 : vector<128x128xf32>
    %23 = arith.addf %18, %22 : vector<128x128xf32>
    %cst_16 = arith.constant 0.0883883461 : f32
    %24 = vector.broadcast %cst_16 : f32 to vector<128x128xf32>
    %25 = arith.mulf %23, %24 : vector<128x128xf32>
    %26 = arith.truncf %25 : vector<128x128xf32> to vector<128x128xbf16>
    %c0_17 = arith.constant 0 : index
    %c0_18 = arith.constant 0 : index
    %c0_19 = arith.constant 0 : index
    %27 = vector.load %arg11[%c0_17, %c0_18, %c0_19] : memref<1x128x128xbf16, #tpu.memory_space<vmem>>, vector<1x128x128xbf16>
    %28 = vector.shape_cast %27 : vector<1x128x128xbf16> to vector<128x128xbf16>
    %29 = vector.shape_cast %26 : vector<128x128xbf16> to vector<1x128x128xbf16>
    tpu.vector_store %arg11[%c0_17, %c0_18, %c0_19], %29 {strides = array<i32>} : memref<1x128x128xbf16, #tpu.memory_space<vmem>>, vector<1x128x128xbf16>,
    %30 = arith.mulf %7, %10 : vector<128x128xf32>
    %31 = vector.extract_strided_slice %7 {offsets = [0, 64], sizes = [128, 64], strides = [1, 1]} : vector<128x128xf32> to vector<128x64xf32>
    %32 = vector.extract_strided_slice %7 {offsets = [0, 0], sizes = [128, 64], strides = [1, 1]} : vector<128x128xf32> to vector<128x64xf32>
    %33 = tpu.concatenate %31, %32 in 1 : vector<128x64xf32>, vector<128x64xf32> -> vector<128x128xf32>
    %34 = arith.mulf %33, %11 : vector<128x128xf32>
    %35 = arith.addf %30, %34 : vector<128x128xf32>
    %36 = vector.extract_strided_slice %7 {offsets = [0, 64], sizes = [128, 64], strides = [1, 1]} : vector<128x128xf32> to vector<128x64xf32>
    %37 = vector.extract_strided_slice %7 {offsets = [0, 0], sizes = [128, 64], strides = [1, 1]} : vector<128x128xf32> to vector<128x64xf32>
    %38 = tpu.concatenate %36, %37 in 1 : vector<128x64xf32>, vector<128x64xf32> -> vector<128x128xf32>
    %39 = arith.mulf %38, %12 : vector<128x128xf32>
    %40 = arith.addf %35, %39 : vector<128x128xf32>
    %41 = arith.truncf %40 : vector<128x128xf32> to vector<128x128xbf16>
    %c0_20 = arith.constant 0 : index
    %c0_21 = arith.constant 0 : index
    %c0_22 = arith.constant 0 : index
    %42 = vector.load %arg12[%c0_20, %c0_21, %c0_22] : memref<1x128x128xbf16, #tpu.memory_space<vmem>>, vector<1x128x128xbf16>
    %43 = vector.shape_cast %42 : vector<1x128x128xbf16> to vector<128x128xbf16>
    %44 = vector.shape_cast %41 : vector<128x128xbf16> to vector<1x128x128xbf16>
    tpu.vector_store %arg12[%c0_20, %c0_21, %c0_22], %44 {strides = array<i32>} : memref<1x128x128xbf16, #tpu.memory_space<vmem>>, vector<1x128x128xbf16>,
    %45 = arith.truncf %9 : vector<128x128xf32> to vector<128x128xbf16>
    %c0_23 = arith.constant 0 : index
    %c0_24 = arith.constant 0 : index
    %c0_25 = arith.constant 0 : index
    %46 = vector.load %arg13[%c0_23, %c0_24, %c0_25] : memref<1x128x128xbf16, #tpu.memory_space<vmem>>, vector<1x128x128xbf16>
    %47 = vector.shape_cast %46 : vector<1x128x128xbf16> to vector<128x128xbf16>
    %48 = vector.shape_cast %45 : vector<128x128xbf16> to vector<1x128x128xbf16>
    tpu.vector_store %arg13[%c0_23, %c0_24, %c0_25], %48 {strides = array<i32>} : memref<1x128x128xbf16, #tpu.memory_space<vmem>>, vector<1x128x128xbf16>,
    return
  }
  func.func @transform_0(%arg0: i32, %arg1: i32, %arg2: i32) -> (i32, i32, i32) {
    %c0_i32 = arith.constant 0 : i32
    %c0_i32_0 = arith.constant 0 : i32
    return %arg0, %arg1, %c0_i32 : i32, i32, i32
  }
  func.func @transform_1(%arg0: i32, %arg1: i32, %arg2: i32) -> (i32, i32) {
    %c0_i32 = arith.constant 0 : i32
    %c0_i32_0 = arith.constant 0 : i32
    %c0_i32_1 = arith.constant 0 : i32
    return %c0_i32, %c0_i32_0 : i32, i32
  }
  func.func @transform_2(%arg0: i32, %arg1: i32, %arg2: i32) -> (i32, i32) {
    %c0_i32 = arith.constant 0 : i32
    %c0_i32_0 = arith.constant 0 : i32
    return %c0_i32, %arg2 : i32, i32
  }
  func.func @transform_3(%arg0: i32, %arg1: i32, %arg2: i32) -> (i32, i32) {
    %c0_i32 = arith.constant 0 : i32
    %c0_i32_0 = arith.constant 0 : i32
    return %c0_i32, %arg2 : i32, i32
  }
  func.func @transform_4(%arg0: i32, %arg1: i32, %arg2: i32) -> (i32, i32) {
    %c0_i32 = arith.constant 0 : i32
    %c0_i32_0 = arith.constant 0 : i32
    return %c0_i32, %arg2 : i32, i32
  }
  func.func @transform_5(%arg0: i32, %arg1: i32, %arg2: i32) -> (i32, i32) {
    %c0_i32 = arith.constant 0 : i32
    return %arg1, %arg2 : i32, i32
  }
  func.func @transform_6(%arg0: i32, %arg1: i32, %arg2: i32) -> (i32, i32) {
    %c0_i32 = arith.constant 0 : i32
    return %arg1, %arg2 : i32, i32
  }
  func.func @transform_7(%arg0: i32, %arg1: i32, %arg2: i32) -> (i32, i32) {
    %c0_i32 = arith.constant 0 : i32
    return %arg1, %arg2 : i32, i32
  }
  func.func @transform_8(%arg0: i32, %arg1: i32, %arg2: i32) -> (i32, i32, i32) {
    %c0_i32 = arith.constant 0 : i32
    return %arg0, %arg1, %arg2 : i32, i32, i32
  }
  func.func @transform_9(%arg0: i32, %arg1: i32, %arg2: i32) -> (i32, i32, i32) {
    %c0_i32 = arith.constant 0 : i32
    return %arg0, %arg1, %arg2 : i32, i32, i32
  }
  func.func @transform_10(%arg0: i32, %arg1: i32, %arg2: i32) -> (i32, i32, i32) {
    %c0_i32 = arith.constant 0 : i32
    return %arg0, %arg1, %arg2 : i32, i32, i32
  }
}

module attributes {stable_mosaic.version = 11 : i64} {
  func.func @_flash_attn_kernel(%arg0: i32, %arg1: i32, %arg2: i32, %arg3: memref<1x128x256xf32, #tpu.memory_space<vmem>>, %arg4: memref<1x128x256xbf16, #tpu.memory_space<vmem>>, %arg5: memref<1x128x256xbf16, #tpu.memory_space<vmem>>, %arg6: memref<1x128x256xbf16, #tpu.memory_space<vmem>>, %arg7: memref<256x256xbf16, #tpu.memory_space<vmem>>, %arg8: memref<1x128x256xf32, #tpu.memory_space<vmem>>, %arg9: memref<128x256xf32, #tpu.memory_space<vmem>>, %arg10: memref<2x128x1xf32, #tpu.memory_space<vmem>>, %arg11: memref<2x128x1xf32, #tpu.memory_space<vmem>>) attributes {dimension_semantics = [#tpu.dimension_semantics<parallel>, #tpu.dimension_semantics<parallel>, #tpu.dimension_semantics<arbitrary>], iteration_bounds = array<i64: 2, 2, 2>, scalar_prefetch = 0 : i64, scratch_operands = 3 : i64, tpu.core_type = #tpu.core_type<tc>, window_params = [{transform_indices = @transform_0, window_bounds = array<i64: 1, 128, 256>}, {transform_indices = @transform_1, window_bounds = array<i64: 1, 128, 256>}, {transform_indices = @transform_2, window_bounds = array<i64: 1, 128, 256>}, {transform_indices = @transform_3, window_bounds = array<i64: 1, 128, 256>}, {pipeline_mode = #tpu.pipeline_mode<synchronous>, transform_indices = @transform_4, window_bounds = array<i64: 256, 256>}, {transform_indices = @transform_5, window_bounds = array<i64: 1, 128, 256>}]} {
    %c0_i32 = arith.constant 0 : i32
    %0 = arith.cmpi eq, %arg2, %c0_i32 : i32
    %1 = arith.extui %0 : i1 to i32
    %c0_i32_0 = arith.constant 0 : i32
    %2 = arith.cmpi ne, %1, %c0_i32_0 : i32
    scf.if %2 {
      %cst = arith.constant 0.000000e+00 : f32
      %9 = vector.broadcast %cst : f32 to vector<128x256xf32>
      %c0 = arith.constant 0 : index
      %c0_3 = arith.constant 0 : index
      %10 = vector.load %arg9[%c0, %c0_3] : memref<128x256xf32, #tpu.memory_space<vmem>>, vector<128x256xf32>
      tpu.vector_store %arg9[%c0, %c0_3], %9 {strides = array<i32>} : memref<128x256xf32, #tpu.memory_space<vmem>>, vector<128x256xf32>,
      %cst_4 = arith.constant -1.000000e+30 : f32
      %11 = vector.broadcast %cst_4 : f32 to vector<2x128x1xf32>
      %c0_5 = arith.constant 0 : index
      %c0_6 = arith.constant 0 : index
      %c0_7 = arith.constant 0 : index
      %12 = vector.load %arg10[%c0_5, %c0_6, %c0_7] : memref<2x128x1xf32, #tpu.memory_space<vmem>>, vector<2x128x1xf32>
      tpu.vector_store %arg10[%c0_5, %c0_6, %c0_7], %11 {strides = array<i32>} : memref<2x128x1xf32, #tpu.memory_space<vmem>>, vector<2x128x1xf32>,
      %cst_8 = arith.constant 0.000000e+00 : f32
      %13 = vector.broadcast %cst_8 : f32 to vector<2x128x1xf32>
      %c0_9 = arith.constant 0 : index
      %c0_10 = arith.constant 0 : index
      %c0_11 = arith.constant 0 : index
      %14 = vector.load %arg11[%c0_9, %c0_10, %c0_11] : memref<2x128x1xf32, #tpu.memory_space<vmem>>, vector<2x128x1xf32>
      tpu.vector_store %arg11[%c0_9, %c0_10, %c0_11], %13 {strides = array<i32>} : memref<2x128x1xf32, #tpu.memory_space<vmem>>, vector<2x128x1xf32>,
    } else {
    }
    %3 = arith.cmpi sle, %arg2, %arg1 : i32
    %4 = arith.extui %3 : i1 to i32
    %c0_i32_1 = arith.constant 0 : i32
    %5 = arith.cmpi ne, %4, %c0_i32_1 : i32
    scf.if %5 {
      %c0 = arith.constant 0 : index
      %c0_3 = arith.constant 0 : index
      %c0_4 = arith.constant 0 : index
      %9 = vector.load %arg4[%c0, %c0_3, %c0_4] : memref<1x128x256xbf16, #tpu.memory_space<vmem>>, vector<1x128x256xbf16>
      %10 = vector.shape_cast %9 : vector<1x128x256xbf16> to vector<128x256xbf16>
      %c0_5 = arith.constant 0 : index
      %c0_6 = arith.constant 0 : index
      %c0_7 = arith.constant 0 : index
      %11 = vector.load %arg5[%c0_5, %c0_6, %c0_7] : memref<1x128x256xbf16, #tpu.memory_space<vmem>>, vector<1x128x256xbf16>
      %12 = vector.shape_cast %11 : vector<1x128x256xbf16> to vector<128x256xbf16>
      %c0_8 = arith.constant 0 : index
      %c0_9 = arith.constant 0 : index
      %c0_10 = arith.constant 0 : index
      %13 = vector.load %arg6[%c0_8, %c0_9, %c0_10] : memref<1x128x256xbf16, #tpu.memory_space<vmem>>, vector<1x128x256xbf16>
      %14 = vector.shape_cast %13 : vector<1x128x256xbf16> to vector<128x256xbf16>
      %c128_i32 = arith.constant 128 : i32
      %15 = arith.muli %arg1, %c128_i32 : i32
      %16 = tpu.iota {dimensions = array<i32: 0>} : vector<128x128xi32>
      %17 = vector.broadcast %15 : i32 to vector<128x128xi32>
      %18 = arith.addi %17, %16 : vector<128x128xi32>
      %c128_i32_11 = arith.constant 128 : i32
      %19 = arith.muli %arg2, %c128_i32_11 : i32
      %20 = tpu.iota {dimensions = array<i32: 1>} : vector<128x128xi32>
      %21 = vector.broadcast %19 : i32 to vector<128x128xi32>
      %22 = arith.addi %21, %20 : vector<128x128xi32>
      %23 = arith.cmpi sle, %22, %18 : vector<128x128xi32>
      %24 = vector.extract_strided_slice %10 {offsets = [0, 0], sizes = [128, 128], strides = [1, 1]} : vector<128x256xbf16> to vector<128x128xbf16>
      %25 = vector.extract_strided_slice %12 {offsets = [0, 0], sizes = [128, 128], strides = [1, 1]} : vector<128x256xbf16> to vector<128x128xbf16>
      %26 = vector.extract_strided_slice %14 {offsets = [0, 0], sizes = [128, 128], strides = [1, 1]} : vector<128x256xbf16> to vector<128x128xbf16>
      %cst = arith.constant dense<0.000000e+00> : vector<128x128xf32>
      %27 = tpu.matmul %24, %25, %cst {dimension_numbers = #tpu.dot_dimension_numbers<[1], [1], [0], [0], [0, 0, 1, 0], [], []>} : vector<128x128xbf16>, vector<128x128xbf16>, vector<128x128xf32> -> vector<128x128xf32>
      %cst_12 = arith.constant -1.000000e+30 : f32
      %28 = vector.broadcast %cst_12 : f32 to vector<128x128xf32>
      %29 = arith.select %23, %27, %28 : vector<128x128xi1>, vector<128x128xf32>
      %c0_13 = arith.constant 0 : index
      %c0_14 = arith.constant 0 : index
      %c0_15 = arith.constant 0 : index
      %30 = vector.load %arg10[%c0_13, %c0_14, %c0_15] : memref<2x128x1xf32, #tpu.memory_space<vmem>>, vector<1x128x1xf32>
      %31 = vector.shape_cast %30 : vector<1x128x1xf32> to vector<128x1xf32>
      %cst_16 = arith.constant dense<0xFF800000> : vector<128xf32>
      %32 = vector.multi_reduction <maximumf>, %29, %cst_16 [1] : vector<128x128xf32> to vector<128xf32>
      %33 = vector.shape_cast %32 : vector<128xf32> to vector<128x1xf32>
      %34 = arith.maximumf %31, %33 : vector<128x1xf32>
      %35 = arith.subf %31, %34 : vector<128x1xf32>
      %36 = math.exp %35 : vector<128x1xf32>
      %37 = vector.broadcast %34 : vector<128x1xf32> to vector<128x128xf32>
      %38 = arith.subf %29, %37 : vector<128x128xf32>
      %39 = math.exp %38 : vector<128x128xf32>
      %c0_17 = arith.constant 0 : index
      %c0_18 = arith.constant 0 : index
      %c0_19 = arith.constant 0 : index
      %40 = vector.load %arg11[%c0_17, %c0_18, %c0_19] : memref<2x128x1xf32, #tpu.memory_space<vmem>>, vector<1x128x1xf32>
      %41 = vector.shape_cast %40 : vector<1x128x1xf32> to vector<128x1xf32>
      %42 = arith.mulf %36, %41 : vector<128x1xf32>
      %cst_20 = arith.constant dense<0.000000e+00> : vector<128xf32>
      %43 = vector.multi_reduction <add>, %39, %cst_20 [1] : vector<128x128xf32> to vector<128xf32>
      %44 = vector.shape_cast %43 : vector<128xf32> to vector<128x1xf32>
      %45 = arith.addf %42, %44 : vector<128x1xf32>
      %c0_21 = arith.constant 0 : index
      %c0_22 = arith.constant 0 : index
      %c0_23 = arith.constant 0 : index
      %46 = vector.load %arg11[%c0_21, %c0_22, %c0_23] : memref<2x128x1xf32, #tpu.memory_space<vmem>>, vector<1x128x1xf32>
      %47 = vector.shape_cast %46 : vector<1x128x1xf32> to vector<128x1xf32>
      %48 = vector.shape_cast %45 : vector<128x1xf32> to vector<1x128x1xf32>
      tpu.vector_store %arg11[%c0_21, %c0_22, %c0_23], %48 {strides = array<i32>} : memref<2x128x1xf32, #tpu.memory_space<vmem>>, vector<1x128x1xf32>,
      %c0_24 = arith.constant 0 : index
      %c0_25 = arith.constant 0 : index
      %49 = vector.load %arg9[%c0_24, %c0_25] : memref<128x256xf32, #tpu.memory_space<vmem>>, vector<128x128xf32>
      %50 = vector.broadcast %36 : vector<128x1xf32> to vector<128x128xf32>
      %51 = arith.mulf %50, %49 : vector<128x128xf32>
      %52 = arith.truncf %39 : vector<128x128xf32> to vector<128x128xbf16>
      %cst_26 = arith.constant dense<0.000000e+00> : vector<128x128xf32>
      %53 = tpu.matmul %52, %26, %cst_26 {dimension_numbers = #tpu.dot_dimension_numbers<[1], [0], [0], [1], [0, 0, 1, 1], [], []>} : vector<128x128xbf16>, vector<128x128xbf16>, vector<128x128xf32> -> vector<128x128xf32>
      %54 = arith.addf %51, %53 : vector<128x128xf32>
      %c0_27 = arith.constant 0 : index
      %c0_28 = arith.constant 0 : index
      %55 = vector.load %arg9[%c0_27, %c0_28] : memref<128x256xf32, #tpu.memory_space<vmem>>, vector<128x128xf32>
      tpu.vector_store %arg9[%c0_27, %c0_28], %54 {strides = array<i32>} : memref<128x256xf32, #tpu.memory_space<vmem>>, vector<128x128xf32>,
      %c0_29 = arith.constant 0 : index
      %c0_30 = arith.constant 0 : index
      %c0_31 = arith.constant 0 : index
      %56 = vector.load %arg10[%c0_29, %c0_30, %c0_31] : memref<2x128x1xf32, #tpu.memory_space<vmem>>, vector<1x128x1xf32>
      %57 = vector.shape_cast %56 : vector<1x128x1xf32> to vector<128x1xf32>
      %58 = vector.shape_cast %34 : vector<128x1xf32> to vector<1x128x1xf32>
      tpu.vector_store %arg10[%c0_29, %c0_30, %c0_31], %58 {strides = array<i32>} : memref<2x128x1xf32, #tpu.memory_space<vmem>>, vector<1x128x1xf32>,
      %59 = vector.extract_strided_slice %10 {offsets = [0, 128], sizes = [128, 128], strides = [1, 1]} : vector<128x256xbf16> to vector<128x128xbf16>
      %60 = vector.extract_strided_slice %12 {offsets = [0, 128], sizes = [128, 128], strides = [1, 1]} : vector<128x256xbf16> to vector<128x128xbf16>
      %61 = vector.extract_strided_slice %14 {offsets = [0, 128], sizes = [128, 128], strides = [1, 1]} : vector<128x256xbf16> to vector<128x128xbf16>
      %cst_32 = arith.constant dense<0.000000e+00> : vector<128x128xf32>
      %62 = tpu.matmul %59, %60, %cst_32 {dimension_numbers = #tpu.dot_dimension_numbers<[1], [1], [0], [0], [0, 0, 1, 0], [], []>} : vector<128x128xbf16>, vector<128x128xbf16>, vector<128x128xf32> -> vector<128x128xf32>
      %cst_33 = arith.constant -1.000000e+30 : f32
      %63 = vector.broadcast %cst_33 : f32 to vector<128x128xf32>
      %64 = arith.select %23, %62, %63 : vector<128x128xi1>, vector<128x128xf32>
      %c1 = arith.constant 1 : index
      %c0_34 = arith.constant 0 : index
      %c0_35 = arith.constant 0 : index
      %65 = vector.load %arg10[%c1, %c0_34, %c0_35] : memref<2x128x1xf32, #tpu.memory_space<vmem>>, vector<1x128x1xf32>
      %66 = vector.shape_cast %65 : vector<1x128x1xf32> to vector<128x1xf32>
      %cst_36 = arith.constant dense<0xFF800000> : vector<128xf32>
      %67 = vector.multi_reduction <maximumf>, %64, %cst_36 [1] : vector<128x128xf32> to vector<128xf32>
      %68 = vector.shape_cast %67 : vector<128xf32> to vector<128x1xf32>
      %69 = arith.maximumf %66, %68 : vector<128x1xf32>
      %70 = arith.subf %66, %69 : vector<128x1xf32>
      %71 = math.exp %70 : vector<128x1xf32>
      %72 = vector.broadcast %69 : vector<128x1xf32> to vector<128x128xf32>
      %73 = arith.subf %64, %72 : vector<128x128xf32>
      %74 = math.exp %73 : vector<128x128xf32>
      %c1_37 = arith.constant 1 : index
      %c0_38 = arith.constant 0 : index
      %c0_39 = arith.constant 0 : index
      %75 = vector.load %arg11[%c1_37, %c0_38, %c0_39] : memref<2x128x1xf32, #tpu.memory_space<vmem>>, vector<1x128x1xf32>
      %76 = vector.shape_cast %75 : vector<1x128x1xf32> to vector<128x1xf32>
      %77 = arith.mulf %71, %76 : vector<128x1xf32>
      %cst_40 = arith.constant dense<0.000000e+00> : vector<128xf32>
      %78 = vector.multi_reduction <add>, %74, %cst_40 [1] : vector<128x128xf32> to vector<128xf32>
      %79 = vector.shape_cast %78 : vector<128xf32> to vector<128x1xf32>
      %80 = arith.addf %77, %79 : vector<128x1xf32>
      %c1_41 = arith.constant 1 : index
      %c0_42 = arith.constant 0 : index
      %c0_43 = arith.constant 0 : index
      %81 = vector.load %arg11[%c1_41, %c0_42, %c0_43] : memref<2x128x1xf32, #tpu.memory_space<vmem>>, vector<1x128x1xf32>
      %82 = vector.shape_cast %81 : vector<1x128x1xf32> to vector<128x1xf32>
      %83 = vector.shape_cast %80 : vector<128x1xf32> to vector<1x128x1xf32>
      tpu.vector_store %arg11[%c1_41, %c0_42, %c0_43], %83 {strides = array<i32>} : memref<2x128x1xf32, #tpu.memory_space<vmem>>, vector<1x128x1xf32>,
      %c0_44 = arith.constant 0 : index
      %c128 = arith.constant 128 : index
      %84 = vector.load %arg9[%c0_44, %c128] : memref<128x256xf32, #tpu.memory_space<vmem>>, vector<128x128xf32>
      %85 = vector.broadcast %71 : vector<128x1xf32> to vector<128x128xf32>
      %86 = arith.mulf %85, %84 : vector<128x128xf32>
      %87 = arith.truncf %74 : vector<128x128xf32> to vector<128x128xbf16>
      %cst_45 = arith.constant dense<0.000000e+00> : vector<128x128xf32>
      %88 = tpu.matmul %87, %61, %cst_45 {dimension_numbers = #tpu.dot_dimension_numbers<[1], [0], [0], [1], [0, 0, 1, 1], [], []>} : vector<128x128xbf16>, vector<128x128xbf16>, vector<128x128xf32> -> vector<128x128xf32>
      %89 = arith.addf %86, %88 : vector<128x128xf32>
      %c0_46 = arith.constant 0 : index
      %c128_47 = arith.constant 128 : index
      %90 = vector.load %arg9[%c0_46, %c128_47] : memref<128x256xf32, #tpu.memory_space<vmem>>, vector<128x128xf32>
      tpu.vector_store %arg9[%c0_46, %c128_47], %89 {strides = array<i32>} : memref<128x256xf32, #tpu.memory_space<vmem>>, vector<128x128xf32>,
      %c1_48 = arith.constant 1 : index
      %c0_49 = arith.constant 0 : index
      %c0_50 = arith.constant 0 : index
      %91 = vector.load %arg10[%c1_48, %c0_49, %c0_50] : memref<2x128x1xf32, #tpu.memory_space<vmem>>, vector<1x128x1xf32>
      %92 = vector.shape_cast %91 : vector<1x128x1xf32> to vector<128x1xf32>
      %93 = vector.shape_cast %69 : vector<128x1xf32> to vector<1x128x1xf32>
      tpu.vector_store %arg10[%c1_48, %c0_49, %c0_50], %93 {strides = array<i32>} : memref<2x128x1xf32, #tpu.memory_space<vmem>>, vector<1x128x1xf32>,
    } else {
    }
    %6 = arith.cmpi eq, %arg2, %arg1 : i32
    %7 = arith.extui %6 : i1 to i32
    %c0_i32_2 = arith.constant 0 : i32
    %8 = arith.cmpi ne, %7, %c0_i32_2 : i32
    scf.if %8 {
      %c0 = arith.constant 0 : index
      %c0_3 = arith.constant 0 : index
      %c0_4 = arith.constant 0 : index
      %9 = vector.load %arg11[%c0, %c0_3, %c0_4] : memref<2x128x1xf32, #tpu.memory_space<vmem>>, vector<1x128x1xf32>
      %10 = vector.shape_cast %9 : vector<1x128x1xf32> to vector<128x1xf32>
      %11 = tpu.reciprocal %10 {approx = true} : vector<128x1xf32> -> vector<128x1xf32>
      %c0_5 = arith.constant 0 : index
      %c0_6 = arith.constant 0 : index
      %12 = vector.load %arg9[%c0_5, %c0_6] : memref<128x256xf32, #tpu.memory_space<vmem>>, vector<128x128xf32>
      %13 = vector.broadcast %11 : vector<128x1xf32> to vector<128x128xf32>
      %14 = arith.mulf %12, %13 : vector<128x128xf32>
      %c0_7 = arith.constant 0 : index
      %c0_8 = arith.constant 0 : index
      %15 = vector.load %arg9[%c0_7, %c0_8] : memref<128x256xf32, #tpu.memory_space<vmem>>, vector<128x128xf32>
      tpu.vector_store %arg9[%c0_7, %c0_8], %14 {strides = array<i32>} : memref<128x256xf32, #tpu.memory_space<vmem>>, vector<128x128xf32>,
      %c1 = arith.constant 1 : index
      %c0_9 = arith.constant 0 : index
      %c0_10 = arith.constant 0 : index
      %16 = vector.load %arg11[%c1, %c0_9, %c0_10] : memref<2x128x1xf32, #tpu.memory_space<vmem>>, vector<1x128x1xf32>
      %17 = vector.shape_cast %16 : vector<1x128x1xf32> to vector<128x1xf32>
      %18 = tpu.reciprocal %17 {approx = true} : vector<128x1xf32> -> vector<128x1xf32>
      %c0_11 = arith.constant 0 : index
      %c128 = arith.constant 128 : index
      %19 = vector.load %arg9[%c0_11, %c128] : memref<128x256xf32, #tpu.memory_space<vmem>>, vector<128x128xf32>
      %20 = vector.broadcast %18 : vector<128x1xf32> to vector<128x128xf32>
      %21 = arith.mulf %19, %20 : vector<128x128xf32>
      %c0_12 = arith.constant 0 : index
      %c128_13 = arith.constant 128 : index
      %22 = vector.load %arg9[%c0_12, %c128_13] : memref<128x256xf32, #tpu.memory_space<vmem>>, vector<128x128xf32>
      tpu.vector_store %arg9[%c0_12, %c128_13], %21 {strides = array<i32>} : memref<128x256xf32, #tpu.memory_space<vmem>>, vector<128x128xf32>,
      %c0_14 = arith.constant 0 : index
      %c0_15 = arith.constant 0 : index
      %23 = vector.load %arg9[%c0_14, %c0_15] : memref<128x256xf32, #tpu.memory_space<vmem>>, vector<128x256xf32>
      %24 = arith.truncf %23 : vector<128x256xf32> to vector<128x256xbf16>
      %c0_16 = arith.constant 0 : index
      %c0_17 = arith.constant 0 : index
      %25 = vector.load %arg7[%c0_16, %c0_17] : memref<256x256xbf16, #tpu.memory_space<vmem>>, vector<256x256xbf16>
      %cst = arith.constant dense<0.000000e+00> : vector<128x256xf32>
      %26 = tpu.matmul %24, %25, %cst {dimension_numbers = #tpu.dot_dimension_numbers<[1], [0], [0], [1], [0, 0, 1, 1], [], []>} : vector<128x256xbf16>, vector<256x256xbf16>, vector<128x256xf32> -> vector<128x256xf32>
      %c0_18 = arith.constant 0 : index
      %c0_19 = arith.constant 0 : index
      %c0_20 = arith.constant 0 : index
      %27 = vector.load %arg3[%c0_18, %c0_19, %c0_20] : memref<1x128x256xf32, #tpu.memory_space<vmem>>, vector<1x128x256xf32>
      %28 = vector.shape_cast %27 : vector<1x128x256xf32> to vector<128x256xf32>
      %29 = arith.addf %28, %26 : vector<128x256xf32>
      %c0_21 = arith.constant 0 : index
      %c0_22 = arith.constant 0 : index
      %c0_23 = arith.constant 0 : index
      %30 = vector.load %arg8[%c0_21, %c0_22, %c0_23] : memref<1x128x256xf32, #tpu.memory_space<vmem>>, vector<1x128x256xf32>
      %31 = vector.shape_cast %30 : vector<1x128x256xf32> to vector<128x256xf32>
      %32 = vector.shape_cast %29 : vector<128x256xf32> to vector<1x128x256xf32>
      tpu.vector_store %arg8[%c0_21, %c0_22, %c0_23], %32 {strides = array<i32>} : memref<1x128x256xf32, #tpu.memory_space<vmem>>, vector<1x128x256xf32>,
    } else {
    }
    return
  }
  func.func @transform_0(%arg0: i32, %arg1: i32, %arg2: i32) -> (i32, i32, i32) {
    %c0_i32 = arith.constant 0 : i32
    %c0_i32_0 = arith.constant 0 : i32
    return %arg0, %arg1, %c0_i32 : i32, i32, i32
  }
  func.func @transform_1(%arg0: i32, %arg1: i32, %arg2: i32) -> (i32, i32, i32) {
    %c0_i32 = arith.constant 0 : i32
    %c0_i32_0 = arith.constant 0 : i32
    return %arg0, %arg1, %c0_i32 : i32, i32, i32
  }
  func.func @transform_2(%arg0: i32, %arg1: i32, %arg2: i32) -> (i32, i32, i32) {
    %c0_i32 = arith.constant 0 : i32
    %c0_i32_0 = arith.constant 0 : i32
    return %arg0, %arg2, %c0_i32 : i32, i32, i32
  }
  func.func @transform_3(%arg0: i32, %arg1: i32, %arg2: i32) -> (i32, i32, i32) {
    %c0_i32 = arith.constant 0 : i32
    %c0_i32_0 = arith.constant 0 : i32
    return %arg0, %arg2, %c0_i32 : i32, i32, i32
  }
  func.func @transform_4(%arg0: i32, %arg1: i32, %arg2: i32) -> (i32, i32) {
    %c0_i32 = arith.constant 0 : i32
    %c0_i32_0 = arith.constant 0 : i32
    %c0_i32_1 = arith.constant 0 : i32
    return %c0_i32, %c0_i32_0 : i32, i32
  }
  func.func @transform_5(%arg0: i32, %arg1: i32, %arg2: i32) -> (i32, i32, i32) {
    %c0_i32 = arith.constant 0 : i32
    %c0_i32_0 = arith.constant 0 : i32
    return %arg0, %arg1, %c0_i32 : i32, i32, i32
  }
}

</mosaic_0001>

<llo_original>
// kernel: attention_block.2
$region0: #{attention_block.2}
  #allocation0 [shape = 'u32[]', space=smem, size = 0x4, offset = 0x4, fixed_abs, tag = 'smem constant byte address 0x4 - core index']
  #allocation1 [shape = 'u32[144,128]{1,0:T(1,128)}', space=vmem, size = 0x12000, scoped, tag = 'internal scratch']
  #allocation2 [shape = 'bf16[128,256]{1,0:T(16,128)(2,1)}', space=vmem, size = 0x10000, scoped, tag = 'scratch operand']
  %s0 = inlined_call_operand.hbm [shape: f32[2,256,256], index: 0, kind: input, shape index: {}]
  %s1 = inlined_call_operand.hbm [shape: f32[1,256], index: 1, kind: input, shape index: {}]
  %s2 = inlined_call_operand.hbm [shape: bf16[256,256], index: 2, kind: input, shape index: {}]
  %s3 = inlined_call_operand.hbm [shape: bf16[256,256], index: 3, kind: input, shape index: {}]
  %s4 = inlined_call_operand.hbm [shape: bf16[256,256], index: 4, kind: input, shape index: {}]
  %s5 = inlined_call_operand.hbm [shape: f32[256,256], index: 5, kind: input, shape index: {}]
  %s6 = inlined_call_operand.hbm [shape: f32[256,256], index: 6, kind: input, shape index: {}]
  %s7 = inlined_call_operand.hbm [shape: f32[256,256], index: 7, kind: input, shape index: {}]
  %s8 = inlined_call_operand.hbm [shape: bf16[2,256,256], index: 8, kind: output, shape index: {0}]
  %s9 = inlined_call_operand.hbm [shape: bf16[2,256,256], index: 9, kind: output, shape index: {1}]
  %s10 = inlined_call_operand.hbm [shape: bf16[2,256,256], index: 10, kind: output, shape index: {2}]
  %11 = xla_tuple %s8, %s9, %s10
  %s12 = sld [smem:[#allocation0]]
  $region117: #{attention_block.2} parent=0
    _
  %s14 = ssub.s32 1, %s12
  %s15 = scalar_select 0, %s14, %s12
  $region1: #{attention_block.2} parent=0
    #allocation3 [shape = 'u8[262144]{0}', space=vmem, size = 0x40000, scoped, tag = 'input window, operand 0']
    #allocation4 [shape = 's32[2]{0}', space=sflag, size = 0x8, scoped, tag = 'scoped memory for attention_block.2']
    #allocation5 [shape = 's32[2]{0}', space=sflag, size = 0x8, scoped, tag = 'scoped memory for attention_block.2']
    #allocation6 [shape = 'u8[1024]{0}', space=vmem, size = 0x400, scoped, tag = 'input window, operand 1, single buffered']
    #allocation7 [shape = 's32[1]{0}', space=sflag, size = 0x4, scoped, tag = 'scoped memory for attention_block.2']
    #allocation8 [shape = 'u8[131072]{0}', space=vmem, size = 0x20000, scoped, tag = 'input window, operand 2']
    #allocation9 [shape = 'u8[131072]{0}', space=vmem, size = 0x20000, scoped, tag = 'input window, operand 3']
    #allocation10 [shape = 'u8[131072]{0}', space=vmem, size = 0x20000, scoped, tag = 'input window, operand 4']
    #allocation11 [shape = 'u8[131072]{0}', space=vmem, size = 0x20000, scoped, tag = 'input window, operand 5']
    #allocation12 [shape = 'u8[131072]{0}', space=vmem, size = 0x20000, scoped, tag = 'input window, operand 6']
    #allocation13 [shape = 'u8[131072]{0}', space=vmem, size = 0x20000, scoped, tag = 'input window, operand 7']
    #allocation14 [shape = 'u8[65536]{0}', space=vmem, size = 0x10000, scoped, tag = 'output window, operand 0']
    #allocation15 [shape = 'u8[65536]{0}', space=vmem, size = 0x10000, scoped, tag = 'output window, operand 1']
    #allocation16 [shape = 's32[2]{0}', space=sflag, size = 0x8, scoped, tag = 'scoped memory for attention_block.2']
    #allocation17 [shape = 'u8[65536]{0}', space=vmem, size = 0x10000, scoped, tag = 'output window, operand 2']
    %16 = vsyncpa [#allocation4], 0
    %s17 = scalar_lea.sflag [#allocation4], 1
    %18 = vsyncpa %s17, 0
    %19 = vsyncpa [#allocation7], 0
    %20 = vsyncpa [#allocation5], 0
    %s21 = scalar_lea.sflag [#allocation5], 1
    %22 = vsyncpa %s21, 0
    %23 = vsyncpa [#allocation16], 0
    %s24 = scalar_lea.sflag [#allocation16], 1
    %25 = vsyncpa %s24, 0
    loop: start=0, step=1, limit=10
    $region2: #{attention_block.2} parent=1 // loop_pre_header
      _
    $region3: #{attention_block.2} parent=1 // loop_header
      %s27 = sphi 0, %s31
      %p28 = scmp.ge.s32.totalorder %s27, 10
      %s34 = sphi 0, %s53
      %s35 = sphi 0, %s49
      %s36 = sphi 0, %s45
      %s37 = sphi 0, %s34
      %s38 = sphi 0, %s35
      %s39 = sphi 0, %s36
      %s40 = sphi 0, %s37
      %s41 = sphi 0, %s38
      %s42 = sphi 0, %s39
      %s58 = sphi 0, %s60
      %s61 = sphi 0, %s58
      %s62 = sphi 0, %s61
      %s78 = sphi 0, %s62
      %s82 = sphi 0, %s82
      %s84 = sphi 0, %s82
      %s85 = sphi 0, %s84
      %s99 = sphi 0, %s85
      %s105 = sphi 0, %s107
      %s108 = sphi 0, %s105
      %s109 = sphi 0, %s108
      %s125 = sphi 0, %s109
      %s131 = sphi 0, %s133
      %s134 = sphi 0, %s131
      %s135 = sphi 0, %s134
      %s151 = sphi 0, %s135
      %s157 = sphi 0, %s159
      %s160 = sphi 0, %s157
      %s161 = sphi 0, %s160
      %s177 = sphi 0, %s161
      %s185 = sphi 0, %s187
      %s188 = sphi 0, %s185
      %s189 = sphi 0, %s188
      %s205 = sphi 0, %s189
      %s213 = sphi 0, %s215
      %s216 = sphi 0, %s213
      %s217 = sphi 0, %s216
      %s233 = sphi 0, %s217
      %s241 = sphi 0, %s243
      %s244 = sphi 0, %s241
      %s245 = sphi 0, %s244
      %s261 = sphi 0, %s245
      %s271 = sphi 0, %s273
      %s274 = sphi 0, %s271
      %s275 = sphi 0, %s274
      %s291 = sphi 0, %s275
      %s301 = sphi 0, %s303
      %s304 = sphi 0, %s301
      %s305 = sphi 0, %s304
      %s321 = sphi 0, %s305
      %s331 = sphi 0, %s333
      %s334 = sphi 0, %s331
      %s335 = sphi 0, %s334
      %s351 = sphi 0, %s335
    $region4: #{attention_block.2} parent=1 // loop_header_branch
      %30 = sbr.rel (%p28) target = $region8
    $region5: #{attention_block.2} parent=1 // loop_body
      %s32 = ssub.s32 %s27, 1
      %s33 = ssub.s32 %s27, 2
      %s43 = sadd.s32 1, %s36
      %p44 = scmp.ge.s32.totalorder %s43, 2
      %s45 = scalar_select %p44, 0, %s43
      %s46 = sadd.s32 1, %s35
      %s47 = scalar_select %p44, %s46, %s35
      %p48 = scmp.ge.s32.totalorder %s47, 2
      %s49 = scalar_select %p48, 0, %s47
      %s50 = sadd.s32 1, %s34
      %s51 = scalar_select %p48, %s50, %s34
      %p52 = scmp.ge.s32.totalorder %s51, 2
      %s53 = scalar_select %p52, 0, %s51
      %s54 = ssub.s32 %s34, %s53
      %s55 = ssub.s32 %s35, %s49
      %s56 = sor.u32 %s54, %s55
      %p57 = scmp.eq.s32.totalorder %s56, 0
      %s59 = sadd.s32 %s58, 1
      %s60 = scalar_select %p57, %s58, %s59
      %p63 = pneg %p57
      %p64 = scmp.eq.s32.totalorder %s27, 7
      %p65 = por %p63, %p64
      %p66 = scmp.ne.s32.totalorder %s58, %s61
      %p67 = scmp.eq.s32.totalorder %s27, 0
      %p68 = por %p66, %p67
      %p69 = scmp.ne.s32.totalorder %s58, %s61
      %p70 = scmp.eq.s32.totalorder %s32, 7
      %p71 = por %p69, %p70
      %p72 = scmp.ne.s32.totalorder %s61, %s62
      %p73 = scmp.eq.s32.totalorder %s32, 0
      %p74 = por %p72, %p73
      %p75 = scmp.ne.s32.totalorder %s61, %s62
      %p76 = scmp.eq.s32.totalorder %s33, 7
      %p77 = por %p75, %p76
      %p79 = scmp.ne.s32.totalorder %s62, %s78
      %p80 = scmp.eq.s32.totalorder %s33, 0
      %p81 = por %p79, %p80
      %s83 = sadd.s32 %s82, 1
      %p86 = scmp.eq.s32.totalorder %s27, 7
      %p87 = scmp.ne.s32.totalorder %s82, %s84
      %p88 = scmp.eq.s32.totalorder %s27, 0
      %p89 = por %p87, %p88
      %p90 = scmp.ne.s32.totalorder %s82, %s84
      %p91 = scmp.eq.s32.totalorder %s32, 7
      %p92 = por %p90, %p91
      %p93 = scmp.ne.s32.totalorder %s84, %s85
      %p94 = scmp.eq.s32.totalorder %s32, 0
      %p95 = por %p93, %p94
      %p96 = scmp.ne.s32.totalorder %s84, %s85
      %p97 = scmp.eq.s32.totalorder %s33, 7
      %p98 = por %p96, %p97
      %p100 = scmp.ne.s32.totalorder %s85, %s99
      %p101 = scmp.eq.s32.totalorder %s33, 0
      %p102 = por %p100, %p101
      %s103 = ssub.s32 %s36, %s45
      %p104 = scmp.eq.s32.totalorder %s103, 0
      %s106 = sadd.s32 %s105, 1
      %s107 = scalar_select %p104, %s105, %s106
      %p110 = pneg %p104
      %p111 = scmp.eq.s32.totalorder %s27, 7
      %p112 = por %p110, %p111
      %p113 = scmp.ne.s32.totalorder %s105, %s108
      %p114 = scmp.eq.s32.totalorder %s27, 0
      %p115 = por %p113, %p114
      %p116 = scmp.ne.s32.totalorder %s105, %s108
      %p117 = scmp.eq.s32.totalorder %s32, 7
      %p118 = por %p116, %p117
      %p119 = scmp.ne.s32.totalorder %s108, %s109
      %p120 = scmp.eq.s32.totalorder %s32, 0
      %p121 = por %p119, %p120
      %p122 = scmp.ne.s32.totalorder %s108, %s109
      %p123 = scmp.eq.s32.totalorder %s33, 7
      %p124 = por %p122, %p123
      %p126 = scmp.ne.s32.totalorder %s109, %s125
      %p127 = scmp.eq.s32.totalorder %s33, 0
      %p128 = por %p126, %p127
      %s129 = ssub.s32 %s36, %s45
      %p130 = scmp.eq.s32.totalorder %s129, 0
      %s132 = sadd.s32 %s131, 1
      %s133 = scalar_select %p130, %s131, %s132
      %p136 = pneg %p130
      %p137 = scmp.eq.s32.totalorder %s27, 7
      %p138 = por %p136, %p137
      %p139 = scmp.ne.s32.totalorder %s131, %s134
      %p140 = scmp.eq.s32.totalorder %s27, 0
      %p141 = por %p139, %p140
      %p142 = scmp.ne.s32.totalorder %s131, %s134
      %p143 = scmp.eq.s32.totalorder %s32, 7
      %p144 = por %p142, %p143
      %p145 = scmp.ne.s32.totalorder %s134, %s135
      %p146 = scmp.eq.s32.totalorder %s32, 0
      %p147 = por %p145, %p146
      %p148 = scmp.ne.s32.totalorder %s134, %s135
      %p149 = scmp.eq.s32.totalorder %s33, 7
      %p150 = por %p148, %p149
      %p152 = scmp.ne.s32.totalorder %s135, %s151
      %p153 = scmp.eq.s32.totalorder %s33, 0
      %p154 = por %p152, %p153
      %s155 = ssub.s32 %s36, %s45
      %p156 = scmp.eq.s32.totalorder %s155, 0
      %s158 = sadd.s32 %s157, 1
      %s159 = scalar_select %p156, %s157, %s158
      %p162 = pneg %p156
      %p163 = scmp.eq.s32.totalorder %s27, 7
      %p164 = por %p162, %p163
      %p165 = scmp.ne.s32.totalorder %s157, %s160
      %p166 = scmp.eq.s32.totalorder %s27, 0
      %p167 = por %p165, %p166
      %p168 = scmp.ne.s32.totalorder %s157, %s160
      %p169 = scmp.eq.s32.totalorder %s32, 7
      %p170 = por %p168, %p169
      %p171 = scmp.ne.s32.totalorder %s160, %s161
      %p172 = scmp.eq.s32.totalorder %s32, 0
      %p173 = por %p171, %p172
      %p174 = scmp.ne.s32.totalorder %s160, %s161
      %p175 = scmp.eq.s32.totalorder %s33, 7
      %p176 = por %p174, %p175
      %p178 = scmp.ne.s32.totalorder %s161, %s177
      %p179 = scmp.eq.s32.totalorder %s33, 0
      %p180 = por %p178, %p179
      %s181 = ssub.s32 %s35, %s49
      %s182 = ssub.s32 %s36, %s45
      %s183 = sor.u32 %s181, %s182
      %p184 = scmp.eq.s32.totalorder %s183, 0
      %s186 = sadd.s32 %s185, 1
      %s187 = scalar_select %p184, %s185, %s186
      %p190 = pneg %p184
      %p191 = scmp.eq.s32.totalorder %s27, 7
      %p192 = por %p190, %p191
      %p193 = scmp.ne.s32.totalorder %s185, %s188
      %p194 = scmp.eq.s32.totalorder %s27, 0
      %p195 = por %p193, %p194
      %p196 = scmp.ne.s32.totalorder %s185, %s188
      %p197 = scmp.eq.s32.totalorder %s32, 7
      %p198 = por %p196, %p197
      %p199 = scmp.ne.s32.totalorder %s188, %s189
      %p200 = scmp.eq.s32.totalorder %s32, 0
      %p201 = por %p199, %p200
      %p202 = scmp.ne.s32.totalorder %s188, %s189
      %p203 = scmp.eq.s32.totalorder %s33, 7
      %p204 = por %p202, %p203
      %p206 = scmp.ne.s32.totalorder %s189, %s205
      %p207 = scmp.eq.s32.totalorder %s33, 0
      %p208 = por %p206, %p207
      %s209 = ssub.s32 %s35, %s49
      %s210 = ssub.s32 %s36, %s45
      %s211 = sor.u32 %s209, %s210
      %p212 = scmp.eq.s32.totalorder %s211, 0
      %s214 = sadd.s32 %s213, 1
      %s215 = scalar_select %p212, %s213, %s214
      %p218 = pneg %p212
      %p219 = scmp.eq.s32.totalorder %s27, 7
      %p220 = por %p218, %p219
      %p221 = scmp.ne.s32.totalorder %s213, %s216
      %p222 = scmp.eq.s32.totalorder %s27, 0
      %p223 = por %p221, %p222
      %p224 = scmp.ne.s32.totalorder %s213, %s216
      %p225 = scmp.eq.s32.totalorder %s32, 7
      %p226 = por %p224, %p225
      %p227 = scmp.ne.s32.totalorder %s216, %s217
      %p228 = scmp.eq.s32.totalorder %s32, 0
      %p229 = por %p227, %p228
      %p230 = scmp.ne.s32.totalorder %s216, %s217
      %p231 = scmp.eq.s32.totalorder %s33, 7
      %p232 = por %p230, %p231
      %p234 = scmp.ne.s32.totalorder %s217, %s233
      %p235 = scmp.eq.s32.totalorder %s33, 0
      %p236 = por %p234, %p235
      %s237 = ssub.s32 %s35, %s49
      %s238 = ssub.s32 %s36, %s45
      %s239 = sor.u32 %s237, %s238
      %p240 = scmp.eq.s32.totalorder %s239, 0
      %s242 = sadd.s32 %s241, 1
      %s243 = scalar_select %p240, %s241, %s242
      %p246 = pneg %p240
      %p247 = scmp.eq.s32.totalorder %s27, 7
      %p248 = por %p246, %p247
      %p249 = scmp.ne.s32.totalorder %s241, %s244
      %p250 = scmp.eq.s32.totalorder %s27, 0
      %p251 = por %p249, %p250
      %p252 = scmp.ne.s32.totalorder %s241, %s244
      %p253 = scmp.eq.s32.totalorder %s32, 7
      %p254 = por %p252, %p253
      %p255 = scmp.ne.s32.totalorder %s244, %s245
      %p256 = scmp.eq.s32.totalorder %s32, 0
      %p257 = por %p255, %p256
      %p258 = scmp.ne.s32.totalorder %s244, %s245
      %p259 = scmp.eq.s32.totalorder %s33, 7
      %p260 = por %p258, %p259
      %p262 = scmp.ne.s32.totalorder %s245, %s261
      %p263 = scmp.eq.s32.totalorder %s33, 0
      %p264 = por %p262, %p263
      %s265 = ssub.s32 %s34, %s53
      %s266 = ssub.s32 %s35, %s49
      %s267 = sor.u32 %s265, %s266
      %s268 = ssub.s32 %s36, %s45
      %s269 = sor.u32 %s267, %s268
      %p270 = scmp.eq.s32.totalorder %s269, 0
      %s272 = sadd.s32 %s271, 1
      %s273 = scalar_select %p270, %s271, %s272
      %p276 = pneg %p270
      %p277 = scmp.eq.s32.totalorder %s27, 7
      %p278 = por %p276, %p277
      %p279 = scmp.ne.s32.totalorder %s271, %s274
      %p280 = scmp.eq.s32.totalorder %s27, 0
      %p281 = por %p279, %p280
      %p282 = scmp.ne.s32.totalorder %s271, %s274
      %p283 = scmp.eq.s32.totalorder %s32, 7
      %p284 = por %p282, %p283
      %p285 = scmp.ne.s32.totalorder %s274, %s275
      %p286 = scmp.eq.s32.totalorder %s32, 0
      %p287 = por %p285, %p286
      %p288 = scmp.ne.s32.totalorder %s274, %s275
      %p289 = scmp.eq.s32.totalorder %s33, 7
      %p290 = por %p288, %p289
      %p292 = scmp.ne.s32.totalorder %s275, %s291
      %p293 = scmp.eq.s32.totalorder %s33, 0
      %p294 = por %p292, %p293
      %s295 = ssub.s32 %s34, %s53
      %s296 = ssub.s32 %s35, %s49
      %s297 = sor.u32 %s295, %s296
      %s298 = ssub.s32 %s36, %s45
      %s299 = sor.u32 %s297, %s298
      %p300 = scmp.eq.s32.totalorder %s299, 0
      %s302 = sadd.s32 %s301, 1
      %s303 = scalar_select %p300, %s301, %s302
      %p306 = pneg %p300
      %p307 = scmp.eq.s32.totalorder %s27, 7
      %p308 = por %p306, %p307
      %p309 = scmp.ne.s32.totalorder %s301, %s304
      %p310 = scmp.eq.s32.totalorder %s27, 0
      %p311 = por %p309, %p310
      %p312 = scmp.ne.s32.totalorder %s301, %s304
      %p313 = scmp.eq.s32.totalorder %s32, 7
      %p314 = por %p312, %p313
      %p315 = scmp.ne.s32.totalorder %s304, %s305
      %p316 = scmp.eq.s32.totalorder %s32, 0
      %p317 = por %p315, %p316
      %p318 = scmp.ne.s32.totalorder %s304, %s305
      %p319 = scmp.eq.s32.totalorder %s33, 7
      %p320 = por %p318, %p319
      %p322 = scmp.ne.s32.totalorder %s305, %s321
      %p323 = scmp.eq.s32.totalorder %s33, 0
      %p324 = por %p322, %p323
      %s325 = ssub.s32 %s34, %s53
      %s326 = ssub.s32 %s35, %s49
      %s327 = sor.u32 %s325, %s326
      %s328 = ssub.s32 %s36, %s45
      %s329 = sor.u32 %s327, %s328
      %p330 = scmp.eq.s32.totalorder %s329, 0
      %s332 = sadd.s32 %s331, 1
      %s333 = scalar_select %p330, %s331, %s332
      %p336 = pneg %p330
      %p337 = scmp.eq.s32.totalorder %s27, 7
      %p338 = por %p336, %p337
      %p339 = scmp.ne.s32.totalorder %s331, %s334
      %p340 = scmp.eq.s32.totalorder %s27, 0
      %p341 = por %p339, %p340
      %p342 = scmp.ne.s32.totalorder %s331, %s334
      %p343 = scmp.eq.s32.totalorder %s32, 7
      %p344 = por %p342, %p343
      %p345 = scmp.ne.s32.totalorder %s334, %s335
      %p346 = scmp.eq.s32.totalorder %s32, 0
      %p347 = por %p345, %p346
      %p348 = scmp.ne.s32.totalorder %s334, %s335
      %p349 = scmp.eq.s32.totalorder %s33, 7
      %p350 = por %p348, %p349
      %p352 = scmp.ne.s32.totalorder %s335, %s351
      %p353 = scmp.eq.s32.totalorder %s33, 0
      %p354 = por %p352, %p353
      %p355 = scmp.le.s32.totalorder 1, %s27
      %p356 = scmp.lt.s32.totalorder %s27, 9
      %p357 = pnand %p355, %p356
      %p358 = pneg %p357
      // Predicated region
      $region9: #{attention_block.2} parent=5 // pred_check
        _
      $region10: #{attention_block.2} parent=5 // pred_check_branch
        %360 = sbr.rel (%p357) target = $region12
      $region11: #{attention_block.2} parent=5 // pred_region
        %s361 = ssub.s32 %s27, 1
        // Predicated region
        $region13: #{attention_block.2} parent=11 // pred_check
          %p362 = pneg %p95
        $region14: #{attention_block.2} parent=11 // pred_check_branch
          %364 = sbr.rel (%p362) target = $region16
        $region15: #{attention_block.2} parent=11 // pred_region
          %s366 = ssub.s32 32, 32
          %367 = vsyncadd [#allocation7], %s366
          %s369 = sshll.u32 [#allocation6], 4
          %s370 = int_to_ptr.vmem [resolvable:$true] %s369
          %372 = dma.hbm_to_vmem [thread:$0]  %s1, 32, %s370, [#allocation7]
        $region16: #{attention_block.2} parent=11 // pred_fallthru
          _
      $region12: #{attention_block.2} parent=5 // pred_fallthru
        _
      %p373 = scmp.lt.s32.totalorder %s27, 8
      // Predicated region
      $region17: #{attention_block.2} parent=5 // pred_check
        %p374 = pneg %p373
      $region18: #{attention_block.2} parent=5 // pred_check_branch
        %376 = sbr.rel (%p374) target = $region20
      $region19: #{attention_block.2} parent=5 // pred_region
        // Predicated region
        $region21: #{attention_block.2} parent=19 // pred_check
          %p377 = pneg %p68
        $region22: #{attention_block.2} parent=19 // pred_check_branch
          %379 = sbr.rel (%p377) target = $region24
        $region23: #{attention_block.2} parent=19 // pred_region
          %s380 = sand.u32 %s27, 1
          %s381 = scalar_lea.sflag [#allocation4], %s380
          %s382 = sand.u32 %s58, 1
          %s383 = smul.addr %s382, 256
          %s384 = scalar_lea.vmem [#allocation3], %s383
          %s385 = smul.u32 16, %s35
          %s387 = ssub.s32 4096, 4096
          %388 = vsyncadd %s381, %s387
          %s389 = smul.addr %s385, 2
          %s390 = smul.addr %s34, 64
          %s391 = sadd.s32 %s389, %s390
          %s392 = smul.addr %s391, 128
          %s393 = scalar_lea.hbm %s0, %s392
          %s394 = sshll.u32 %s384, 4
          %s395 = int_to_ptr.vmem [resolvable:$true] %s394
          %400 = dma.hbm_to_vmem [thread:$0]  %s393, 4096, %s395, %s381, 256, 256, 16
        $region24: #{attention_block.2} parent=19 // pred_fallthru
          _
        // Predicated region
        $region25: #{attention_block.2} parent=19 // pred_check
          %p401 = pneg %p115
        $region26: #{attention_block.2} parent=19 // pred_check_branch
          %403 = sbr.rel (%p401) target = $region28
        $region27: #{attention_block.2} parent=19 // pred_region
          %s404 = sand.u32 %s27, 1
          %s405 = scalar_lea.sflag [#allocation4], %s404
          %s406 = sand.u32 %s105, 1
          %s407 = smul.addr %s406, 128
          %s408 = scalar_lea.vmem [#allocation8], %s407
          %s410 = ssub.s32 2048, 2048
          %411 = vsyncadd %s405, %s410
          %s412 = smul.addr %s36, 64
          %s413 = scalar_lea.hbm %s2, %s412
          %s414 = sshll.u32 %s408, 4
          %s415 = int_to_ptr.vmem [resolvable:$true] %s414
          %420 = dma.hbm_to_vmem [thread:$0]  %s413, 2048, %s415, %s405, 128, 64, 4
        $region28: #{attention_block.2} parent=19 // pred_fallthru
          _
        // Predicated region
        $region29: #{attention_block.2} parent=19 // pred_check
          %p421 = pneg %p141
        $region30: #{attention_block.2} parent=19 // pred_check_branch
          %423 = sbr.rel (%p421) target = $region32
        $region31: #{attention_block.2} parent=19 // pred_region
          %s424 = sand.u32 %s27, 1
          %s425 = scalar_lea.sflag [#allocation4], %s424
          %s426 = sand.u32 %s131, 1
          %s427 = smul.addr %s426, 128
          %s428 = scalar_lea.vmem [#allocation9], %s427
          %s430 = ssub.s32 2048, 2048
          %431 = vsyncadd %s425, %s430
          %s432 = smul.addr %s36, 64
          %s433 = scalar_lea.hbm %s3, %s432
          %s434 = sshll.u32 %s428, 4
          %s435 = int_to_ptr.vmem [resolvable:$true] %s434
          %440 = dma.hbm_to_vmem [thread:$0]  %s433, 2048, %s435, %s425, 128, 64, 4
        $region32: #{attention_block.2} parent=19 // pred_fallthru
          _
        // Predicated region
        $region33: #{attention_block.2} parent=19 // pred_check
          %p441 = pneg %p167
        $region34: #{attention_block.2} parent=19 // pred_check_branch
          %443 = sbr.rel (%p441) target = $region36
        $region35: #{attention_block.2} parent=19 // pred_region
          %s444 = sand.u32 %s27, 1
          %s445 = scalar_lea.sflag [#allocation4], %s444
          %s446 = sand.u32 %s157, 1
          %s447 = smul.addr %s446, 128
          %s448 = scalar_lea.vmem [#allocation10], %s447
          %s450 = ssub.s32 2048, 2048
          %451 = vsyncadd %s445, %s450
          %s452 = smul.addr %s36, 64
          %s453 = scalar_lea.hbm %s4, %s452
          %s454 = sshll.u32 %s448, 4
          %s455 = int_to_ptr.vmem [resolvable:$true] %s454
          %460 = dma.hbm_to_vmem [thread:$0]  %s453, 2048, %s455, %s445, 128, 64, 4
        $region36: #{attention_block.2} parent=19 // pred_fallthru
          _
        // Predicated region
        $region37: #{attention_block.2} parent=19 // pred_check
          %p461 = pneg %p195
        $region38: #{attention_block.2} parent=19 // pred_check_branch
          %463 = sbr.rel (%p461) target = $region40
        $region39: #{attention_block.2} parent=19 // pred_region
          %s464 = sand.u32 %s27, 1
          %s465 = scalar_lea.sflag [#allocation4], %s464
          %s466 = sand.u32 %s185, 1
          %s467 = smul.addr %s466, 128
          %s468 = scalar_lea.vmem [#allocation11], %s467
          %s469 = smul.u32 16, %s35
          %s471 = ssub.s32 2048, 2048
          %472 = vsyncadd %s465, %s471
          %s473 = smul.addr %s469, 2
          %s474 = sadd.s32 %s36, %s473
          %s475 = smul.addr %s474, 128
          %s476 = scalar_lea.hbm %s5, %s475
          %s477 = sshll.u32 %s468, 4
          %s478 = int_to_ptr.vmem [resolvable:$true] %s477
          %483 = dma.hbm_to_vmem [thread:$0]  %s476, 2048, %s478, %s465, 256, 128, 8
        $region40: #{attention_block.2} parent=19 // pred_fallthru
          _
        // Predicated region
        $region41: #{attention_block.2} parent=19 // pred_check
          %p484 = pneg %p223
        $region42: #{attention_block.2} parent=19 // pred_check_branch
          %486 = sbr.rel (%p484) target = $region44
        $region43: #{attention_block.2} parent=19 // pred_region
          %s487 = sand.u32 %s27, 1
          %s488 = scalar_lea.sflag [#allocation4], %s487
          %s489 = sand.u32 %s213, 1
          %s490 = smul.addr %s489, 128
          %s491 = scalar_lea.vmem [#allocation12], %s490
          %s492 = smul.u32 16, %s35
          %s494 = ssub.s32 2048, 2048
          %495 = vsyncadd %s488, %s494
          %s496 = smul.addr %s492, 2
          %s497 = sadd.s32 %s36, %s496
          %s498 = smul.addr %s497, 128
          %s499 = scalar_lea.hbm %s6, %s498
          %s500 = sshll.u32 %s491, 4
          %s501 = int_to_ptr.vmem [resolvable:$true] %s500
          %506 = dma.hbm_to_vmem [thread:$0]  %s499, 2048, %s501, %s488, 256, 128, 8
        $region44: #{attention_block.2} parent=19 // pred_fallthru
          _
        // Predicated region
        $region45: #{attention_block.2} parent=19 // pred_check
          %p507 = pneg %p251
        $region46: #{attention_block.2} parent=19 // pred_check_branch
          %509 = sbr.rel (%p507) target = $region48
        $region47: #{attention_block.2} parent=19 // pred_region
          %s510 = sand.u32 %s27, 1
          %s511 = scalar_lea.sflag [#allocation4], %s510
          %s512 = sand.u32 %s241, 1
          %s513 = smul.addr %s512, 128
          %s514 = scalar_lea.vmem [#allocation13], %s513
          %s515 = smul.u32 16, %s35
          %s517 = ssub.s32 2048, 2048
          %518 = vsyncadd %s511, %s517
          %s519 = smul.addr %s515, 2
          %s520 = sadd.s32 %s36, %s519
          %s521 = smul.addr %s520, 128
          %s522 = scalar_lea.hbm %s7, %s521
          %s523 = sshll.u32 %s514, 4
          %s524 = int_to_ptr.vmem [resolvable:$true] %s523
          %529 = dma.hbm_to_vmem [thread:$0]  %s522, 2048, %s524, %s511, 256, 128, 8
        $region48: #{attention_block.2} parent=19 // pred_fallthru
          _
      $region20: #{attention_block.2} parent=5 // pred_fallthru
        _
      %p530 = scmp.le.s32.totalorder 1, %s27
      %p531 = scmp.lt.s32.totalorder %s27, 9
      %p532 = pnand %p530, %p531
      %p533 = pneg %p532
      // Predicated region
      $region49: #{attention_block.2} parent=5 // pred_check
        _
      $region50: #{attention_block.2} parent=5 // pred_check_branch
        %535 = sbr.rel (%p532) target = $region52
      $region51: #{attention_block.2} parent=5 // pred_region
        %s536 = ssub.s32 %s27, 1
        %s537 = sand.u32 %s32, 1
        %s538 = scalar_lea.sflag [#allocation4], %s537
        %s539 = sand.u32 %s61, 1
        %s540 = smul.addr %s539, 256
        %s541 = scalar_lea.vmem [#allocation3], %s540
        // Predicated region
        $region53: #{attention_block.2} parent=51 // pred_check
          %p542 = pneg %p74
        $region54: #{attention_block.2} parent=51 // pred_check_branch
          %544 = sbr.rel (%p542) target = $region56
        $region55: #{attention_block.2} parent=51 // pred_region
          %545 = dma.done %s538, 4096
        $region56: #{attention_block.2} parent=51 // pred_fallthru
          _
        // Predicated region
        $region57: #{attention_block.2} parent=51 // pred_check
          %p546 = pneg %p95
        $region58: #{attention_block.2} parent=51 // pred_check_branch
          %548 = sbr.rel (%p546) target = $region60
        $region59: #{attention_block.2} parent=51 // pred_region
          %549 = dma.done [#allocation7], 32
        $region60: #{attention_block.2} parent=51 // pred_fallthru
          _
        %s550 = sand.u32 %s32, 1
        %s551 = scalar_lea.sflag [#allocation4], %s550
        %s552 = sand.u32 %s108, 1
        %s553 = smul.addr %s552, 128
        %s554 = scalar_lea.vmem [#allocation8], %s553
        // Predicated region
        $region61: #{attention_block.2} parent=51 // pred_check
          %p555 = pneg %p121
        $region62: #{attention_block.2} parent=51 // pred_check_branch
          %557 = sbr.rel (%p555) target = $region64
        $region63: #{attention_block.2} parent=51 // pred_region
          %558 = dma.done %s551, 2048
        $region64: #{attention_block.2} parent=51 // pred_fallthru
          _
        %s559 = sand.u32 %s32, 1
        %s560 = scalar_lea.sflag [#allocation4], %s559
        %s561 = sand.u32 %s134, 1
        %s562 = smul.addr %s561, 128
        %s563 = scalar_lea.vmem [#allocation9], %s562
        // Predicated region
        $region65: #{attention_block.2} parent=51 // pred_check
          %p564 = pneg %p147
        $region66: #{attention_block.2} parent=51 // pred_check_branch
          %566 = sbr.rel (%p564) target = $region68
        $region67: #{attention_block.2} parent=51 // pred_region
          %567 = dma.done %s560, 2048
        $region68: #{attention_block.2} parent=51 // pred_fallthru
          _
        %s568 = sand.u32 %s32, 1
        %s569 = scalar_lea.sflag [#allocation4], %s568
        %s570 = sand.u32 %s160, 1
        %s571 = smul.addr %s570, 128
        %s572 = scalar_lea.vmem [#allocation10], %s571
        // Predicated region
        $region69: #{attention_block.2} parent=51 // pred_check
          %p573 = pneg %p173
        $region70: #{attention_block.2} parent=51 // pred_check_branch
          %575 = sbr.rel (%p573) target = $region72
        $region71: #{attention_block.2} parent=51 // pred_region
          %576 = dma.done %s569, 2048
        $region72: #{attention_block.2} parent=51 // pred_fallthru
          _
        %s577 = sand.u32 %s32, 1
        %s578 = scalar_lea.sflag [#allocation4], %s577
        %s579 = sand.u32 %s188, 1
        %s580 = smul.addr %s579, 128
        %s581 = scalar_lea.vmem [#allocation11], %s580
        // Predicated region
        $region73: #{attention_block.2} parent=51 // pred_check
          %p582 = pneg %p201
        $region74: #{attention_block.2} parent=51 // pred_check_branch
          %584 = sbr.rel (%p582) target = $region76
        $region75: #{attention_block.2} parent=51 // pred_region
          %585 = dma.done %s578, 2048
        $region76: #{attention_block.2} parent=51 // pred_fallthru
          _
        %s586 = sand.u32 %s32, 1
        %s587 = scalar_lea.sflag [#allocation4], %s586
        %s588 = sand.u32 %s216, 1
        %s589 = smul.addr %s588, 128
        %s590 = scalar_lea.vmem [#allocation12], %s589
        // Predicated region
        $region77: #{attention_block.2} parent=51 // pred_check
          %p591 = pneg %p229
        $region78: #{attention_block.2} parent=51 // pred_check_branch
          %593 = sbr.rel (%p591) target = $region80
        $region79: #{attention_block.2} parent=51 // pred_region
          %594 = dma.done %s587, 2048
        $region80: #{attention_block.2} parent=51 // pred_fallthru
          _
        %s595 = sand.u32 %s32, 1
        %s596 = scalar_lea.sflag [#allocation4], %s595
        %s597 = sand.u32 %s244, 1
        %s598 = smul.addr %s597, 128
        %s599 = scalar_lea.vmem [#allocation13], %s598
        // Predicated region
        $region81: #{attention_block.2} parent=51 // pred_check
          %p600 = pneg %p257
        $region82: #{attention_block.2} parent=51 // pred_check_branch
          %602 = sbr.rel (%p600) target = $region84
        $region83: #{attention_block.2} parent=51 // pred_region
          %603 = dma.done %s596, 2048
        $region84: #{attention_block.2} parent=51 // pred_fallthru
          _
        %s604 = sand.u32 %s32, 1
        %s605 = scalar_lea.sflag [#allocation4], %s604
        %s606 = sand.u32 %s61, 1
        %s607 = smul.addr %s606, 256
        %s608 = scalar_lea.vmem [#allocation3], %s607
        %p609 = pneg %p74
        %p610 = pneg %p71
        %p611 = pneg %p95
        %p612 = pneg %p92
        %s613 = sand.u32 %s32, 1
        %s614 = scalar_lea.sflag [#allocation4], %s613
        %s615 = sand.u32 %s108, 1
        %s616 = smul.addr %s615, 128
        %s617 = scalar_lea.vmem [#allocation8], %s616
        %p618 = pneg %p121
        %p619 = pneg %p118
        %s620 = sand.u32 %s32, 1
        %s621 = scalar_lea.sflag [#allocation4], %s620
        %s622 = sand.u32 %s134, 1
        %s623 = smul.addr %s622, 128
        %s624 = scalar_lea.vmem [#allocation9], %s623
        %p625 = pneg %p147
        %p626 = pneg %p144
        %s627 = sand.u32 %s32, 1
        %s628 = scalar_lea.sflag [#allocation4], %s627
        %s629 = sand.u32 %s160, 1
        %s630 = smul.addr %s629, 128
        %s631 = scalar_lea.vmem [#allocation10], %s630
        %p632 = pneg %p173
        %p633 = pneg %p170
        %s634 = sand.u32 %s32, 1
        %s635 = scalar_lea.sflag [#allocation4], %s634
        %s636 = sand.u32 %s188, 1
        %s637 = smul.addr %s636, 128
        %s638 = scalar_lea.vmem [#allocation11], %s637
        %p639 = pneg %p201
        %p640 = pneg %p198
        %s641 = sand.u32 %s32, 1
        %s642 = scalar_lea.sflag [#allocation4], %s641
        %s643 = sand.u32 %s216, 1
        %s644 = smul.addr %s643, 128
        %s645 = scalar_lea.vmem [#allocation12], %s644
        %p646 = pneg %p229
        %p647 = pneg %p226
        %s648 = sand.u32 %s32, 1
        %s649 = scalar_lea.sflag [#allocation4], %s648
        %s650 = sand.u32 %s244, 1
        %s651 = smul.addr %s650, 128
        %s652 = scalar_lea.vmem [#allocation13], %s651
        %p653 = pneg %p257
        %p654 = pneg %p254
        %p655 = pneg %p287
        %p656 = pneg %p284
        %s657 = sand.u32 %s274, 1
        %s658 = scalar_lea.sflag [#allocation5], %s657
        %s659 = sand.u32 %s274, 1
        %s660 = smul.addr %s659, 64
        %s661 = scalar_lea.vmem [#allocation14], %s660
        %p662 = pneg %p317
        %p663 = pneg %p314
        %s664 = sand.u32 %s32, 1
        %s665 = scalar_lea.sflag [#allocation16], %s664
        %s666 = sand.u32 %s304, 1
        %s667 = smul.addr %s666, 64
        %s668 = scalar_lea.vmem [#allocation15], %s667
        %p669 = pneg %p347
        %p670 = pneg %p344
        %s671 = sand.u32 %s32, 1
        %s672 = scalar_lea.sflag [#allocation16], %s671
        %s673 = sand.u32 %s334, 1
        %s674 = smul.addr %s673, 64
        %s675 = scalar_lea.vmem [#allocation17], %s674
        %s676 = smul.u32 16, %s38
        %s677 = smul.u32 16, %s38
        %s678 = smul.u32 16, %s38
        %s679 = smul.u32 16, %s38
        %s680 = smul.u32 16, %s38
        %s681 = smul.u32 16, %s38
        %s682 = smul.u32 16, %s38
        %p684 = scmp.eq.s32.totalorder %s39, 0
        // Predicated region
        $region85: #{attention_block.2} parent=51 // pred_check
          %p685 = pneg %p684
        $region86: #{attention_block.2} parent=51 // pred_check_branch
          %687 = sbr.rel (%p685) target = $region88
        $region87: #{attention_block.2} parent=51 // pred_region
          %v688 = vld [vmem:[%s541] sm:$0xff]
          %v689 = vld [vmem:[%s541 + $0x8] sm:$0xff]
          %v690 = vld [vmem:[%s541 + $0x10] sm:$0xff]
          %v691 = vld [vmem:[%s541 + $0x18] sm:$0xff]
          %v692 = vld [vmem:[%s541 + $0x20] sm:$0xff]
          %v693 = vld [vmem:[%s541 + $0x28] sm:$0xff]
          %v694 = vld [vmem:[%s541 + $0x30] sm:$0xff]
          %v695 = vld [vmem:[%s541 + $0x38] sm:$0xff]
          %v696 = vld [vmem:[%s541 + $0x40] sm:$0xff]
          %v697 = vld [vmem:[%s541 + $0x48] sm:$0xff]
          %v698 = vld [vmem:[%s541 + $0x50] sm:$0xff]
          %v699 = vld [vmem:[%s541 + $0x58] sm:$0xff]
          %v700 = vld [vmem:[%s541 + $0x60] sm:$0xff]
          %v701 = vld [vmem:[%s541 + $0x68] sm:$0xff]
          %v702 = vld [vmem:[%s541 + $0x70] sm:$0xff]
          %v703 = vld [vmem:[%s541 + $0x78] sm:$0xff]
          %v704 = vld [vmem:[%s541 + $0x80] sm:$0xff]
          %v705 = vld [vmem:[%s541 + $0x88] sm:$0xff]
          %v706 = vld [vmem:[%s541 + $0x90] sm:$0xff]
          %v707 = vld [vmem:[%s541 + $0x98] sm:$0xff]
          %v708 = vld [vmem:[%s541 + $0xa0] sm:$0xff]
          %v709 = vld [vmem:[%s541 + $0xa8] sm:$0xff]
          %v710 = vld [vmem:[%s541 + $0xb0] sm:$0xff]
          %v711 = vld [vmem:[%s541 + $0xb8] sm:$0xff]
          %v712 = vld [vmem:[%s541 + $0xc0] sm:$0xff]
          %v713 = vld [vmem:[%s541 + $0xc8] sm:$0xff]
          %v714 = vld [vmem:[%s541 + $0xd0] sm:$0xff]
          %v715 = vld [vmem:[%s541 + $0xd8] sm:$0xff]
          %v716 = vld [vmem:[%s541 + $0xe0] sm:$0xff]
          %v717 = vld [vmem:[%s541 + $0xe8] sm:$0xff]
          %v718 = vld [vmem:[%s541 + $0xf0] sm:$0xff]
          %v719 = vld [vmem:[%s541 + $0xf8] sm:$0xff]
          %v720 = vmul.f32 %v688, %v688
          %v721 = vmul.f32 %v689, %v689
          %v722 = vmul.f32 %v690, %v690
          %v723 = vmul.f32 %v691, %v691
          %v724 = vmul.f32 %v692, %v692
          %v725 = vmul.f32 %v693, %v693
          %v726 = vmul.f32 %v694, %v694
          %v727 = vmul.f32 %v695, %v695
          %v728 = vmul.f32 %v696, %v696
          %v729 = vmul.f32 %v697, %v697
          %v730 = vmul.f32 %v698, %v698
          %v731 = vmul.f32 %v699, %v699
          %v732 = vmul.f32 %v700, %v700
          %v733 = vmul.f32 %v701, %v701
          %v734 = vmul.f32 %v702, %v702
          %v735 = vmul.f32 %v703, %v703
          %v736 = vmul.f32 %v704, %v704
          %v737 = vmul.f32 %v705, %v705
          %v738 = vmul.f32 %v706, %v706
          %v739 = vmul.f32 %v707, %v707
          %v740 = vmul.f32 %v708, %v708
          %v741 = vmul.f32 %v709, %v709
          %v742 = vmul.f32 %v710, %v710
          %v743 = vmul.f32 %v711, %v711
          %v744 = vmul.f32 %v712, %v712
          %v745 = vmul.f32 %v713, %v713
          %v746 = vmul.f32 %v714, %v714
          %v747 = vmul.f32 %v715, %v715
          %v748 = vmul.f32 %v716, %v716
          %v749 = vmul.f32 %v717, %v717
          %v750 = vmul.f32 %v718, %v718
          %v751 = vmul.f32 %v719, %v719
          %v752 = vadd.f32 %v720, %v721
          %753 = vadd.xlane.f32.xlu0 %v752
          %v754 = vpop.xlane.xlu0 %753
          %v755 = vadd.f32 %v722, %v723
          %756 = vadd.xlane.f32.xlu0 %v755
          %v757 = vpop.xlane.xlu0 %756
          %v758 = vadd.f32 %v724, %v725
          %759 = vadd.xlane.f32.xlu0 %v758
          %v760 = vpop.xlane.xlu0 %759
          %v761 = vadd.f32 %v726, %v727
          %762 = vadd.xlane.f32.xlu0 %v761
          %v763 = vpop.xlane.xlu0 %762
          %v764 = vadd.f32 %v728, %v729
          %765 = vadd.xlane.f32.xlu0 %v764
          %v766 = vpop.xlane.xlu0 %765
          %v767 = vadd.f32 %v730, %v731
          %768 = vadd.xlane.f32.xlu0 %v767
          %v769 = vpop.xlane.xlu0 %768
          %v770 = vadd.f32 %v732, %v733
          %771 = vadd.xlane.f32.xlu0 %v770
          %v772 = vpop.xlane.xlu0 %771
          %v773 = vadd.f32 %v734, %v735
          %774 = vadd.xlane.f32.xlu0 %v773
          %v775 = vpop.xlane.xlu0 %774
          %v776 = vadd.f32 %v736, %v737
          %777 = vadd.xlane.f32.xlu0 %v776
          %v778 = vpop.xlane.xlu0 %777
          %v779 = vadd.f32 %v738, %v739
          %780 = vadd.xlane.f32.xlu0 %v779
          %v781 = vpop.xlane.xlu0 %780
          %v782 = vadd.f32 %v740, %v741
          %783 = vadd.xlane.f32.xlu0 %v782
          %v784 = vpop.xlane.xlu0 %783
          %v785 = vadd.f32 %v742, %v743
          %786 = vadd.xlane.f32.xlu0 %v785
          %v787 = vpop.xlane.xlu0 %786
          %v788 = vadd.f32 %v744, %v745
          %789 = vadd.xlane.f32.xlu0 %v788
          %v790 = vpop.xlane.xlu0 %789
          %v791 = vadd.f32 %v746, %v747
          %792 = vadd.xlane.f32.xlu0 %v791
          %v793 = vpop.xlane.xlu0 %792
          %v794 = vadd.f32 %v748, %v749
          %795 = vadd.xlane.f32.xlu0 %v794
          %v796 = vpop.xlane.xlu0 %795
          %v797 = vadd.f32 %v750, %v751
          %798 = vadd.xlane.f32.xlu0 %v797
          %v799 = vpop.xlane.xlu0 %798
          %v800 = vrcp.pop 256.0
          %v801 = vmul.f32 %v754, %v800
          %v802 = vmul.f32 %v757, %v800
          %v803 = vmul.f32 %v760, %v800
          %v804 = vmul.f32 %v763, %v800
          %v805 = vmul.f32 %v766, %v800
          %v806 = vmul.f32 %v769, %v800
          %v807 = vmul.f32 %v772, %v800
          %v808 = vmul.f32 %v775, %v800
          %v809 = vmul.f32 %v778, %v800
          %v810 = vmul.f32 %v781, %v800
          %v811 = vmul.f32 %v784, %v800
          %v812 = vmul.f32 %v787, %v800
          %v813 = vmul.f32 %v790, %v800
          %v814 = vmul.f32 %v793, %v800
          %v815 = vmul.f32 %v796, %v800
          %v816 = vmul.f32 %v799, %v800
          %v817 = vadd.f32 %v801, 1e-06
          %v818 = vadd.f32 %v802, 1e-06
          %v819 = vadd.f32 %v803, 1e-06
          %v820 = vadd.f32 %v804, 1e-06
          %v821 = vadd.f32 %v805, 1e-06
          %v822 = vadd.f32 %v806, 1e-06
          %v823 = vadd.f32 %v807, 1e-06
          %v824 = vadd.f32 %v808, 1e-06
          %v825 = vadd.f32 %v809, 1e-06
          %v826 = vadd.f32 %v810, 1e-06
          %v827 = vadd.f32 %v811, 1e-06
          %v828 = vadd.f32 %v812, 1e-06
          %v829 = vadd.f32 %v813, 1e-06
          %v830 = vadd.f32 %v814, 1e-06
          %v831 = vadd.f32 %v815, 1e-06
          %v832 = vadd.f32 %v816, 1e-06
          %v833 = vrsqrt.pop %v817
          %v834 = vrsqrt.pop %v818
          %v835 = vrsqrt.pop %v819
          %v836 = vrsqrt.pop %v820
          %v837 = vrsqrt.pop %v821
          %v838 = vrsqrt.pop %v822
          %v839 = vrsqrt.pop %v823
          %v840 = vrsqrt.pop %v824
          %v841 = vrsqrt.pop %v825
          %v842 = vrsqrt.pop %v826
          %v843 = vrsqrt.pop %v827
          %v844 = vrsqrt.pop %v828
          %v845 = vrsqrt.pop %v829
          %v846 = vrsqrt.pop %v830
          %v847 = vrsqrt.pop %v831
          %v848 = vrsqrt.pop %v832
          %v849 = vmul.f32 %v688, %v833
          %v850 = vmul.f32 %v689, %v833
          %v851 = vmul.f32 %v690, %v834
          %v852 = vmul.f32 %v691, %v834
          %v853 = vmul.f32 %v692, %v835
          %v854 = vmul.f32 %v693, %v835
          %v855 = vmul.f32 %v694, %v836
          %v856 = vmul.f32 %v695, %v836
          %v857 = vmul.f32 %v696, %v837
          %v858 = vmul.f32 %v697, %v837
          %v859 = vmul.f32 %v698, %v838
          %v860 = vmul.f32 %v699, %v838
          %v861 = vmul.f32 %v700, %v839
          %v862 = vmul.f32 %v701, %v839
          %v863 = vmul.f32 %v702, %v840
          %v864 = vmul.f32 %v703, %v840
          %v865 = vmul.f32 %v704, %v841
          %v866 = vmul.f32 %v705, %v841
          %v867 = vmul.f32 %v706, %v842
          %v868 = vmul.f32 %v707, %v842
          %v869 = vmul.f32 %v708, %v843
          %v870 = vmul.f32 %v709, %v843
          %v871 = vmul.f32 %v710, %v844
          %v872 = vmul.f32 %v711, %v844
          %v873 = vmul.f32 %v712, %v845
          %v874 = vmul.f32 %v713, %v845
          %v875 = vmul.f32 %v714, %v846
          %v876 = vmul.f32 %v715, %v846
          %v877 = vmul.f32 %v716, %v847
          %v878 = vmul.f32 %v717, %v847
          %v879 = vmul.f32 %v718, %v848
          %v880 = vmul.f32 %v719, %v848
          %v881 = vld [vmem:[#allocation6] sm:$0x3]
          %v883 = vlaneseq
          %v884 = vshrl.u32 %v883, 7
          %v885 = vsub.s32 0, %v884
          %v886 = vrot.slane %v881, %v885
          %v887 = vlaneseq
          %v888 = vshrl.u32 %v887, 7
          %v889 = vsub.s32 1, %v888
          %v890 = vrot.slane %v881, %v889
          %v893 = vmul.f32 %v849, %v886
          %v894 = vmul.f32 %v850, %v890
          %v895 = vmul.f32 %v851, %v886
          %v896 = vmul.f32 %v852, %v890
          %v897 = vmul.f32 %v853, %v886
          %v898 = vmul.f32 %v854, %v890
          %v899 = vmul.f32 %v855, %v886
          %v900 = vmul.f32 %v856, %v890
          %v901 = vmul.f32 %v857, %v886
          %v902 = vmul.f32 %v858, %v890
          %v903 = vmul.f32 %v859, %v886
          %v904 = vmul.f32 %v860, %v890
          %v905 = vmul.f32 %v861, %v886
          %v906 = vmul.f32 %v862, %v890
          %v907 = vmul.f32 %v863, %v886
          %v908 = vmul.f32 %v864, %v890
          %v909 = vmul.f32 %v865, %v886
          %v910 = vmul.f32 %v866, %v890
          %v911 = vmul.f32 %v867, %v886
          %v912 = vmul.f32 %v868, %v890
          %v913 = vmul.f32 %v869, %v886
          %v914 = vmul.f32 %v870, %v890
          %v915 = vmul.f32 %v871, %v886
          %v916 = vmul.f32 %v872, %v890
          %v917 = vmul.f32 %v873, %v886
          %v918 = vmul.f32 %v874, %v890
          %v919 = vmul.f32 %v875, %v886
          %v920 = vmul.f32 %v876, %v890
          %v921 = vmul.f32 %v877, %v886
          %v922 = vmul.f32 %v878, %v890
          %v923 = vmul.f32 %v879, %v886
          %v924 = vmul.f32 %v880, %v890
          %v925 = vpack.c.bf16 %v895, %v893
          %v926 = vpack.c.bf16 %v896, %v894
          %v927 = vpack.c.bf16 %v899, %v897
          %v928 = vpack.c.bf16 %v900, %v898
          %v929 = vpack.c.bf16 %v903, %v901
          %v930 = vpack.c.bf16 %v904, %v902
          %v931 = vpack.c.bf16 %v907, %v905
          %v932 = vpack.c.bf16 %v908, %v906
          %v933 = vpack.c.bf16 %v911, %v909
          %v934 = vpack.c.bf16 %v912, %v910
          %v935 = vpack.c.bf16 %v915, %v913
          %v936 = vpack.c.bf16 %v916, %v914
          %v937 = vpack.c.bf16 %v919, %v917
          %v938 = vpack.c.bf16 %v920, %v918
          %v939 = vpack.c.bf16 %v923, %v921
          %v940 = vpack.c.bf16 %v924, %v922
          %941 = vst [vmem:[#allocation2] sm:$0xff] %v925
          %942 = vst [vmem:[#allocation2 + $0x8] sm:$0xff] %v926
          %943 = vst [vmem:[#allocation2 + $0x10] sm:$0xff] %v927
          %944 = vst [vmem:[#allocation2 + $0x18] sm:$0xff] %v928
          %945 = vst [vmem:[#allocation2 + $0x20] sm:$0xff] %v929
          %946 = vst [vmem:[#allocation2 + $0x28] sm:$0xff] %v930
          %947 = vst [vmem:[#allocation2 + $0x30] sm:$0xff] %v931
          %948 = vst [vmem:[#allocation2 + $0x38] sm:$0xff] %v932
          %949 = vst [vmem:[#allocation2 + $0x40] sm:$0xff] %v933
          %950 = vst [vmem:[#allocation2 + $0x48] sm:$0xff] %v934
          %951 = vst [vmem:[#allocation2 + $0x50] sm:$0xff] %v935
          %952 = vst [vmem:[#allocation2 + $0x58] sm:$0xff] %v936
          %953 = vst [vmem:[#allocation2 + $0x60] sm:$0xff] %v937
          %954 = vst [vmem:[#allocation2 + $0x68] sm:$0xff] %v938
          %955 = vst [vmem:[#allocation2 + $0x70] sm:$0xff] %v939
          %956 = vst [vmem:[#allocation2 + $0x78] sm:$0xff] %v940
        $region88: #{attention_block.2} parent=51 // pred_fallthru
          _
        %v957 = vld [vmem:[#allocation2] sm:$0xff]
        %v958 = vld [vmem:[#allocation2 + $0x8] sm:$0xff]
        %v959 = vld [vmem:[#allocation2 + $0x10] sm:$0xff]
        %v960 = vld [vmem:[#allocation2 + $0x18] sm:$0xff]
        %v961 = vld [vmem:[#allocation2 + $0x20] sm:$0xff]
        %v962 = vld [vmem:[#allocation2 + $0x28] sm:$0xff]
        %v963 = vld [vmem:[#allocation2 + $0x30] sm:$0xff]
        %v964 = vld [vmem:[#allocation2 + $0x38] sm:$0xff]
        %v965 = vld [vmem:[#allocation2 + $0x40] sm:$0xff]
        %v966 = vld [vmem:[#allocation2 + $0x48] sm:$0xff]
        %v967 = vld [vmem:[#allocation2 + $0x50] sm:$0xff]
        %v968 = vld [vmem:[#allocation2 + $0x58] sm:$0xff]
        %v969 = vld [vmem:[#allocation2 + $0x60] sm:$0xff]
        %v970 = vld [vmem:[#allocation2 + $0x68] sm:$0xff]
        %v971 = vld [vmem:[#allocation2 + $0x70] sm:$0xff]
        %v972 = vld [vmem:[#allocation2 + $0x78] sm:$0xff]
        %v973 = vld [vmem:[%s554] sm:$0xf]
        %v974 = vld [vmem:[%s554 + $0x4] sm:$0xf]
        %v975 = vld [vmem:[%s554 + $0x8] sm:$0xf]
        %v976 = vld [vmem:[%s554 + $0xc] sm:$0xf]
        %v977 = vld [vmem:[%s554 + $0x10] sm:$0xf]
        %v978 = vld [vmem:[%s554 + $0x14] sm:$0xf]
        %v979 = vld [vmem:[%s554 + $0x18] sm:$0xf]
        %v980 = vld [vmem:[%s554 + $0x1c] sm:$0xf]
        %v981 = vld [vmem:[%s554 + $0x20] sm:$0xf]
        %v982 = vld [vmem:[%s554 + $0x24] sm:$0xf]
        %v983 = vld [vmem:[%s554 + $0x28] sm:$0xf]
        %v984 = vld [vmem:[%s554 + $0x2c] sm:$0xf]
        %v985 = vld [vmem:[%s554 + $0x30] sm:$0xf]
        %v986 = vld [vmem:[%s554 + $0x34] sm:$0xf]
        %v987 = vld [vmem:[%s554 + $0x38] sm:$0xf]
        %v988 = vld [vmem:[%s554 + $0x3c] sm:$0xf]
        %v989 = vld [vmem:[%s554 + $0x40] sm:$0xf]
        %v990 = vld [vmem:[%s554 + $0x44] sm:$0xf]
        %v991 = vld [vmem:[%s554 + $0x48] sm:$0xf]
        %v992 = vld [vmem:[%s554 + $0x4c] sm:$0xf]
        %v993 = vld [vmem:[%s554 + $0x50] sm:$0xf]
        %v994 = vld [vmem:[%s554 + $0x54] sm:$0xf]
        %v995 = vld [vmem:[%s554 + $0x58] sm:$0xf]
        %v996 = vld [vmem:[%s554 + $0x5c] sm:$0xf]
        %v997 = vld [vmem:[%s554 + $0x60] sm:$0xf]
        %v998 = vld [vmem:[%s554 + $0x64] sm:$0xf]
        %v999 = vld [vmem:[%s554 + $0x68] sm:$0xf]
        %v1000 = vld [vmem:[%s554 + $0x6c] sm:$0xf]
        %v1001 = vld [vmem:[%s554 + $0x70] sm:$0xf]
        %v1002 = vld [vmem:[%s554 + $0x74] sm:$0xf]
        %v1003 = vld [vmem:[%s554 + $0x78] sm:$0xf]
        %v1004 = vld [vmem:[%s554 + $0x7c] sm:$0xf]
        %v1037 = vunpack.c.l.b16 %v973
        %v1038 = vunpack.c.l.b16 %v974
        %v1039 = vunpack.c.l.b16 %v975
        %v1040 = vunpack.c.l.b16 %v976
        %v1041 = vunpack.c.l.b16 %v977
        %v1042 = vunpack.c.l.b16 %v978
        %v1043 = vunpack.c.l.b16 %v979
        %v1044 = vunpack.c.l.b16 %v980
        %v1045 = vunpack.c.l.b16 %v981
        %v1046 = vunpack.c.l.b16 %v982
        %v1047 = vunpack.c.l.b16 %v983
        %v1048 = vunpack.c.l.b16 %v984
        %v1049 = vunpack.c.l.b16 %v985
        %v1050 = vunpack.c.l.b16 %v986
        %v1051 = vunpack.c.l.b16 %v987
        %v1052 = vunpack.c.l.b16 %v988
        %v1053 = vunpack.c.l.b16 %v989
        %v1054 = vunpack.c.l.b16 %v990
        %v1055 = vunpack.c.l.b16 %v991
        %v1056 = vunpack.c.l.b16 %v992
        %v1057 = vunpack.c.l.b16 %v993
        %v1058 = vunpack.c.l.b16 %v994
        %v1059 = vunpack.c.l.b16 %v995
        %v1060 = vunpack.c.l.b16 %v996
        %v1061 = vunpack.c.l.b16 %v997
        %v1062 = vunpack.c.l.b16 %v998
        %v1063 = vunpack.c.l.b16 %v999
        %v1064 = vunpack.c.l.b16 %v1000
        %v1065 = vunpack.c.l.b16 %v1001
        %v1066 = vunpack.c.l.b16 %v1002
        %v1067 = vunpack.c.l.b16 %v1003
        %v1068 = vunpack.c.l.b16 %v1004
        %v1069 = vpack.c.b16 %v1038, %v1037
        %v1070 = vpack.c.b16 %v1040, %v1039
        %v1071 = vpack.c.b16 %v1042, %v1041
        %v1072 = vpack.c.b16 %v1044, %v1043
        %v1073 = vpack.c.b16 %v1046, %v1045
        %v1074 = vpack.c.b16 %v1048, %v1047
        %v1075 = vpack.c.b16 %v1050, %v1049
        %v1076 = vpack.c.b16 %v1052, %v1051
        %v1077 = vpack.c.b16 %v1054, %v1053
        %v1078 = vpack.c.b16 %v1056, %v1055
        %v1079 = vpack.c.b16 %v1058, %v1057
        %v1080 = vpack.c.b16 %v1060, %v1059
        %v1081 = vpack.c.b16 %v1062, %v1061
        %v1082 = vpack.c.b16 %v1064, %v1063
        %v1083 = vpack.c.b16 %v1066, %v1065
        %v1084 = vpack.c.b16 %v1068, %v1067
        %1101 = vmatprep.subr.bf16.mxu0 0
        %1102 = vmatpush1.bf16.msra.mxu0 %v1069
        %1103 = vmatprep.subr.bf16.mxu0 0
        %1104 = vmatpush1.bf16.msra.mxu0 %v1070
        %1105 = vmatprep.subr.bf16.mxu0 0
        %1106 = vmatpush1.bf16.msra.mxu0 %v1071
        %1107 = vmatprep.subr.bf16.mxu0 0
        %1108 = vmatpush1.bf16.msra.mxu0 %v1072
        %1109 = vmatprep.subr.bf16.mxu0 0
        %1110 = vmatpush1.bf16.msra.mxu0 %v1073
        %1111 = vmatprep.subr.bf16.mxu0 0
        %1112 = vmatpush1.bf16.msra.mxu0 %v1074
        %1113 = vmatprep.subr.bf16.mxu0 0
        %1114 = vmatpush1.bf16.msra.mxu0 %v1075
        %1115 = vmatprep.subr.bf16.mxu0 0
        %1116 = vmatpush1.bf16.msra.mxu0 %v1076
        %1117 = vmatprep.subr.bf16.mxu0 0
        %1118 = vmatpush1.bf16.msra.mxu0 %v1077
        %1119 = vmatprep.subr.bf16.mxu0 0
        %1120 = vmatpush1.bf16.msra.mxu0 %v1078
        %1121 = vmatprep.subr.bf16.mxu0 0
        %1122 = vmatpush1.bf16.msra.mxu0 %v1079
        %1123 = vmatprep.subr.bf16.mxu0 0
        %1124 = vmatpush1.bf16.msra.mxu0 %v1080
        %1125 = vmatprep.subr.bf16.mxu0 0
        %1126 = vmatpush1.bf16.msra.mxu0 %v1081
        %1127 = vmatprep.subr.bf16.mxu0 0
        %1128 = vmatpush1.bf16.msra.mxu0 %v1082
        %1129 = vmatprep.subr.bf16.mxu0 0
        %1130 = vmatpush1.bf16.msra.mxu0 %v1083
        %1131 = vmatprep.subr.bf16.mxu0 0
        %1132 = vmatpush1.bf16.msra.mxu0 %v1084
        %1133 = vmatprep.mubr.bf16.mxu0 %v958
        %1134 = vmatmul.mubr.bf16.gmra.mrb[0].mxu0 %v957
        %v1135 = vpop.f32.mrb[0].mxu0
        %v1136 = vadd.f32 0.0, %v1135
        %v1137 = vpop.f32.mrb[0].mxu0
        %v1138 = vpop.f32.mrb[0].mxu0
        %v1139 = vadd.f32 0.0, %v1138
        %v1140 = vpop.f32.mrb[0].mxu0
        %1141 = vmatprep.mubr.bf16.mxu0 %v960
        %1142 = vmatmul.mubr.bf16.gmra.mrb[0].mxu0 %v959
        %v1143 = vpop.f32.mrb[0].mxu0
        %v1144 = vadd.f32 0.0, %v1143
        %v1145 = vpop.f32.mrb[0].mxu0
        %v1146 = vpop.f32.mrb[0].mxu0
        %v1147 = vadd.f32 0.0, %v1146
        %v1148 = vpop.f32.mrb[0].mxu0
        %1149 = vmatprep.mubr.bf16.mxu0 %v962
        %1150 = vmatmul.mubr.bf16.gmra.mrb[0].mxu0 %v961
        %v1151 = vpop.f32.mrb[0].mxu0
        %v1152 = vadd.f32 0.0, %v1151
        %v1153 = vpop.f32.mrb[0].mxu0
        %v1154 = vpop.f32.mrb[0].mxu0
        %v1155 = vadd.f32 0.0, %v1154
        %v1156 = vpop.f32.mrb[0].mxu0
        %1157 = vmatprep.mubr.bf16.mxu0 %v964
        %1158 = vmatmul.mubr.bf16.gmra.mrb[0].mxu0 %v963
        %v1159 = vpop.f32.mrb[0].mxu0
        %v1160 = vadd.f32 0.0, %v1159
        %v1161 = vpop.f32.mrb[0].mxu0
        %v1162 = vpop.f32.mrb[0].mxu0
        %v1163 = vadd.f32 0.0, %v1162
        %v1164 = vpop.f32.mrb[0].mxu0
        %1165 = vmatprep.mubr.bf16.mxu0 %v966
        %1166 = vmatmul.mubr.bf16.gmra.mrb[0].mxu0 %v965
        %v1167 = vpop.f32.mrb[0].mxu0
        %v1168 = vadd.f32 0.0, %v1167
        %v1169 = vpop.f32.mrb[0].mxu0
        %v1170 = vpop.f32.mrb[0].mxu0
        %v1171 = vadd.f32 0.0, %v1170
        %v1172 = vpop.f32.mrb[0].mxu0
        %1173 = vmatprep.mubr.bf16.mxu0 %v968
        %1174 = vmatmul.mubr.bf16.gmra.mrb[0].mxu0 %v967
        %v1175 = vpop.f32.mrb[0].mxu0
        %v1176 = vadd.f32 0.0, %v1175
        %v1177 = vpop.f32.mrb[0].mxu0
        %v1178 = vpop.f32.mrb[0].mxu0
        %v1179 = vadd.f32 0.0, %v1178
        %v1180 = vpop.f32.mrb[0].mxu0
        %1181 = vmatprep.mubr.bf16.mxu0 %v970
        %1182 = vmatmul.mubr.bf16.gmra.mrb[0].mxu0 %v969
        %v1183 = vpop.f32.mrb[0].mxu0
        %v1184 = vadd.f32 0.0, %v1183
        %v1185 = vpop.f32.mrb[0].mxu0
        %v1186 = vpop.f32.mrb[0].mxu0
        %v1187 = vadd.f32 0.0, %v1186
        %v1188 = vpop.f32.mrb[0].mxu0
        %1189 = vmatprep.mubr.bf16.mxu0 %v972
        %1190 = vmatmul.mubr.bf16.gmra.mrb[0].mxu0 %v971
        %v1191 = vpop.f32.mrb[0].mxu0
        %v1192 = vadd.f32 0.0, %v1191
        %v1193 = vpop.f32.mrb[0].mxu0
        %v1194 = vpop.f32.mrb[0].mxu0
        %v1195 = vadd.f32 0.0, %v1194
        %v1196 = vpop.f32.mrb[0].mxu0
        %1197 = vdwg.mxu0
        %v1198 = vld [vmem:[%s563] sm:$0xf]
        %v1199 = vld [vmem:[%s563 + $0x4] sm:$0xf]
        %v1200 = vld [vmem:[%s563 + $0x8] sm:$0xf]
        %v1201 = vld [vmem:[%s563 + $0xc] sm:$0xf]
        %v1202 = vld [vmem:[%s563 + $0x10] sm:$0xf]
        %v1203 = vld [vmem:[%s563 + $0x14] sm:$0xf]
        %v1204 = vld [vmem:[%s563 + $0x18] sm:$0xf]
        %v1205 = vld [vmem:[%s563 + $0x1c] sm:$0xf]
        %v1206 = vld [vmem:[%s563 + $0x20] sm:$0xf]
        %v1207 = vld [vmem:[%s563 + $0x24] sm:$0xf]
        %v1208 = vld [vmem:[%s563 + $0x28] sm:$0xf]
        %v1209 = vld [vmem:[%s563 + $0x2c] sm:$0xf]
        %v1210 = vld [vmem:[%s563 + $0x30] sm:$0xf]
        %v1211 = vld [vmem:[%s563 + $0x34] sm:$0xf]
        %v1212 = vld [vmem:[%s563 + $0x38] sm:$0xf]
        %v1213 = vld [vmem:[%s563 + $0x3c] sm:$0xf]
        %v1214 = vld [vmem:[%s563 + $0x40] sm:$0xf]
        %v1215 = vld [vmem:[%s563 + $0x44] sm:$0xf]
        %v1216 = vld [vmem:[%s563 + $0x48] sm:$0xf]
        %v1217 = vld [vmem:[%s563 + $0x4c] sm:$0xf]
        %v1218 = vld [vmem:[%s563 + $0x50] sm:$0xf]
        %v1219 = vld [vmem:[%s563 + $0x54] sm:$0xf]
        %v1220 = vld [vmem:[%s563 + $0x58] sm:$0xf]
        %v1221 = vld [vmem:[%s563 + $0x5c] sm:$0xf]
        %v1222 = vld [vmem:[%s563 + $0x60] sm:$0xf]
        %v1223 = vld [vmem:[%s563 + $0x64] sm:$0xf]
        %v1224 = vld [vmem:[%s563 + $0x68] sm:$0xf]
        %v1225 = vld [vmem:[%s563 + $0x6c] sm:$0xf]
        %v1226 = vld [vmem:[%s563 + $0x70] sm:$0xf]
        %v1227 = vld [vmem:[%s563 + $0x74] sm:$0xf]
        %v1228 = vld [vmem:[%s563 + $0x78] sm:$0xf]
        %v1229 = vld [vmem:[%s563 + $0x7c] sm:$0xf]
        %v1262 = vunpack.c.l.b16 %v1198
        %v1263 = vunpack.c.l.b16 %v1199
        %v1264 = vunpack.c.l.b16 %v1200
        %v1265 = vunpack.c.l.b16 %v1201
        %v1266 = vunpack.c.l.b16 %v1202
        %v1267 = vunpack.c.l.b16 %v1203
        %v1268 = vunpack.c.l.b16 %v1204
        %v1269 = vunpack.c.l.b16 %v1205
        %v1270 = vunpack.c.l.b16 %v1206
        %v1271 = vunpack.c.l.b16 %v1207
        %v1272 = vunpack.c.l.b16 %v1208
        %v1273 = vunpack.c.l.b16 %v1209
        %v1274 = vunpack.c.l.b16 %v1210
        %v1275 = vunpack.c.l.b16 %v1211
        %v1276 = vunpack.c.l.b16 %v1212
        %v1277 = vunpack.c.l.b16 %v1213
        %v1278 = vunpack.c.l.b16 %v1214
        %v1279 = vunpack.c.l.b16 %v1215
        %v1280 = vunpack.c.l.b16 %v1216
        %v1281 = vunpack.c.l.b16 %v1217
        %v1282 = vunpack.c.l.b16 %v1218
        %v1283 = vunpack.c.l.b16 %v1219
        %v1284 = vunpack.c.l.b16 %v1220
        %v1285 = vunpack.c.l.b16 %v1221
        %v1286 = vunpack.c.l.b16 %v1222
        %v1287 = vunpack.c.l.b16 %v1223
        %v1288 = vunpack.c.l.b16 %v1224
        %v1289 = vunpack.c.l.b16 %v1225
        %v1290 = vunpack.c.l.b16 %v1226
        %v1291 = vunpack.c.l.b16 %v1227
        %v1292 = vunpack.c.l.b16 %v1228
        %v1293 = vunpack.c.l.b16 %v1229
        %v1294 = vpack.c.b16 %v1263, %v1262
        %v1295 = vpack.c.b16 %v1265, %v1264
        %v1296 = vpack.c.b16 %v1267, %v1266
        %v1297 = vpack.c.b16 %v1269, %v1268
        %v1298 = vpack.c.b16 %v1271, %v1270
        %v1299 = vpack.c.b16 %v1273, %v1272
        %v1300 = vpack.c.b16 %v1275, %v1274
        %v1301 = vpack.c.b16 %v1277, %v1276
        %v1302 = vpack.c.b16 %v1279, %v1278
        %v1303 = vpack.c.b16 %v1281, %v1280
        %v1304 = vpack.c.b16 %v1283, %v1282
        %v1305 = vpack.c.b16 %v1285, %v1284
        %v1306 = vpack.c.b16 %v1287, %v1286
        %v1307 = vpack.c.b16 %v1289, %v1288
        %v1308 = vpack.c.b16 %v1291, %v1290
        %v1309 = vpack.c.b16 %v1293, %v1292
        %1326 = vmatprep.subr.bf16.mxu0 0
        %1327 = vmatpush1.bf16.msra.mxu0 %v1294
        %1328 = vmatprep.subr.bf16.mxu0 0
        %1329 = vmatpush1.bf16.msra.mxu0 %v1295
        %1330 = vmatprep.subr.bf16.mxu0 0
        %1331 = vmatpush1.bf16.msra.mxu0 %v1296
        %1332 = vmatprep.subr.bf16.mxu0 0
        %1333 = vmatpush1.bf16.msra.mxu0 %v1297
        %1334 = vmatprep.subr.bf16.mxu0 0
        %1335 = vmatpush1.bf16.msra.mxu0 %v1298
        %1336 = vmatprep.subr.bf16.mxu0 0
        %1337 = vmatpush1.bf16.msra.mxu0 %v1299
        %1338 = vmatprep.subr.bf16.mxu0 0
        %1339 = vmatpush1.bf16.msra.mxu0 %v1300
        %1340 = vmatprep.subr.bf16.mxu0 0
        %1341 = vmatpush1.bf16.msra.mxu0 %v1301
        %1342 = vmatprep.subr.bf16.mxu0 0
        %1343 = vmatpush1.bf16.msra.mxu0 %v1302
        %1344 = vmatprep.subr.bf16.mxu0 0
        %1345 = vmatpush1.bf16.msra.mxu0 %v1303
        %1346 = vmatprep.subr.bf16.mxu0 0
        %1347 = vmatpush1.bf16.msra.mxu0 %v1304
        %1348 = vmatprep.subr.bf16.mxu0 0
        %1349 = vmatpush1.bf16.msra.mxu0 %v1305
        %1350 = vmatprep.subr.bf16.mxu0 0
        %1351 = vmatpush1.bf16.msra.mxu0 %v1306
        %1352 = vmatprep.subr.bf16.mxu0 0
        %1353 = vmatpush1.bf16.msra.mxu0 %v1307
        %1354 = vmatprep.subr.bf16.mxu0 0
        %1355 = vmatpush1.bf16.msra.mxu0 %v1308
        %1356 = vmatprep.subr.bf16.mxu0 0
        %1357 = vmatpush1.bf16.msra.mxu0 %v1309
        %1358 = vmatprep.mubr.bf16.mxu0 %v958
        %1359 = vmatmul.mubr.bf16.gmra.mrb[0].mxu0 %v957
        %v1360 = vpop.f32.mrb[0].mxu0
        %v1361 = vadd.f32 0.0, %v1360
        %v1362 = vpop.f32.mrb[0].mxu0
        %v1363 = vpop.f32.mrb[0].mxu0
        %v1364 = vadd.f32 0.0, %v1363
        %v1365 = vpop.f32.mrb[0].mxu0
        %1366 = vmatprep.mubr.bf16.mxu0 %v960
        %1367 = vmatmul.mubr.bf16.gmra.mrb[0].mxu0 %v959
        %v1368 = vpop.f32.mrb[0].mxu0
        %v1369 = vadd.f32 0.0, %v1368
        %v1370 = vpop.f32.mrb[0].mxu0
        %v1371 = vpop.f32.mrb[0].mxu0
        %v1372 = vadd.f32 0.0, %v1371
        %v1373 = vpop.f32.mrb[0].mxu0
        %1374 = vmatprep.mubr.bf16.mxu0 %v962
        %1375 = vmatmul.mubr.bf16.gmra.mrb[0].mxu0 %v961
        %v1376 = vpop.f32.mrb[0].mxu0
        %v1377 = vadd.f32 0.0, %v1376
        %v1378 = vpop.f32.mrb[0].mxu0
        %v1379 = vpop.f32.mrb[0].mxu0
        %v1380 = vadd.f32 0.0, %v1379
        %v1381 = vpop.f32.mrb[0].mxu0
        %1382 = vmatprep.mubr.bf16.mxu0 %v964
        %1383 = vmatmul.mubr.bf16.gmra.mrb[0].mxu0 %v963
        %v1384 = vpop.f32.mrb[0].mxu0
        %v1385 = vadd.f32 0.0, %v1384
        %v1386 = vpop.f32.mrb[0].mxu0
        %v1387 = vpop.f32.mrb[0].mxu0
        %v1388 = vadd.f32 0.0, %v1387
        %v1389 = vpop.f32.mrb[0].mxu0
        %1390 = vmatprep.mubr.bf16.mxu0 %v966
        %1391 = vmatmul.mubr.bf16.gmra.mrb[0].mxu0 %v965
        %v1392 = vpop.f32.mrb[0].mxu0
        %v1393 = vadd.f32 0.0, %v1392
        %v1394 = vpop.f32.mrb[0].mxu0
        %v1395 = vpop.f32.mrb[0].mxu0
        %v1396 = vadd.f32 0.0, %v1395
        %v1397 = vpop.f32.mrb[0].mxu0
        %1398 = vmatprep.mubr.bf16.mxu0 %v968
        %1399 = vmatmul.mubr.bf16.gmra.mrb[0].mxu0 %v967
        %v1400 = vpop.f32.mrb[0].mxu0
        %v1401 = vadd.f32 0.0, %v1400
        %v1402 = vpop.f32.mrb[0].mxu0
        %v1403 = vpop.f32.mrb[0].mxu0
        %v1404 = vadd.f32 0.0, %v1403
        %v1405 = vpop.f32.mrb[0].mxu0
        %1406 = vmatprep.mubr.bf16.mxu0 %v970
        %1407 = vmatmul.mubr.bf16.gmra.mrb[0].mxu0 %v969
        %v1408 = vpop.f32.mrb[0].mxu0
        %v1409 = vadd.f32 0.0, %v1408
        %v1410 = vpop.f32.mrb[0].mxu0
        %v1411 = vpop.f32.mrb[0].mxu0
        %v1412 = vadd.f32 0.0, %v1411
        %v1413 = vpop.f32.mrb[0].mxu0
        %1414 = vmatprep.mubr.bf16.mxu0 %v972
        %1415 = vmatmul.mubr.bf16.gmra.mrb[0].mxu0 %v971
        %v1416 = vpop.f32.mrb[0].mxu0
        %v1417 = vadd.f32 0.0, %v1416
        %v1418 = vpop.f32.mrb[0].mxu0
        %v1419 = vpop.f32.mrb[0].mxu0
        %v1420 = vadd.f32 0.0, %v1419
        %v1421 = vpop.f32.mrb[0].mxu0
        %1422 = vdwg.mxu0
        %v1423 = vld [vmem:[%s572] sm:$0xf]
        %v1424 = vld [vmem:[%s572 + $0x4] sm:$0xf]
        %v1425 = vld [vmem:[%s572 + $0x8] sm:$0xf]
        %v1426 = vld [vmem:[%s572 + $0xc] sm:$0xf]
        %v1427 = vld [vmem:[%s572 + $0x10] sm:$0xf]
        %v1428 = vld [vmem:[%s572 + $0x14] sm:$0xf]
        %v1429 = vld [vmem:[%s572 + $0x18] sm:$0xf]
        %v1430 = vld [vmem:[%s572 + $0x1c] sm:$0xf]
        %v1431 = vld [vmem:[%s572 + $0x20] sm:$0xf]
        %v1432 = vld [vmem:[%s572 + $0x24] sm:$0xf]
        %v1433 = vld [vmem:[%s572 + $0x28] sm:$0xf]
        %v1434 = vld [vmem:[%s572 + $0x2c] sm:$0xf]
        %v1435 = vld [vmem:[%s572 + $0x30] sm:$0xf]
        %v1436 = vld [vmem:[%s572 + $0x34] sm:$0xf]
        %v1437 = vld [vmem:[%s572 + $0x38] sm:$0xf]
        %v1438 = vld [vmem:[%s572 + $0x3c] sm:$0xf]
        %v1439 = vld [vmem:[%s572 + $0x40] sm:$0xf]
        %v1440 = vld [vmem:[%s572 + $0x44] sm:$0xf]
        %v1441 = vld [vmem:[%s572 + $0x48] sm:$0xf]
        %v1442 = vld [vmem:[%s572 + $0x4c] sm:$0xf]
        %v1443 = vld [vmem:[%s572 + $0x50] sm:$0xf]
        %v1444 = vld [vmem:[%s572 + $0x54] sm:$0xf]
        %v1445 = vld [vmem:[%s572 + $0x58] sm:$0xf]
        %v1446 = vld [vmem:[%s572 + $0x5c] sm:$0xf]
        %v1447 = vld [vmem:[%s572 + $0x60] sm:$0xf]
        %v1448 = vld [vmem:[%s572 + $0x64] sm:$0xf]
        %v1449 = vld [vmem:[%s572 + $0x68] sm:$0xf]
        %v1450 = vld [vmem:[%s572 + $0x6c] sm:$0xf]
        %v1451 = vld [vmem:[%s572 + $0x70] sm:$0xf]
        %v1452 = vld [vmem:[%s572 + $0x74] sm:$0xf]
        %v1453 = vld [vmem:[%s572 + $0x78] sm:$0xf]
        %v1454 = vld [vmem:[%s572 + $0x7c] sm:$0xf]
        %v1487 = vunpack.c.l.b16 %v1423
        %v1488 = vunpack.c.l.b16 %v1424
        %v1489 = vunpack.c.l.b16 %v1425
        %v1490 = vunpack.c.l.b16 %v1426
        %v1491 = vunpack.c.l.b16 %v1427
        %v1492 = vunpack.c.l.b16 %v1428
        %v1493 = vunpack.c.l.b16 %v1429
        %v1494 = vunpack.c.l.b16 %v1430
        %v1495 = vunpack.c.l.b16 %v1431
        %v1496 = vunpack.c.l.b16 %v1432
        %v1497 = vunpack.c.l.b16 %v1433
        %v1498 = vunpack.c.l.b16 %v1434
        %v1499 = vunpack.c.l.b16 %v1435
        %v1500 = vunpack.c.l.b16 %v1436
        %v1501 = vunpack.c.l.b16 %v1437
        %v1502 = vunpack.c.l.b16 %v1438
        %v1503 = vunpack.c.l.b16 %v1439
        %v1504 = vunpack.c.l.b16 %v1440
        %v1505 = vunpack.c.l.b16 %v1441
        %v1506 = vunpack.c.l.b16 %v1442
        %v1507 = vunpack.c.l.b16 %v1443
        %v1508 = vunpack.c.l.b16 %v1444
        %v1509 = vunpack.c.l.b16 %v1445
        %v1510 = vunpack.c.l.b16 %v1446
        %v1511 = vunpack.c.l.b16 %v1447
        %v1512 = vunpack.c.l.b16 %v1448
        %v1513 = vunpack.c.l.b16 %v1449
        %v1514 = vunpack.c.l.b16 %v1450
        %v1515 = vunpack.c.l.b16 %v1451
        %v1516 = vunpack.c.l.b16 %v1452
        %v1517 = vunpack.c.l.b16 %v1453
        %v1518 = vunpack.c.l.b16 %v1454
        %v1519 = vpack.c.b16 %v1488, %v1487
        %v1520 = vpack.c.b16 %v1490, %v1489
        %v1521 = vpack.c.b16 %v1492, %v1491
        %v1522 = vpack.c.b16 %v1494, %v1493
        %v1523 = vpack.c.b16 %v1496, %v1495
        %v1524 = vpack.c.b16 %v1498, %v1497
        %v1525 = vpack.c.b16 %v1500, %v1499
        %v1526 = vpack.c.b16 %v1502, %v1501
        %v1527 = vpack.c.b16 %v1504, %v1503
        %v1528 = vpack.c.b16 %v1506, %v1505
        %v1529 = vpack.c.b16 %v1508, %v1507
        %v1530 = vpack.c.b16 %v1510, %v1509
        %v1531 = vpack.c.b16 %v1512, %v1511
        %v1532 = vpack.c.b16 %v1514, %v1513
        %v1533 = vpack.c.b16 %v1516, %v1515
        %v1534 = vpack.c.b16 %v1518, %v1517
        %1551 = vmatprep.subr.bf16.mxu0 0
        %1552 = vmatpush1.bf16.msra.mxu0 %v1519
        %1553 = vmatprep.subr.bf16.mxu0 0
        %1554 = vmatpush1.bf16.msra.mxu0 %v1520
        %1555 = vmatprep.subr.bf16.mxu0 0
        %1556 = vmatpush1.bf16.msra.mxu0 %v1521
        %1557 = vmatprep.subr.bf16.mxu0 0
        %1558 = vmatpush1.bf16.msra.mxu0 %v1522
        %1559 = vmatprep.subr.bf16.mxu0 0
        %1560 = vmatpush1.bf16.msra.mxu0 %v1523
        %1561 = vmatprep.subr.bf16.mxu0 0
        %1562 = vmatpush1.bf16.msra.mxu0 %v1524
        %1563 = vmatprep.subr.bf16.mxu0 0
        %1564 = vmatpush1.bf16.msra.mxu0 %v1525
        %1565 = vmatprep.subr.bf16.mxu0 0
        %1566 = vmatpush1.bf16.msra.mxu0 %v1526
        %1567 = vmatprep.subr.bf16.mxu0 0
        %1568 = vmatpush1.bf16.msra.mxu0 %v1527
        %1569 = vmatprep.subr.bf16.mxu0 0
        %1570 = vmatpush1.bf16.msra.mxu0 %v1528
        %1571 = vmatprep.subr.bf16.mxu0 0
        %1572 = vmatpush1.bf16.msra.mxu0 %v1529
        %1573 = vmatprep.subr.bf16.mxu0 0
        %1574 = vmatpush1.bf16.msra.mxu0 %v1530
        %1575 = vmatprep.subr.bf16.mxu0 0
        %1576 = vmatpush1.bf16.msra.mxu0 %v1531
        %1577 = vmatprep.subr.bf16.mxu0 0
        %1578 = vmatpush1.bf16.msra.mxu0 %v1532
        %1579 = vmatprep.subr.bf16.mxu0 0
        %1580 = vmatpush1.bf16.msra.mxu0 %v1533
        %1581 = vmatprep.subr.bf16.mxu0 0
        %1582 = vmatpush1.bf16.msra.mxu0 %v1534
        %1583 = vmatprep.mubr.bf16.mxu0 %v958
        %1584 = vmatmul.mubr.bf16.gmra.mrb[0].mxu0 %v957
        %v1585 = vpop.f32.mrb[0].mxu0
        %v1586 = vadd.f32 0.0, %v1585
        %v1587 = vpop.f32.mrb[0].mxu0
        %v1588 = vpop.f32.mrb[0].mxu0
        %v1589 = vadd.f32 0.0, %v1588
        %v1590 = vpop.f32.mrb[0].mxu0
        %1591 = vmatprep.mubr.bf16.mxu0 %v960
        %1592 = vmatmul.mubr.bf16.gmra.mrb[0].mxu0 %v959
        %v1593 = vpop.f32.mrb[0].mxu0
        %v1594 = vadd.f32 0.0, %v1593
        %v1595 = vpop.f32.mrb[0].mxu0
        %v1596 = vpop.f32.mrb[0].mxu0
        %v1597 = vadd.f32 0.0, %v1596
        %v1598 = vpop.f32.mrb[0].mxu0
        %1599 = vmatprep.mubr.bf16.mxu0 %v962
        %1600 = vmatmul.mubr.bf16.gmra.mrb[0].mxu0 %v961
        %v1601 = vpop.f32.mrb[0].mxu0
        %v1602 = vadd.f32 0.0, %v1601
        %v1603 = vpop.f32.mrb[0].mxu0
        %v1604 = vpop.f32.mrb[0].mxu0
        %v1605 = vadd.f32 0.0, %v1604
        %v1606 = vpop.f32.mrb[0].mxu0
        %1607 = vmatprep.mubr.bf16.mxu0 %v964
        %1608 = vmatmul.mubr.bf16.gmra.mrb[0].mxu0 %v963
        %v1609 = vpop.f32.mrb[0].mxu0
        %v1610 = vadd.f32 0.0, %v1609
        %v1611 = vpop.f32.mrb[0].mxu0
        %v1612 = vpop.f32.mrb[0].mxu0
        %v1613 = vadd.f32 0.0, %v1612
        %v1614 = vpop.f32.mrb[0].mxu0
        %1615 = vmatprep.mubr.bf16.mxu0 %v966
        %1616 = vmatmul.mubr.bf16.gmra.mrb[0].mxu0 %v965
        %v1617 = vpop.f32.mrb[0].mxu0
        %v1618 = vadd.f32 0.0, %v1617
        %v1619 = vpop.f32.mrb[0].mxu0
        %v1620 = vpop.f32.mrb[0].mxu0
        %v1621 = vadd.f32 0.0, %v1620
        %v1622 = vpop.f32.mrb[0].mxu0
        %1623 = vmatprep.mubr.bf16.mxu0 %v968
        %1624 = vmatmul.mubr.bf16.gmra.mrb[0].mxu0 %v967
        %v1625 = vpop.f32.mrb[0].mxu0
        %v1626 = vadd.f32 0.0, %v1625
        %v1627 = vpop.f32.mrb[0].mxu0
        %v1628 = vpop.f32.mrb[0].mxu0
        %v1629 = vadd.f32 0.0, %v1628
        %v1630 = vpop.f32.mrb[0].mxu0
        %1631 = vmatprep.mubr.bf16.mxu0 %v970
        %1632 = vmatmul.mubr.bf16.gmra.mrb[0].mxu0 %v969
        %v1633 = vpop.f32.mrb[0].mxu0
        %v1634 = vadd.f32 0.0, %v1633
        %v1635 = vpop.f32.mrb[0].mxu0
        %v1636 = vpop.f32.mrb[0].mxu0
        %v1637 = vadd.f32 0.0, %v1636
        %v1638 = vpop.f32.mrb[0].mxu0
        %1639 = vmatprep.mubr.bf16.mxu0 %v972
        %1640 = vmatmul.mubr.bf16.gmra.mrb[0].mxu0 %v971
        %v1641 = vpop.f32.mrb[0].mxu0
        %v1642 = vadd.f32 0.0, %v1641
        %v1643 = vpop.f32.mrb[0].mxu0
        %v1644 = vpop.f32.mrb[0].mxu0
        %v1645 = vadd.f32 0.0, %v1644
        %v1646 = vpop.f32.mrb[0].mxu0
        %1647 = vdwg.mxu0
        %v1648 = vld [vmem:[%s581] sm:$0xff]
        %v1649 = vld [vmem:[%s581 + $0x8] sm:$0xff]
        %v1650 = vld [vmem:[%s581 + $0x10] sm:$0xff]
        %v1651 = vld [vmem:[%s581 + $0x18] sm:$0xff]
        %v1652 = vld [vmem:[%s581 + $0x20] sm:$0xff]
        %v1653 = vld [vmem:[%s581 + $0x28] sm:$0xff]
        %v1654 = vld [vmem:[%s581 + $0x30] sm:$0xff]
        %v1655 = vld [vmem:[%s581 + $0x38] sm:$0xff]
        %v1656 = vld [vmem:[%s581 + $0x40] sm:$0xff]
        %v1657 = vld [vmem:[%s581 + $0x48] sm:$0xff]
        %v1658 = vld [vmem:[%s581 + $0x50] sm:$0xff]
        %v1659 = vld [vmem:[%s581 + $0x58] sm:$0xff]
        %v1660 = vld [vmem:[%s581 + $0x60] sm:$0xff]
        %v1661 = vld [vmem:[%s581 + $0x68] sm:$0xff]
        %v1662 = vld [vmem:[%s581 + $0x70] sm:$0xff]
        %v1663 = vld [vmem:[%s581 + $0x78] sm:$0xff]
        %v1664 = vld [vmem:[%s590] sm:$0xff]
        %v1665 = vld [vmem:[%s590 + $0x8] sm:$0xff]
        %v1666 = vld [vmem:[%s590 + $0x10] sm:$0xff]
        %v1667 = vld [vmem:[%s590 + $0x18] sm:$0xff]
        %v1668 = vld [vmem:[%s590 + $0x20] sm:$0xff]
        %v1669 = vld [vmem:[%s590 + $0x28] sm:$0xff]
        %v1670 = vld [vmem:[%s590 + $0x30] sm:$0xff]
        %v1671 = vld [vmem:[%s590 + $0x38] sm:$0xff]
        %v1672 = vld [vmem:[%s590 + $0x40] sm:$0xff]
        %v1673 = vld [vmem:[%s590 + $0x48] sm:$0xff]
        %v1674 = vld [vmem:[%s590 + $0x50] sm:$0xff]
        %v1675 = vld [vmem:[%s590 + $0x58] sm:$0xff]
        %v1676 = vld [vmem:[%s590 + $0x60] sm:$0xff]
        %v1677 = vld [vmem:[%s590 + $0x68] sm:$0xff]
        %v1678 = vld [vmem:[%s590 + $0x70] sm:$0xff]
        %v1679 = vld [vmem:[%s590 + $0x78] sm:$0xff]
        %v1680 = vld [vmem:[%s599] sm:$0xff]
        %v1681 = vld [vmem:[%s599 + $0x8] sm:$0xff]
        %v1682 = vld [vmem:[%s599 + $0x10] sm:$0xff]
        %v1683 = vld [vmem:[%s599 + $0x18] sm:$0xff]
        %v1684 = vld [vmem:[%s599 + $0x20] sm:$0xff]
        %v1685 = vld [vmem:[%s599 + $0x28] sm:$0xff]
        %v1686 = vld [vmem:[%s599 + $0x30] sm:$0xff]
        %v1687 = vld [vmem:[%s599 + $0x38] sm:$0xff]
        %v1688 = vld [vmem:[%s599 + $0x40] sm:$0xff]
        %v1689 = vld [vmem:[%s599 + $0x48] sm:$0xff]
        %v1690 = vld [vmem:[%s599 + $0x50] sm:$0xff]
        %v1691 = vld [vmem:[%s599 + $0x58] sm:$0xff]
        %v1692 = vld [vmem:[%s599 + $0x60] sm:$0xff]
        %v1693 = vld [vmem:[%s599 + $0x68] sm:$0xff]
        %v1694 = vld [vmem:[%s599 + $0x70] sm:$0xff]
        %v1695 = vld [vmem:[%s599 + $0x78] sm:$0xff]
        %v1696 = vmul.f32 %v1136, %v1648
        %v1697 = vmul.f32 %v1139, %v1649
        %v1698 = vmul.f32 %v1144, %v1650
        %v1699 = vmul.f32 %v1147, %v1651
        %v1700 = vmul.f32 %v1152, %v1652
        %v1701 = vmul.f32 %v1155, %v1653
        %v1702 = vmul.f32 %v1160, %v1654
        %v1703 = vmul.f32 %v1163, %v1655
        %v1704 = vmul.f32 %v1168, %v1656
        %v1705 = vmul.f32 %v1171, %v1657
        %v1706 = vmul.f32 %v1176, %v1658
        %v1707 = vmul.f32 %v1179, %v1659
        %v1708 = vmul.f32 %v1184, %v1660
        %v1709 = vmul.f32 %v1187, %v1661
        %v1710 = vmul.f32 %v1192, %v1662
        %v1711 = vmul.f32 %v1195, %v1663
        %1728 = vrot.lane.b32.xlu0 %v1136, 64
        %v1729 = vpop.permute.xlu0 %1728
        %1730 = vrot.lane.b32.xlu0 %v1139, 64
        %v1731 = vpop.permute.xlu0 %1730
        %1732 = vrot.lane.b32.xlu0 %v1144, 64
        %v1733 = vpop.permute.xlu0 %1732
        %1734 = vrot.lane.b32.xlu0 %v1147, 64
        %v1735 = vpop.permute.xlu0 %1734
        %1736 = vrot.lane.b32.xlu0 %v1152, 64
        %v1737 = vpop.permute.xlu0 %1736
        %1738 = vrot.lane.b32.xlu0 %v1155, 64
        %v1739 = vpop.permute.xlu0 %1738
        %1740 = vrot.lane.b32.xlu0 %v1160, 64
        %v1741 = vpop.permute.xlu0 %1740
        %1742 = vrot.lane.b32.xlu0 %v1163, 64
        %v1743 = vpop.permute.xlu0 %1742
        %1744 = vrot.lane.b32.xlu0 %v1168, 64
        %v1745 = vpop.permute.xlu0 %1744
        %1746 = vrot.lane.b32.xlu0 %v1171, 64
        %v1747 = vpop.permute.xlu0 %1746
        %1748 = vrot.lane.b32.xlu0 %v1176, 64
        %v1749 = vpop.permute.xlu0 %1748
        %1750 = vrot.lane.b32.xlu0 %v1179, 64
        %v1751 = vpop.permute.xlu0 %1750
        %1752 = vrot.lane.b32.xlu0 %v1184, 64
        %v1753 = vpop.permute.xlu0 %1752
        %1754 = vrot.lane.b32.xlu0 %v1187, 64
        %v1755 = vpop.permute.xlu0 %1754
        %1756 = vrot.lane.b32.xlu0 %v1192, 64
        %v1757 = vpop.permute.xlu0 %1756
        %1758 = vrot.lane.b32.xlu0 %v1195, 64
        %v1759 = vpop.permute.xlu0 %1758
        %v1776 = vmul.f32 %v1729, %v1664
        %v1777 = vmul.f32 %v1731, %v1665
        %v1778 = vmul.f32 %v1733, %v1666
        %v1779 = vmul.f32 %v1735, %v1667
        %v1780 = vmul.f32 %v1737, %v1668
        %v1781 = vmul.f32 %v1739, %v1669
        %v1782 = vmul.f32 %v1741, %v1670
        %v1783 = vmul.f32 %v1743, %v1671
        %v1784 = vmul.f32 %v1745, %v1672
        %v1785 = vmul.f32 %v1747, %v1673
        %v1786 = vmul.f32 %v1749, %v1674
        %v1787 = vmul.f32 %v1751, %v1675
        %v1788 = vmul.f32 %v1753, %v1676
        %v1789 = vmul.f32 %v1755, %v1677
        %v1790 = vmul.f32 %v1757, %v1678
        %v1791 = vmul.f32 %v1759, %v1679
        %v1792 = vadd.f32 %v1696, %v1776
        %v1793 = vadd.f32 %v1697, %v1777
        %v1794 = vadd.f32 %v1698, %v1778
        %v1795 = vadd.f32 %v1699, %v1779
        %v1796 = vadd.f32 %v1700, %v1780
        %v1797 = vadd.f32 %v1701, %v1781
        %v1798 = vadd.f32 %v1702, %v1782
        %v1799 = vadd.f32 %v1703, %v1783
        %v1800 = vadd.f32 %v1704, %v1784
        %v1801 = vadd.f32 %v1705, %v1785
        %v1802 = vadd.f32 %v1706, %v1786
        %v1803 = vadd.f32 %v1707, %v1787
        %v1804 = vadd.f32 %v1708, %v1788
        %v1805 = vadd.f32 %v1709, %v1789
        %v1806 = vadd.f32 %v1710, %v1790
        %v1807 = vadd.f32 %v1711, %v1791
        %v1808 = vmul.f32 %v1729, %v1680
        %v1809 = vmul.f32 %v1731, %v1681
        %v1810 = vmul.f32 %v1733, %v1682
        %v1811 = vmul.f32 %v1735, %v1683
        %v1812 = vmul.f32 %v1737, %v1684
        %v1813 = vmul.f32 %v1739, %v1685
        %v1814 = vmul.f32 %v1741, %v1686
        %v1815 = vmul.f32 %v1743, %v1687
        %v1816 = vmul.f32 %v1745, %v1688
        %v1817 = vmul.f32 %v1747, %v1689
        %v1818 = vmul.f32 %v1749, %v1690
        %v1819 = vmul.f32 %v1751, %v1691
        %v1820 = vmul.f32 %v1753, %v1692
        %v1821 = vmul.f32 %v1755, %v1693
        %v1822 = vmul.f32 %v1757, %v1694
        %v1823 = vmul.f32 %v1759, %v1695
        %v1824 = vadd.f32 %v1792, %v1808
        %v1825 = vadd.f32 %v1793, %v1809
        %v1826 = vadd.f32 %v1794, %v1810
        %v1827 = vadd.f32 %v1795, %v1811
        %v1828 = vadd.f32 %v1796, %v1812
        %v1829 = vadd.f32 %v1797, %v1813
        %v1830 = vadd.f32 %v1798, %v1814
        %v1831 = vadd.f32 %v1799, %v1815
        %v1832 = vadd.f32 %v1800, %v1816
        %v1833 = vadd.f32 %v1801, %v1817
        %v1834 = vadd.f32 %v1802, %v1818
        %v1835 = vadd.f32 %v1803, %v1819
        %v1836 = vadd.f32 %v1804, %v1820
        %v1837 = vadd.f32 %v1805, %v1821
        %v1838 = vadd.f32 %v1806, %v1822
        %v1839 = vadd.f32 %v1807, %v1823
        %v1840 = vmul.f32 %v1824, 0.088388346
        %v1841 = vmul.f32 %v1825, 0.088388346
        %v1842 = vmul.f32 %v1826, 0.088388346
        %v1843 = vmul.f32 %v1827, 0.088388346
        %v1844 = vmul.f32 %v1828, 0.088388346
        %v1845 = vmul.f32 %v1829, 0.088388346
        %v1846 = vmul.f32 %v1830, 0.088388346
        %v1847 = vmul.f32 %v1831, 0.088388346
        %v1848 = vmul.f32 %v1832, 0.088388346
        %v1849 = vmul.f32 %v1833, 0.088388346
        %v1850 = vmul.f32 %v1834, 0.088388346
        %v1851 = vmul.f32 %v1835, 0.088388346
        %v1852 = vmul.f32 %v1836, 0.088388346
        %v1853 = vmul.f32 %v1837, 0.088388346
        %v1854 = vmul.f32 %v1838, 0.088388346
        %v1855 = vmul.f32 %v1839, 0.088388346
        %v1856 = vpack.c.bf16 %v1841, %v1840
        %v1857 = vpack.c.bf16 %v1843, %v1842
        %v1858 = vpack.c.bf16 %v1845, %v1844
        %v1859 = vpack.c.bf16 %v1847, %v1846
        %v1860 = vpack.c.bf16 %v1849, %v1848
        %v1861 = vpack.c.bf16 %v1851, %v1850
        %v1862 = vpack.c.bf16 %v1853, %v1852
        %v1863 = vpack.c.bf16 %v1855, %v1854
        %v1872 = vunpack.c.l.b16 %v1856
        %v1873 = vunpack.c.h.b16 %v1856
        %v1874 = vunpack.c.l.b16 %v1857
        %v1875 = vunpack.c.h.b16 %v1857
        %v1876 = vunpack.c.l.b16 %v1858
        %v1877 = vunpack.c.h.b16 %v1858
        %v1878 = vunpack.c.l.b16 %v1859
        %v1879 = vunpack.c.h.b16 %v1859
        %v1880 = vunpack.c.l.b16 %v1860
        %v1881 = vunpack.c.h.b16 %v1860
        %v1882 = vunpack.c.l.b16 %v1861
        %v1883 = vunpack.c.h.b16 %v1861
        %v1884 = vunpack.c.l.b16 %v1862
        %v1885 = vunpack.c.h.b16 %v1862
        %v1886 = vunpack.c.l.b16 %v1863
        %v1887 = vunpack.c.h.b16 %v1863
        %v1888 = vpack.c.b16 %v1872, %v1872
        %v1889 = vpack.c.b16 %v1873, %v1873
        %v1890 = vpack.c.b16 %v1874, %v1874
        %v1891 = vpack.c.b16 %v1875, %v1875
        %v1892 = vpack.c.b16 %v1876, %v1876
        %v1893 = vpack.c.b16 %v1877, %v1877
        %v1894 = vpack.c.b16 %v1878, %v1878
        %v1895 = vpack.c.b16 %v1879, %v1879
        %v1896 = vpack.c.b16 %v1880, %v1880
        %v1897 = vpack.c.b16 %v1881, %v1881
        %v1898 = vpack.c.b16 %v1882, %v1882
        %v1899 = vpack.c.b16 %v1883, %v1883
        %v1900 = vpack.c.b16 %v1884, %v1884
        %v1901 = vpack.c.b16 %v1885, %v1885
        %v1902 = vpack.c.b16 %v1886, %v1886
        %v1903 = vpack.c.b16 %v1887, %v1887
        %1920 = vst [vmem:[%s661] sm:$0xf] %v1888
        %1921 = vst [vmem:[%s661 + $0x4] sm:$0xf] %v1889
        %1922 = vst [vmem:[%s661 + $0x8] sm:$0xf] %v1890
        %1923 = vst [vmem:[%s661 + $0xc] sm:$0xf] %v1891
        %1924 = vst [vmem:[%s661 + $0x10] sm:$0xf] %v1892
        %1925 = vst [vmem:[%s661 + $0x14] sm:$0xf] %v1893
        %1926 = vst [vmem:[%s661 + $0x18] sm:$0xf] %v1894
        %1927 = vst [vmem:[%s661 + $0x1c] sm:$0xf] %v1895
        %1928 = vst [vmem:[%s661 + $0x20] sm:$0xf] %v1896
        %1929 = vst [vmem:[%s661 + $0x24] sm:$0xf] %v1897
        %1930 = vst [vmem:[%s661 + $0x28] sm:$0xf] %v1898
        %1931 = vst [vmem:[%s661 + $0x2c] sm:$0xf] %v1899
        %1932 = vst [vmem:[%s661 + $0x30] sm:$0xf] %v1900
        %1933 = vst [vmem:[%s661 + $0x34] sm:$0xf] %v1901
        %1934 = vst [vmem:[%s661 + $0x38] sm:$0xf] %v1902
        %1935 = vst [vmem:[%s661 + $0x3c] sm:$0xf] %v1903
        %v1936 = vmul.f32 %v1361, %v1648
        %v1937 = vmul.f32 %v1364, %v1649
        %v1938 = vmul.f32 %v1369, %v1650
        %v1939 = vmul.f32 %v1372, %v1651
        %v1940 = vmul.f32 %v1377, %v1652
        %v1941 = vmul.f32 %v1380, %v1653
        %v1942 = vmul.f32 %v1385, %v1654
        %v1943 = vmul.f32 %v1388, %v1655
        %v1944 = vmul.f32 %v1393, %v1656
        %v1945 = vmul.f32 %v1396, %v1657
        %v1946 = vmul.f32 %v1401, %v1658
        %v1947 = vmul.f32 %v1404, %v1659
        %v1948 = vmul.f32 %v1409, %v1660
        %v1949 = vmul.f32 %v1412, %v1661
        %v1950 = vmul.f32 %v1417, %v1662
        %v1951 = vmul.f32 %v1420, %v1663
        %1968 = vrot.lane.b32.xlu0 %v1361, 64
        %v1969 = vpop.permute.xlu0 %1968
        %1970 = vrot.lane.b32.xlu0 %v1364, 64
        %v1971 = vpop.permute.xlu0 %1970
        %1972 = vrot.lane.b32.xlu0 %v1369, 64
        %v1973 = vpop.permute.xlu0 %1972
        %1974 = vrot.lane.b32.xlu0 %v1372, 64
        %v1975 = vpop.permute.xlu0 %1974
        %1976 = vrot.lane.b32.xlu0 %v1377, 64
        %v1977 = vpop.permute.xlu0 %1976
        %1978 = vrot.lane.b32.xlu0 %v1380, 64
        %v1979 = vpop.permute.xlu0 %1978
        %1980 = vrot.lane.b32.xlu0 %v1385, 64
        %v1981 = vpop.permute.xlu0 %1980
        %1982 = vrot.lane.b32.xlu0 %v1388, 64
        %v1983 = vpop.permute.xlu0 %1982
        %1984 = vrot.lane.b32.xlu0 %v1393, 64
        %v1985 = vpop.permute.xlu0 %1984
        %1986 = vrot.lane.b32.xlu0 %v1396, 64
        %v1987 = vpop.permute.xlu0 %1986
        %1988 = vrot.lane.b32.xlu0 %v1401, 64
        %v1989 = vpop.permute.xlu0 %1988
        %1990 = vrot.lane.b32.xlu0 %v1404, 64
        %v1991 = vpop.permute.xlu0 %1990
        %1992 = vrot.lane.b32.xlu0 %v1409, 64
        %v1993 = vpop.permute.xlu0 %1992
        %1994 = vrot.lane.b32.xlu0 %v1412, 64
        %v1995 = vpop.permute.xlu0 %1994
        %1996 = vrot.lane.b32.xlu0 %v1417, 64
        %v1997 = vpop.permute.xlu0 %1996
        %1998 = vrot.lane.b32.xlu0 %v1420, 64
        %v1999 = vpop.permute.xlu0 %1998
        %v2016 = vmul.f32 %v1969, %v1664
        %v2017 = vmul.f32 %v1971, %v1665
        %v2018 = vmul.f32 %v1973, %v1666
        %v2019 = vmul.f32 %v1975, %v1667
        %v2020 = vmul.f32 %v1977, %v1668
        %v2021 = vmul.f32 %v1979, %v1669
        %v2022 = vmul.f32 %v1981, %v1670
        %v2023 = vmul.f32 %v1983, %v1671
        %v2024 = vmul.f32 %v1985, %v1672
        %v2025 = vmul.f32 %v1987, %v1673
        %v2026 = vmul.f32 %v1989, %v1674
        %v2027 = vmul.f32 %v1991, %v1675
        %v2028 = vmul.f32 %v1993, %v1676
        %v2029 = vmul.f32 %v1995, %v1677
        %v2030 = vmul.f32 %v1997, %v1678
        %v2031 = vmul.f32 %v1999, %v1679
        %v2032 = vadd.f32 %v1936, %v2016
        %v2033 = vadd.f32 %v1937, %v2017
        %v2034 = vadd.f32 %v1938, %v2018
        %v2035 = vadd.f32 %v1939, %v2019
        %v2036 = vadd.f32 %v1940, %v2020
        %v2037 = vadd.f32 %v1941, %v2021
        %v2038 = vadd.f32 %v1942, %v2022
        %v2039 = vadd.f32 %v1943, %v2023
        %v2040 = vadd.f32 %v1944, %v2024
        %v2041 = vadd.f32 %v1945, %v2025
        %v2042 = vadd.f32 %v1946, %v2026
        %v2043 = vadd.f32 %v1947, %v2027
        %v2044 = vadd.f32 %v1948, %v2028
        %v2045 = vadd.f32 %v1949, %v2029
        %v2046 = vadd.f32 %v1950, %v2030
        %v2047 = vadd.f32 %v1951, %v2031
        %v2048 = vmul.f32 %v1969, %v1680
        %v2049 = vmul.f32 %v1971, %v1681
        %v2050 = vmul.f32 %v1973, %v1682
        %v2051 = vmul.f32 %v1975, %v1683
        %v2052 = vmul.f32 %v1977, %v1684
        %v2053 = vmul.f32 %v1979, %v1685
        %v2054 = vmul.f32 %v1981, %v1686
        %v2055 = vmul.f32 %v1983, %v1687
        %v2056 = vmul.f32 %v1985, %v1688
        %v2057 = vmul.f32 %v1987, %v1689
        %v2058 = vmul.f32 %v1989, %v1690
        %v2059 = vmul.f32 %v1991, %v1691
        %v2060 = vmul.f32 %v1993, %v1692
        %v2061 = vmul.f32 %v1995, %v1693
        %v2062 = vmul.f32 %v1997, %v1694
        %v2063 = vmul.f32 %v1999, %v1695
        %v2064 = vadd.f32 %v2032, %v2048
        %v2065 = vadd.f32 %v2033, %v2049
        %v2066 = vadd.f32 %v2034, %v2050
        %v2067 = vadd.f32 %v2035, %v2051
        %v2068 = vadd.f32 %v2036, %v2052
        %v2069 = vadd.f32 %v2037, %v2053
        %v2070 = vadd.f32 %v2038, %v2054
        %v2071 = vadd.f32 %v2039, %v2055
        %v2072 = vadd.f32 %v2040, %v2056
        %v2073 = vadd.f32 %v2041, %v2057
        %v2074 = vadd.f32 %v2042, %v2058
        %v2075 = vadd.f32 %v2043, %v2059
        %v2076 = vadd.f32 %v2044, %v2060
        %v2077 = vadd.f32 %v2045, %v2061
        %v2078 = vadd.f32 %v2046, %v2062
        %v2079 = vadd.f32 %v2047, %v2063
        %v2080 = vpack.c.bf16 %v2065, %v2064
        %v2081 = vpack.c.bf16 %v2067, %v2066
        %v2082 = vpack.c.bf16 %v2069, %v2068
        %v2083 = vpack.c.bf16 %v2071, %v2070
        %v2084 = vpack.c.bf16 %v2073, %v2072
        %v2085 = vpack.c.bf16 %v2075, %v2074
        %v2086 = vpack.c.bf16 %v2077, %v2076
        %v2087 = vpack.c.bf16 %v2079, %v2078
        %v2096 = vunpack.c.l.b16 %v2080
        %v2097 = vunpack.c.h.b16 %v2080
        %v2098 = vunpack.c.l.b16 %v2081
        %v2099 = vunpack.c.h.b16 %v2081
        %v2100 = vunpack.c.l.b16 %v2082
        %v2101 = vunpack.c.h.b16 %v2082
        %v2102 = vunpack.c.l.b16 %v2083
        %v2103 = vunpack.c.h.b16 %v2083
        %v2104 = vunpack.c.l.b16 %v2084
        %v2105 = vunpack.c.h.b16 %v2084
        %v2106 = vunpack.c.l.b16 %v2085
        %v2107 = vunpack.c.h.b16 %v2085
        %v2108 = vunpack.c.l.b16 %v2086
        %v2109 = vunpack.c.h.b16 %v2086
        %v2110 = vunpack.c.l.b16 %v2087
        %v2111 = vunpack.c.h.b16 %v2087
        %v2112 = vpack.c.b16 %v2096, %v2096
        %v2113 = vpack.c.b16 %v2097, %v2097
        %v2114 = vpack.c.b16 %v2098, %v2098
        %v2115 = vpack.c.b16 %v2099, %v2099
        %v2116 = vpack.c.b16 %v2100, %v2100
        %v2117 = vpack.c.b16 %v2101, %v2101
        %v2118 = vpack.c.b16 %v2102, %v2102
        %v2119 = vpack.c.b16 %v2103, %v2103
        %v2120 = vpack.c.b16 %v2104, %v2104
        %v2121 = vpack.c.b16 %v2105, %v2105
        %v2122 = vpack.c.b16 %v2106, %v2106
        %v2123 = vpack.c.b16 %v2107, %v2107
        %v2124 = vpack.c.b16 %v2108, %v2108
        %v2125 = vpack.c.b16 %v2109, %v2109
        %v2126 = vpack.c.b16 %v2110, %v2110
        %v2127 = vpack.c.b16 %v2111, %v2111
        %2144 = vst [vmem:[%s668] sm:$0xf] %v2112
        %2145 = vst [vmem:[%s668 + $0x4] sm:$0xf] %v2113
        %2146 = vst [vmem:[%s668 + $0x8] sm:$0xf] %v2114
        %2147 = vst [vmem:[%s668 + $0xc] sm:$0xf] %v2115
        %2148 = vst [vmem:[%s668 + $0x10] sm:$0xf] %v2116
        %2149 = vst [vmem:[%s668 + $0x14] sm:$0xf] %v2117
        %2150 = vst [vmem:[%s668 + $0x18] sm:$0xf] %v2118
        %2151 = vst [vmem:[%s668 + $0x1c] sm:$0xf] %v2119
        %2152 = vst [vmem:[%s668 + $0x20] sm:$0xf] %v2120
        %2153 = vst [vmem:[%s668 + $0x24] sm:$0xf] %v2121
        %2154 = vst [vmem:[%s668 + $0x28] sm:$0xf] %v2122
        %2155 = vst [vmem:[%s668 + $0x2c] sm:$0xf] %v2123
        %2156 = vst [vmem:[%s668 + $0x30] sm:$0xf] %v2124
        %2157 = vst [vmem:[%s668 + $0x34] sm:$0xf] %v2125
        %2158 = vst [vmem:[%s668 + $0x38] sm:$0xf] %v2126
        %2159 = vst [vmem:[%s668 + $0x3c] sm:$0xf] %v2127
        %v2160 = vpack.c.bf16 %v1589, %v1586
        %v2161 = vpack.c.bf16 %v1597, %v1594
        %v2162 = vpack.c.bf16 %v1605, %v1602
        %v2163 = vpack.c.bf16 %v1613, %v1610
        %v2164 = vpack.c.bf16 %v1621, %v1618
        %v2165 = vpack.c.bf16 %v1629, %v1626
        %v2166 = vpack.c.bf16 %v1637, %v1634
        %v2167 = vpack.c.bf16 %v1645, %v1642
        %v2176 = vunpack.c.l.b16 %v2160
        %v2177 = vunpack.c.h.b16 %v2160
        %v2178 = vunpack.c.l.b16 %v2161
        %v2179 = vunpack.c.h.b16 %v2161
        %v2180 = vunpack.c.l.b16 %v2162
        %v2181 = vunpack.c.h.b16 %v2162
        %v2182 = vunpack.c.l.b16 %v2163
        %v2183 = vunpack.c.h.b16 %v2163
        %v2184 = vunpack.c.l.b16 %v2164
        %v2185 = vunpack.c.h.b16 %v2164
        %v2186 = vunpack.c.l.b16 %v2165
        %v2187 = vunpack.c.h.b16 %v2165
        %v2188 = vunpack.c.l.b16 %v2166
        %v2189 = vunpack.c.h.b16 %v2166
        %v2190 = vunpack.c.l.b16 %v2167
        %v2191 = vunpack.c.h.b16 %v2167
        %v2192 = vpack.c.b16 %v2176, %v2176
        %v2193 = vpack.c.b16 %v2177, %v2177
        %v2194 = vpack.c.b16 %v2178, %v2178
        %v2195 = vpack.c.b16 %v2179, %v2179
        %v2196 = vpack.c.b16 %v2180, %v2180
        %v2197 = vpack.c.b16 %v2181, %v2181
        %v2198 = vpack.c.b16 %v2182, %v2182
        %v2199 = vpack.c.b16 %v2183, %v2183
        %v2200 = vpack.c.b16 %v2184, %v2184
        %v2201 = vpack.c.b16 %v2185, %v2185
        %v2202 = vpack.c.b16 %v2186, %v2186
        %v2203 = vpack.c.b16 %v2187, %v2187
        %v2204 = vpack.c.b16 %v2188, %v2188
        %v2205 = vpack.c.b16 %v2189, %v2189
        %v2206 = vpack.c.b16 %v2190, %v2190
        %v2207 = vpack.c.b16 %v2191, %v2191
        %2224 = vst [vmem:[%s675] sm:$0xf] %v2192
        %2225 = vst [vmem:[%s675 + $0x4] sm:$0xf] %v2193
        %2226 = vst [vmem:[%s675 + $0x8] sm:$0xf] %v2194
        %2227 = vst [vmem:[%s675 + $0xc] sm:$0xf] %v2195
        %2228 = vst [vmem:[%s675 + $0x10] sm:$0xf] %v2196
        %2229 = vst [vmem:[%s675 + $0x14] sm:$0xf] %v2197
        %2230 = vst [vmem:[%s675 + $0x18] sm:$0xf] %v2198
        %2231 = vst [vmem:[%s675 + $0x1c] sm:$0xf] %v2199
        %2232 = vst [vmem:[%s675 + $0x20] sm:$0xf] %v2200
        %2233 = vst [vmem:[%s675 + $0x24] sm:$0xf] %v2201
        %2234 = vst [vmem:[%s675 + $0x28] sm:$0xf] %v2202
        %2235 = vst [vmem:[%s675 + $0x2c] sm:$0xf] %v2203
        %2236 = vst [vmem:[%s675 + $0x30] sm:$0xf] %v2204
        %2237 = vst [vmem:[%s675 + $0x34] sm:$0xf] %v2205
        %2238 = vst [vmem:[%s675 + $0x38] sm:$0xf] %v2206
        %2239 = vst [vmem:[%s675 + $0x3c] sm:$0xf] %v2207
        %s2240 = sand.u32 %s274, 1
        %s2241 = scalar_lea.sflag [#allocation5], %s2240
        %s2242 = sand.u32 %s274, 1
        %s2243 = smul.addr %s2242, 64
        %s2244 = scalar_lea.vmem [#allocation14], %s2243
        %s2245 = sand.u32 %s32, 1
        %s2246 = scalar_lea.sflag [#allocation16], %s2245
        %s2247 = sand.u32 %s304, 1
        %s2248 = smul.addr %s2247, 64
        %s2249 = scalar_lea.vmem [#allocation15], %s2248
        %s2250 = sand.u32 %s32, 1
        %s2251 = scalar_lea.sflag [#allocation16], %s2250
        %s2252 = sand.u32 %s334, 1
        %s2253 = smul.addr %s2252, 64
        %s2254 = scalar_lea.vmem [#allocation17], %s2253
        // Predicated region
        $region89: #{attention_block.2} parent=51 // pred_check
          %p2255 = pneg %p284
        $region90: #{attention_block.2} parent=51 // pred_check_branch
          %2257 = sbr.rel (%p2255) target = $region92
        $region91: #{attention_block.2} parent=51 // pred_region
          %s2258 = smul.u32 16, %s38
          %s2260 = ssub.s32 1024, 1024
          %2261 = vsyncadd %s2241, %s2260
          %s2262 = smul.addr %s2258, 2
          %s2263 = sadd.s32 %s39, %s2262
          %s2264 = smul.addr %s37, 64
          %s2265 = sadd.s32 %s2263, %s2264
          %s2266 = smul.addr %s2265, 64
          %s2267 = scalar_lea.hbm %s8, %s2266
          %s2268 = sshll.u32 %s2244, 4
          %s2269 = int_to_ptr.vmem [resolvable:$true] %s2268
          %2274 = dma.vmem_to_hbm [thread:$0]  %s2269, 1024, %s2267, %s2241, 64, 128, 4
        $region92: #{attention_block.2} parent=51 // pred_fallthru
          _
        // Predicated region
        $region93: #{attention_block.2} parent=51 // pred_check
          %p2275 = pneg %p314
        $region94: #{attention_block.2} parent=51 // pred_check_branch
          %2277 = sbr.rel (%p2275) target = $region96
        $region95: #{attention_block.2} parent=51 // pred_region
          %s2278 = smul.u32 16, %s38
          %s2280 = ssub.s32 1024, 1024
          %2281 = vsyncadd %s2246, %s2280
          %s2282 = smul.addr %s2278, 2
          %s2283 = sadd.s32 %s39, %s2282
          %s2284 = smul.addr %s37, 64
          %s2285 = sadd.s32 %s2283, %s2284
          %s2286 = smul.addr %s2285, 64
          %s2287 = scalar_lea.hbm %s9, %s2286
          %s2288 = sshll.u32 %s2249, 4
          %s2289 = int_to_ptr.vmem [resolvable:$true] %s2288
          %2294 = dma.vmem_to_hbm [thread:$0]  %s2289, 1024, %s2287, %s2246, 64, 128, 4
        $region96: #{attention_block.2} parent=51 // pred_fallthru
          _
        // Predicated region
        $region97: #{attention_block.2} parent=51 // pred_check
          %p2295 = pneg %p344
        $region98: #{attention_block.2} parent=51 // pred_check_branch
          %2297 = sbr.rel (%p2295) target = $region100
        $region99: #{attention_block.2} parent=51 // pred_region
          %s2298 = smul.u32 16, %s38
          %s2300 = ssub.s32 1024, 1024
          %2301 = vsyncadd %s2251, %s2300
          %s2302 = smul.addr %s2298, 2
          %s2303 = sadd.s32 %s39, %s2302
          %s2304 = smul.addr %s37, 64
          %s2305 = sadd.s32 %s2303, %s2304
          %s2306 = smul.addr %s2305, 64
          %s2307 = scalar_lea.hbm %s10, %s2306
          %s2308 = sshll.u32 %s2254, 4
          %s2309 = int_to_ptr.vmem [resolvable:$true] %s2308
          %2314 = dma.vmem_to_hbm [thread:$0]  %s2309, 1024, %s2307, %s2251, 64, 128, 4
        $region100: #{attention_block.2} parent=51 // pred_fallthru
          _
      $region52: #{attention_block.2} parent=5 // pred_fallthru
        _
      %p2315 = scmp.le.s32.totalorder 2, %s27
      // Predicated region
      $region101: #{attention_block.2} parent=5 // pred_check
        %p2316 = pneg %p2315
      $region102: #{attention_block.2} parent=5 // pred_check_branch
        %2318 = sbr.rel (%p2316) target = $region104
      $region103: #{attention_block.2} parent=5 // pred_region
        %s2319 = ssub.s32 %s27, 2
        // Predicated region
        $region105: #{attention_block.2} parent=103 // pred_check
          %p2320 = pneg %p290
        $region106: #{attention_block.2} parent=103 // pred_check_branch
          %2322 = sbr.rel (%p2320) target = $region108
        $region107: #{attention_block.2} parent=103 // pred_region
          %s2323 = sand.u32 %s275, 1
          %s2324 = scalar_lea.sflag [#allocation5], %s2323
          %s2325 = sand.u32 %s275, 1
          %s2326 = smul.addr %s2325, 64
          %s2327 = scalar_lea.vmem [#allocation14], %s2326
          %2328 = dma.done %s2324, 1024
        $region108: #{attention_block.2} parent=103 // pred_fallthru
          _
        // Predicated region
        $region109: #{attention_block.2} parent=103 // pred_check
          %p2329 = pneg %p320
        $region110: #{attention_block.2} parent=103 // pred_check_branch
          %2331 = sbr.rel (%p2329) target = $region112
        $region111: #{attention_block.2} parent=103 // pred_region
          %s2332 = sand.u32 %s33, 1
          %s2333 = scalar_lea.sflag [#allocation16], %s2332
          %s2334 = sand.u32 %s305, 1
          %s2335 = smul.addr %s2334, 64
          %s2336 = scalar_lea.vmem [#allocation15], %s2335
          %2337 = dma.done %s2333, 1024
        $region112: #{attention_block.2} parent=103 // pred_fallthru
          _
        // Predicated region
        $region113: #{attention_block.2} parent=103 // pred_check
          %p2338 = pneg %p350
        $region114: #{attention_block.2} parent=103 // pred_check_branch
          %2340 = sbr.rel (%p2338) target = $region116
        $region115: #{attention_block.2} parent=103 // pred_region
          %s2341 = sand.u32 %s33, 1
          %s2342 = scalar_lea.sflag [#allocation16], %s2341
          %s2343 = sand.u32 %s335, 1
          %s2344 = smul.addr %s2343, 64
          %s2345 = scalar_lea.vmem [#allocation17], %s2344
          %2346 = dma.done %s2342, 1024
        $region116: #{attention_block.2} parent=103 // pred_fallthru
          _
      $region104: #{attention_block.2} parent=5 // pred_fallthru
        _
    $region6: #{attention_block.2} parent=1 // loop_footer
      %s31 = sadd.s32 1, %s27
    $region7: #{attention_block.2} parent=1 // loop_footer_branch
      %26 = sbr.rel target = $region3
    $region8: #{attention_block.2} parent=1 // loop_exit
      _
    %2347 = vsyncpa [#allocation4], 1
    %s2348 = scalar_lea.sflag [#allocation4], 1
    %2349 = vsyncpa %s2348, 1
    %2350 = vsyncpa [#allocation7], 1
    %2351 = vsyncpa [#allocation5], 1
    %s2352 = scalar_lea.sflag [#allocation5], 1
    %2353 = vsyncpa %s2352, 1
    %2354 = vsyncpa [#allocation16], 1
    %s2355 = scalar_lea.sflag [#allocation16], 1
    %2356 = vsyncpa %s2355, 1

// kernel: attention_block.3
$region0: #{attention_block.3}
  #allocation0 [shape = 'u32[]', space=smem, size = 0x4, offset = 0x4, fixed_abs, tag = 'smem constant byte address 0x4 - core index']
  #allocation1 [shape = 'u32[144,128]{1,0:T(1,128)}', space=vmem, size = 0x12000, scoped, tag = 'internal scratch']
  #allocation2 [shape = 'f32[128,256]{1,0:T(8,128)}', space=vmem, size = 0x20000, scoped, tag = 'scratch operand']
  #allocation3 [shape = 'f32[2,128,1]{2,1,0:T(8,128)}', space=vmem, size = 0x20000, scoped, tag = 'scratch operand']
  #allocation4 [shape = 'f32[2,128,1]{2,1,0:T(8,128)}', space=vmem, size = 0x20000, scoped, tag = 'scratch operand']
  %s0 = inlined_call_operand.hbm [shape: f32[2,256,256], index: 0, kind: input, shape index: {}]
  %s1 = inlined_call_operand.hbm [shape: bf16[2,256,256], index: 1, kind: input, shape index: {}]
  %s2 = inlined_call_operand.hbm [shape: bf16[2,256,256], index: 2, kind: input, shape index: {}]
  %s3 = inlined_call_operand.hbm [shape: bf16[2,256,256], index: 3, kind: input, shape index: {}]
  %s4 = inlined_call_operand.hbm [shape: bf16[256,256], index: 4, kind: input, shape index: {}]
  %s5 = inlined_call_operand.hbm [shape: f32[2,256,256], index: 5, kind: output, shape index: {}]
  %s6 = sld [smem:[#allocation0]]
  $region85: #{attention_block.3} parent=0
    _
  %s8 = ssub.s32 1, %s6
  %s9 = scalar_select 0, %s8, %s6
  $region1: #{attention_block.3} parent=0
    #allocation5 [shape = 'u8[262144]{0}', space=vmem, size = 0x40000, scoped, tag = 'input window, operand 0']
    #allocation6 [shape = 's32[2]{0}', space=sflag, size = 0x8, scoped, tag = 'scoped memory for attention_block.3']
    #allocation7 [shape = 's32[2]{0}', space=sflag, size = 0x8, scoped, tag = 'scoped memory for attention_block.3']
    #allocation8 [shape = 'u8[131072]{0}', space=vmem, size = 0x20000, scoped, tag = 'input window, operand 1']
    #allocation9 [shape = 's32[2]{0}', space=sflag, size = 0x8, scoped, tag = 'scoped memory for attention_block.3']
    #allocation10 [shape = 'u8[131072]{0}', space=vmem, size = 0x20000, scoped, tag = 'input window, operand 2']
    #allocation11 [shape = 'u8[131072]{0}', space=vmem, size = 0x20000, scoped, tag = 'input window, operand 3']
    #allocation12 [shape = 's32[2]{0}', space=sflag, size = 0x8, scoped, tag = 'scoped memory for attention_block.3']
    #allocation13 [shape = 'u8[131072]{0}', space=vmem, size = 0x20000, scoped, tag = 'input window, operand 4, single buffered']
    #allocation14 [shape = 'u8[262144]{0}', space=vmem, size = 0x40000, scoped, tag = 'output window, operand 0']
    %10 = vsyncpa [#allocation6], 0
    %s11 = scalar_lea.sflag [#allocation6], 1
    %12 = vsyncpa %s11, 0
    %13 = vsyncpa [#allocation9], 0
    %s14 = scalar_lea.sflag [#allocation9], 1
    %15 = vsyncpa %s14, 0
    %16 = vsyncpa [#allocation12], 0
    %s17 = scalar_lea.sflag [#allocation12], 1
    %18 = vsyncpa %s17, 0
    %19 = vsyncpa [#allocation7], 0
    %s20 = scalar_lea.sflag [#allocation7], 1
    %21 = vsyncpa %s20, 0
    loop: start=0, step=1, limit=10
    $region2: #{attention_block.3} parent=1 // loop_pre_header
      _
    $region3: #{attention_block.3} parent=1 // loop_header
      %s23 = sphi 0, %s27
      %p24 = scmp.ge.s32.totalorder %s23, 10
      %s30 = sphi 0, %s49
      %s31 = sphi 0, %s45
      %s32 = sphi 0, %s41
      %s33 = sphi 0, %s30
      %s34 = sphi 0, %s31
      %s35 = sphi 0, %s32
      %s36 = sphi 0, %s33
      %s37 = sphi 0, %s34
      %s38 = sphi 0, %s35
      %s54 = sphi 0, %s56
      %s57 = sphi 0, %s54
      %s58 = sphi 0, %s57
      %s74 = sphi 0, %s58
      %s82 = sphi 0, %s84
      %s85 = sphi 0, %s82
      %s86 = sphi 0, %s85
      %s102 = sphi 0, %s86
      %s110 = sphi 0, %s112
      %s113 = sphi 0, %s110
      %s114 = sphi 0, %s113
      %s130 = sphi 0, %s114
      %s138 = sphi 0, %s140
      %s141 = sphi 0, %s138
      %s142 = sphi 0, %s141
      %s158 = sphi 0, %s142
      %s162 = sphi 0, %s162
      %s164 = sphi 0, %s162
      %s165 = sphi 0, %s164
      %s179 = sphi 0, %s165
      %s187 = sphi 0, %s189
      %s190 = sphi 0, %s187
      %s191 = sphi 0, %s190
      %s207 = sphi 0, %s191
    $region4: #{attention_block.3} parent=1 // loop_header_branch
      %26 = sbr.rel (%p24) target = $region8
    $region5: #{attention_block.3} parent=1 // loop_body
      %s28 = ssub.s32 %s23, 1
      %s29 = ssub.s32 %s23, 2
      %s39 = sadd.s32 1, %s32
      %p40 = scmp.ge.s32.totalorder %s39, 2
      %s41 = scalar_select %p40, 0, %s39
      %s42 = sadd.s32 1, %s31
      %s43 = scalar_select %p40, %s42, %s31
      %p44 = scmp.ge.s32.totalorder %s43, 2
      %s45 = scalar_select %p44, 0, %s43
      %s46 = sadd.s32 1, %s30
      %s47 = scalar_select %p44, %s46, %s30
      %p48 = scmp.ge.s32.totalorder %s47, 2
      %s49 = scalar_select %p48, 0, %s47
      %s50 = ssub.s32 %s30, %s49
      %s51 = ssub.s32 %s31, %s45
      %s52 = sor.u32 %s50, %s51
      %p53 = scmp.eq.s32.totalorder %s52, 0
      %s55 = sadd.s32 %s54, 1
      %s56 = scalar_select %p53, %s54, %s55
      %p59 = pneg %p53
      %p60 = scmp.eq.s32.totalorder %s23, 7
      %p61 = por %p59, %p60
      %p62 = scmp.ne.s32.totalorder %s54, %s57
      %p63 = scmp.eq.s32.totalorder %s23, 0
      %p64 = por %p62, %p63
      %p65 = scmp.ne.s32.totalorder %s54, %s57
      %p66 = scmp.eq.s32.totalorder %s28, 7
      %p67 = por %p65, %p66
      %p68 = scmp.ne.s32.totalorder %s57, %s58
      %p69 = scmp.eq.s32.totalorder %s28, 0
      %p70 = por %p68, %p69
      %p71 = scmp.ne.s32.totalorder %s57, %s58
      %p72 = scmp.eq.s32.totalorder %s29, 7
      %p73 = por %p71, %p72
      %p75 = scmp.ne.s32.totalorder %s58, %s74
      %p76 = scmp.eq.s32.totalorder %s29, 0
      %p77 = por %p75, %p76
      %s78 = ssub.s32 %s30, %s49
      %s79 = ssub.s32 %s31, %s45
      %s80 = sor.u32 %s78, %s79
      %p81 = scmp.eq.s32.totalorder %s80, 0
      %s83 = sadd.s32 %s82, 1
      %s84 = scalar_select %p81, %s82, %s83
      %p87 = pneg %p81
      %p88 = scmp.eq.s32.totalorder %s23, 7
      %p89 = por %p87, %p88
      %p90 = scmp.ne.s32.totalorder %s82, %s85
      %p91 = scmp.eq.s32.totalorder %s23, 0
      %p92 = por %p90, %p91
      %p93 = scmp.ne.s32.totalorder %s82, %s85
      %p94 = scmp.eq.s32.totalorder %s28, 7
      %p95 = por %p93, %p94
      %p96 = scmp.ne.s32.totalorder %s85, %s86
      %p97 = scmp.eq.s32.totalorder %s28, 0
      %p98 = por %p96, %p97
      %p99 = scmp.ne.s32.totalorder %s85, %s86
      %p100 = scmp.eq.s32.totalorder %s29, 7
      %p101 = por %p99, %p100
      %p103 = scmp.ne.s32.totalorder %s86, %s102
      %p104 = scmp.eq.s32.totalorder %s29, 0
      %p105 = por %p103, %p104
      %s106 = ssub.s32 %s30, %s49
      %s107 = ssub.s32 %s32, %s41
      %s108 = sor.u32 %s106, %s107
      %p109 = scmp.eq.s32.totalorder %s108, 0
      %s111 = sadd.s32 %s110, 1
      %s112 = scalar_select %p109, %s110, %s111
      %p115 = pneg %p109
      %p116 = scmp.eq.s32.totalorder %s23, 7
      %p117 = por %p115, %p116
      %p118 = scmp.ne.s32.totalorder %s110, %s113
      %p119 = scmp.eq.s32.totalorder %s23, 0
      %p120 = por %p118, %p119
      %p121 = scmp.ne.s32.totalorder %s110, %s113
      %p122 = scmp.eq.s32.totalorder %s28, 7
      %p123 = por %p121, %p122
      %p124 = scmp.ne.s32.totalorder %s113, %s114
      %p125 = scmp.eq.s32.totalorder %s28, 0
      %p126 = por %p124, %p125
      %p127 = scmp.ne.s32.totalorder %s113, %s114
      %p128 = scmp.eq.s32.totalorder %s29, 7
      %p129 = por %p127, %p128
      %p131 = scmp.ne.s32.totalorder %s114, %s130
      %p132 = scmp.eq.s32.totalorder %s29, 0
      %p133 = por %p131, %p132
      %s134 = ssub.s32 %s30, %s49
      %s135 = ssub.s32 %s32, %s41
      %s136 = sor.u32 %s134, %s135
      %p137 = scmp.eq.s32.totalorder %s136, 0
      %s139 = sadd.s32 %s138, 1
      %s140 = scalar_select %p137, %s138, %s139
      %p143 = pneg %p137
      %p144 = scmp.eq.s32.totalorder %s23, 7
      %p145 = por %p143, %p144
      %p146 = scmp.ne.s32.totalorder %s138, %s141
      %p147 = scmp.eq.s32.totalorder %s23, 0
      %p148 = por %p146, %p147
      %p149 = scmp.ne.s32.totalorder %s138, %s141
      %p150 = scmp.eq.s32.totalorder %s28, 7
      %p151 = por %p149, %p150
      %p152 = scmp.ne.s32.totalorder %s141, %s142
      %p153 = scmp.eq.s32.totalorder %s28, 0
      %p154 = por %p152, %p153
      %p155 = scmp.ne.s32.totalorder %s141, %s142
      %p156 = scmp.eq.s32.totalorder %s29, 7
      %p157 = por %p155, %p156
      %p159 = scmp.ne.s32.totalorder %s142, %s158
      %p160 = scmp.eq.s32.totalorder %s29, 0
      %p161 = por %p159, %p160
      %s163 = sadd.s32 %s162, 1
      %p166 = scmp.eq.s32.totalorder %s23, 7
      %p167 = scmp.ne.s32.totalorder %s162, %s164
      %p168 = scmp.eq.s32.totalorder %s23, 0
      %p169 = por %p167, %p168
      %p170 = scmp.ne.s32.totalorder %s162, %s164
      %p171 = scmp.eq.s32.totalorder %s28, 7
      %p172 = por %p170, %p171
      %p173 = scmp.ne.s32.totalorder %s164, %s165
      %p174 = scmp.eq.s32.totalorder %s28, 0
      %p175 = por %p173, %p174
      %p176 = scmp.ne.s32.totalorder %s164, %s165
      %p177 = scmp.eq.s32.totalorder %s29, 7
      %p178 = por %p176, %p177
      %p180 = scmp.ne.s32.totalorder %s165, %s179
      %p181 = scmp.eq.s32.totalorder %s29, 0
      %p182 = por %p180, %p181
      %s183 = ssub.s32 %s30, %s49
      %s184 = ssub.s32 %s31, %s45
      %s185 = sor.u32 %s183, %s184
      %p186 = scmp.eq.s32.totalorder %s185, 0
      %s188 = sadd.s32 %s187, 1
      %s189 = scalar_select %p186, %s187, %s188
      %p192 = pneg %p186
      %p193 = scmp.eq.s32.totalorder %s23, 7
      %p194 = por %p192, %p193
      %p195 = scmp.ne.s32.totalorder %s187, %s190
      %p196 = scmp.eq.s32.totalorder %s23, 0
      %p197 = por %p195, %p196
      %p198 = scmp.ne.s32.totalorder %s187, %s190
      %p199 = scmp.eq.s32.totalorder %s28, 7
      %p200 = por %p198, %p199
      %p201 = scmp.ne.s32.totalorder %s190, %s191
      %p202 = scmp.eq.s32.totalorder %s28, 0
      %p203 = por %p201, %p202
      %p204 = scmp.ne.s32.totalorder %s190, %s191
      %p205 = scmp.eq.s32.totalorder %s29, 7
      %p206 = por %p204, %p205
      %p208 = scmp.ne.s32.totalorder %s191, %s207
      %p209 = scmp.eq.s32.totalorder %s29, 0
      %p210 = por %p208, %p209
      %p211 = scmp.le.s32.totalorder 1, %s23
      %p212 = scmp.lt.s32.totalorder %s23, 9
      %p213 = pnand %p211, %p212
      %p214 = pneg %p213
      // Predicated region
      $region9: #{attention_block.3} parent=5 // pred_check
        _
      $region10: #{attention_block.3} parent=5 // pred_check_branch
        %216 = sbr.rel (%p213) target = $region12
      $region11: #{attention_block.3} parent=5 // pred_region
        %s217 = ssub.s32 %s23, 1
        // Predicated region
        $region13: #{attention_block.3} parent=11 // pred_check
          %p218 = pneg %p175
        $region14: #{attention_block.3} parent=11 // pred_check_branch
          %220 = sbr.rel (%p218) target = $region16
        $region15: #{attention_block.3} parent=11 // pred_region
          %s222 = ssub.s32 4096, 4096
          %223 = vsyncadd [#allocation12], %s222
          %s224 = sshll.u32 [#allocation13], 4
          %s225 = int_to_ptr.vmem [resolvable:$true] %s224
          %230 = dma.hbm_to_vmem [thread:$0]  %s4, 4096, %s225, [#allocation12], 128, 128, 8
        $region16: #{attention_block.3} parent=11 // pred_fallthru
          _
      $region12: #{attention_block.3} parent=5 // pred_fallthru
        _
      %p231 = scmp.lt.s32.totalorder %s23, 8
      // Predicated region
      $region17: #{attention_block.3} parent=5 // pred_check
        %p232 = pneg %p231
      $region18: #{attention_block.3} parent=5 // pred_check_branch
        %234 = sbr.rel (%p232) target = $region20
      $region19: #{attention_block.3} parent=5 // pred_region
        // Predicated region
        $region21: #{attention_block.3} parent=19 // pred_check
          %p235 = pneg %p64
        $region22: #{attention_block.3} parent=19 // pred_check_branch
          %237 = sbr.rel (%p235) target = $region24
        $region23: #{attention_block.3} parent=19 // pred_region
          %s238 = sand.u32 %s54, 1
          %s239 = scalar_lea.sflag [#allocation6], %s238
          %s240 = sand.u32 %s54, 1
          %s241 = smul.addr %s240, 256
          %s242 = scalar_lea.vmem [#allocation5], %s241
          %s243 = smul.u32 16, %s31
          %s245 = ssub.s32 4096, 4096
          %246 = vsyncadd %s239, %s245
          %s247 = smul.addr %s243, 2
          %s248 = smul.addr %s30, 64
          %s249 = sadd.s32 %s247, %s248
          %s250 = smul.addr %s249, 128
          %s251 = scalar_lea.hbm %s0, %s250
          %s252 = sshll.u32 %s242, 4
          %s253 = int_to_ptr.vmem [resolvable:$true] %s252
          %258 = dma.hbm_to_vmem [thread:$0]  %s251, 4096, %s253, %s239, 256, 256, 16
        $region24: #{attention_block.3} parent=19 // pred_fallthru
          _
        // Predicated region
        $region25: #{attention_block.3} parent=19 // pred_check
          %p259 = pneg %p92
        $region26: #{attention_block.3} parent=19 // pred_check_branch
          %261 = sbr.rel (%p259) target = $region28
        $region27: #{attention_block.3} parent=19 // pred_region
          %s262 = sand.u32 %s23, 1
          %s263 = scalar_lea.sflag [#allocation9], %s262
          %s264 = sand.u32 %s82, 1
          %s265 = smul.addr %s264, 128
          %s266 = scalar_lea.vmem [#allocation8], %s265
          %s267 = smul.u32 16, %s31
          %s269 = ssub.s32 2048, 2048
          %270 = vsyncadd %s263, %s269
          %s271 = smul.addr %s267, 2
          %s272 = smul.addr %s30, 64
          %s273 = sadd.s32 %s271, %s272
          %s274 = smul.addr %s273, 64
          %s275 = scalar_lea.hbm %s1, %s274
          %s276 = sshll.u32 %s266, 4
          %s277 = int_to_ptr.vmem [resolvable:$true] %s276
          %282 = dma.hbm_to_vmem [thread:$0]  %s275, 2048, %s277, %s263, 128, 128, 8
        $region28: #{attention_block.3} parent=19 // pred_fallthru
          _
        // Predicated region
        $region29: #{attention_block.3} parent=19 // pred_check
          %p283 = pneg %p120
        $region30: #{attention_block.3} parent=19 // pred_check_branch
          %285 = sbr.rel (%p283) target = $region32
        $region31: #{attention_block.3} parent=19 // pred_region
          %s286 = sand.u32 %s23, 1
          %s287 = scalar_lea.sflag [#allocation9], %s286
          %s288 = sand.u32 %s110, 1
          %s289 = smul.addr %s288, 128
          %s290 = scalar_lea.vmem [#allocation10], %s289
          %s291 = smul.u32 16, %s32
          %s293 = ssub.s32 2048, 2048
          %294 = vsyncadd %s287, %s293
          %s295 = smul.addr %s291, 2
          %s296 = smul.addr %s30, 64
          %s297 = sadd.s32 %s295, %s296
          %s298 = smul.addr %s297, 64
          %s299 = scalar_lea.hbm %s2, %s298
          %s300 = sshll.u32 %s290, 4
          %s301 = int_to_ptr.vmem [resolvable:$true] %s300
          %306 = dma.hbm_to_vmem [thread:$0]  %s299, 2048, %s301, %s287, 128, 128, 8
        $region32: #{attention_block.3} parent=19 // pred_fallthru
          _
        // Predicated region
        $region33: #{attention_block.3} parent=19 // pred_check
          %p307 = pneg %p148
        $region34: #{attention_block.3} parent=19 // pred_check_branch
          %309 = sbr.rel (%p307) target = $region36
        $region35: #{attention_block.3} parent=19 // pred_region
          %s310 = sand.u32 %s23, 1
          %s311 = scalar_lea.sflag [#allocation12], %s310
          %s312 = sand.u32 %s138, 1
          %s313 = smul.addr %s312, 128
          %s314 = scalar_lea.vmem [#allocation11], %s313
          %s315 = smul.u32 16, %s32
          %s317 = ssub.s32 2048, 2048
          %318 = vsyncadd %s311, %s317
          %s319 = smul.addr %s315, 2
          %s320 = smul.addr %s30, 64
          %s321 = sadd.s32 %s319, %s320
          %s322 = smul.addr %s321, 64
          %s323 = scalar_lea.hbm %s3, %s322
          %s324 = sshll.u32 %s314, 4
          %s325 = int_to_ptr.vmem [resolvable:$true] %s324
          %330 = dma.hbm_to_vmem [thread:$0]  %s323, 2048, %s325, %s311, 128, 128, 8
        $region36: #{attention_block.3} parent=19 // pred_fallthru
          _
      $region20: #{attention_block.3} parent=5 // pred_fallthru
        _
      %p331 = scmp.le.s32.totalorder 1, %s23
      %p332 = scmp.lt.s32.totalorder %s23, 9
      %p333 = pnand %p331, %p332
      %p334 = pneg %p333
      // Predicated region
      $region37: #{attention_block.3} parent=5 // pred_check
        _
      $region38: #{attention_block.3} parent=5 // pred_check_branch
        %336 = sbr.rel (%p333) target = $region40
      $region39: #{attention_block.3} parent=5 // pred_region
        %s337 = ssub.s32 %s23, 1
        %s338 = sand.u32 %s57, 1
        %s339 = scalar_lea.sflag [#allocation6], %s338
        %s340 = sand.u32 %s57, 1
        %s341 = smul.addr %s340, 256
        %s342 = scalar_lea.vmem [#allocation5], %s341
        // Predicated region
        $region41: #{attention_block.3} parent=39 // pred_check
          %p343 = pneg %p70
        $region42: #{attention_block.3} parent=39 // pred_check_branch
          %345 = sbr.rel (%p343) target = $region44
        $region43: #{attention_block.3} parent=39 // pred_region
          %346 = dma.done %s339, 4096
        $region44: #{attention_block.3} parent=39 // pred_fallthru
          _
        %s347 = sand.u32 %s28, 1
        %s348 = scalar_lea.sflag [#allocation9], %s347
        %s349 = sand.u32 %s85, 1
        %s350 = smul.addr %s349, 128
        %s351 = scalar_lea.vmem [#allocation8], %s350
        // Predicated region
        $region45: #{attention_block.3} parent=39 // pred_check
          %p352 = pneg %p98
        $region46: #{attention_block.3} parent=39 // pred_check_branch
          %354 = sbr.rel (%p352) target = $region48
        $region47: #{attention_block.3} parent=39 // pred_region
          %355 = dma.done %s348, 2048
        $region48: #{attention_block.3} parent=39 // pred_fallthru
          _
        %s356 = sand.u32 %s28, 1
        %s357 = scalar_lea.sflag [#allocation9], %s356
        %s358 = sand.u32 %s113, 1
        %s359 = smul.addr %s358, 128
        %s360 = scalar_lea.vmem [#allocation10], %s359
        // Predicated region
        $region49: #{attention_block.3} parent=39 // pred_check
          %p361 = pneg %p126
        $region50: #{attention_block.3} parent=39 // pred_check_branch
          %363 = sbr.rel (%p361) target = $region52
        $region51: #{attention_block.3} parent=39 // pred_region
          %364 = dma.done %s357, 2048
        $region52: #{attention_block.3} parent=39 // pred_fallthru
          _
        %s365 = sand.u32 %s28, 1
        %s366 = scalar_lea.sflag [#allocation12], %s365
        %s367 = sand.u32 %s141, 1
        %s368 = smul.addr %s367, 128
        %s369 = scalar_lea.vmem [#allocation11], %s368
        // Predicated region
        $region53: #{attention_block.3} parent=39 // pred_check
          %p370 = pneg %p154
        $region54: #{attention_block.3} parent=39 // pred_check_branch
          %372 = sbr.rel (%p370) target = $region56
        $region55: #{attention_block.3} parent=39 // pred_region
          %373 = dma.done %s366, 2048
        $region56: #{attention_block.3} parent=39 // pred_fallthru
          _
        // Predicated region
        $region57: #{attention_block.3} parent=39 // pred_check
          %p374 = pneg %p175
        $region58: #{attention_block.3} parent=39 // pred_check_branch
          %376 = sbr.rel (%p374) target = $region60
        $region59: #{attention_block.3} parent=39 // pred_region
          %377 = dma.done [#allocation12], 4096
        $region60: #{attention_block.3} parent=39 // pred_fallthru
          _
        %s378 = sand.u32 %s57, 1
        %s379 = scalar_lea.sflag [#allocation6], %s378
        %s380 = sand.u32 %s57, 1
        %s381 = smul.addr %s380, 256
        %s382 = scalar_lea.vmem [#allocation5], %s381
        %p383 = pneg %p70
        %p384 = pneg %p67
        %s385 = sand.u32 %s28, 1
        %s386 = scalar_lea.sflag [#allocation9], %s385
        %s387 = sand.u32 %s85, 1
        %s388 = smul.addr %s387, 128
        %s389 = scalar_lea.vmem [#allocation8], %s388
        %p390 = pneg %p98
        %p391 = pneg %p95
        %s392 = sand.u32 %s28, 1
        %s393 = scalar_lea.sflag [#allocation9], %s392
        %s394 = sand.u32 %s113, 1
        %s395 = smul.addr %s394, 128
        %s396 = scalar_lea.vmem [#allocation10], %s395
        %p397 = pneg %p126
        %p398 = pneg %p123
        %s399 = sand.u32 %s28, 1
        %s400 = scalar_lea.sflag [#allocation12], %s399
        %s401 = sand.u32 %s141, 1
        %s402 = smul.addr %s401, 128
        %s403 = scalar_lea.vmem [#allocation11], %s402
        %p404 = pneg %p154
        %p405 = pneg %p151
        %p406 = pneg %p175
        %p407 = pneg %p172
        %p408 = pneg %p203
        %p409 = pneg %p200
        %s410 = sand.u32 %s190, 1
        %s411 = scalar_lea.sflag [#allocation7], %s410
        %s412 = sand.u32 %s190, 1
        %s413 = smul.addr %s412, 256
        %s414 = scalar_lea.vmem [#allocation14], %s413
        %s415 = smul.u32 16, %s34
        %s416 = smul.u32 16, %s34
        %s417 = smul.u32 16, %s35
        %s418 = smul.u32 16, %s35
        %s419 = smul.u32 16, %s34
        %p421 = scmp.eq.s32.totalorder %s35, 0
        // Predicated region
        $region61: #{attention_block.3} parent=39 // pred_check
          %p422 = pneg %p421
        $region62: #{attention_block.3} parent=39 // pred_check_branch
          %424 = sbr.rel (%p422) target = $region64
        $region63: #{attention_block.3} parent=39 // pred_region
          %425 = vst [vmem:[#allocation2] sm:$0xff] 0.0
          %426 = vst [vmem:[#allocation2 + $0x8] sm:$0xff] 0.0
          %427 = vst [vmem:[#allocation2 + $0x10] sm:$0xff] 0.0
          %428 = vst [vmem:[#allocation2 + $0x18] sm:$0xff] 0.0
          %429 = vst [vmem:[#allocation2 + $0x20] sm:$0xff] 0.0
          %430 = vst [vmem:[#allocation2 + $0x28] sm:$0xff] 0.0
          %431 = vst [vmem:[#allocation2 + $0x30] sm:$0xff] 0.0
          %432 = vst [vmem:[#allocation2 + $0x38] sm:$0xff] 0.0
          %433 = vst [vmem:[#allocation2 + $0x40] sm:$0xff] 0.0
          %434 = vst [vmem:[#allocation2 + $0x48] sm:$0xff] 0.0
          %435 = vst [vmem:[#allocation2 + $0x50] sm:$0xff] 0.0
          %436 = vst [vmem:[#allocation2 + $0x58] sm:$0xff] 0.0
          %437 = vst [vmem:[#allocation2 + $0x60] sm:$0xff] 0.0
          %438 = vst [vmem:[#allocation2 + $0x68] sm:$0xff] 0.0
          %439 = vst [vmem:[#allocation2 + $0x70] sm:$0xff] 0.0
          %440 = vst [vmem:[#allocation2 + $0x78] sm:$0xff] 0.0
          %441 = vst [vmem:[#allocation2 + $0x80] sm:$0xff] 0.0
          %442 = vst [vmem:[#allocation2 + $0x88] sm:$0xff] 0.0
          %443 = vst [vmem:[#allocation2 + $0x90] sm:$0xff] 0.0
          %444 = vst [vmem:[#allocation2 + $0x98] sm:$0xff] 0.0
          %445 = vst [vmem:[#allocation2 + $0xa0] sm:$0xff] 0.0
          %446 = vst [vmem:[#allocation2 + $0xa8] sm:$0xff] 0.0
          %447 = vst [vmem:[#allocation2 + $0xb0] sm:$0xff] 0.0
          %448 = vst [vmem:[#allocation2 + $0xb8] sm:$0xff] 0.0
          %449 = vst [vmem:[#allocation2 + $0xc0] sm:$0xff] 0.0
          %450 = vst [vmem:[#allocation2 + $0xc8] sm:$0xff] 0.0
          %451 = vst [vmem:[#allocation2 + $0xd0] sm:$0xff] 0.0
          %452 = vst [vmem:[#allocation2 + $0xd8] sm:$0xff] 0.0
          %453 = vst [vmem:[#allocation2 + $0xe0] sm:$0xff] 0.0
          %454 = vst [vmem:[#allocation2 + $0xe8] sm:$0xff] 0.0
          %455 = vst [vmem:[#allocation2 + $0xf0] sm:$0xff] 0.0
          %456 = vst [vmem:[#allocation2 + $0xf8] sm:$0xff] 0.0
          %vm457 = vcmask 7168
          %458 = vst.msk [vmem:[#allocation3] sm:$0xff] %vm457, -1e+30
          %459 = vst.msk [vmem:[#allocation3 + $0x8] sm:$0xff] %vm457, -1e+30
          %460 = vst.msk [vmem:[#allocation3 + $0x10] sm:$0xff] %vm457, -1e+30
          %461 = vst.msk [vmem:[#allocation3 + $0x18] sm:$0xff] %vm457, -1e+30
          %462 = vst.msk [vmem:[#allocation3 + $0x20] sm:$0xff] %vm457, -1e+30
          %463 = vst.msk [vmem:[#allocation3 + $0x28] sm:$0xff] %vm457, -1e+30
          %464 = vst.msk [vmem:[#allocation3 + $0x30] sm:$0xff] %vm457, -1e+30
          %465 = vst.msk [vmem:[#allocation3 + $0x38] sm:$0xff] %vm457, -1e+30
          %466 = vst.msk [vmem:[#allocation3 + $0x40] sm:$0xff] %vm457, -1e+30
          %467 = vst.msk [vmem:[#allocation3 + $0x48] sm:$0xff] %vm457, -1e+30
          %468 = vst.msk [vmem:[#allocation3 + $0x50] sm:$0xff] %vm457, -1e+30
          %469 = vst.msk [vmem:[#allocation3 + $0x58] sm:$0xff] %vm457, -1e+30
          %470 = vst.msk [vmem:[#allocation3 + $0x60] sm:$0xff] %vm457, -1e+30
          %471 = vst.msk [vmem:[#allocation3 + $0x68] sm:$0xff] %vm457, -1e+30
          %472 = vst.msk [vmem:[#allocation3 + $0x70] sm:$0xff] %vm457, -1e+30
          %473 = vst.msk [vmem:[#allocation3 + $0x78] sm:$0xff] %vm457, -1e+30
          %474 = vst.msk [vmem:[#allocation3 + $0x80] sm:$0xff] %vm457, -1e+30
          %475 = vst.msk [vmem:[#allocation3 + $0x88] sm:$0xff] %vm457, -1e+30
          %476 = vst.msk [vmem:[#allocation3 + $0x90] sm:$0xff] %vm457, -1e+30
          %477 = vst.msk [vmem:[#allocation3 + $0x98] sm:$0xff] %vm457, -1e+30
          %478 = vst.msk [vmem:[#allocation3 + $0xa0] sm:$0xff] %vm457, -1e+30
          %479 = vst.msk [vmem:[#allocation3 + $0xa8] sm:$0xff] %vm457, -1e+30
          %480 = vst.msk [vmem:[#allocation3 + $0xb0] sm:$0xff] %vm457, -1e+30
          %481 = vst.msk [vmem:[#allocation3 + $0xb8] sm:$0xff] %vm457, -1e+30
          %482 = vst.msk [vmem:[#allocation3 + $0xc0] sm:$0xff] %vm457, -1e+30
          %483 = vst.msk [vmem:[#allocation3 + $0xc8] sm:$0xff] %vm457, -1e+30
          %484 = vst.msk [vmem:[#allocation3 + $0xd0] sm:$0xff] %vm457, -1e+30
          %485 = vst.msk [vmem:[#allocation3 + $0xd8] sm:$0xff] %vm457, -1e+30
          %486 = vst.msk [vmem:[#allocation3 + $0xe0] sm:$0xff] %vm457, -1e+30
          %487 = vst.msk [vmem:[#allocation3 + $0xe8] sm:$0xff] %vm457, -1e+30
          %488 = vst.msk [vmem:[#allocation3 + $0xf0] sm:$0xff] %vm457, -1e+30
          %489 = vst.msk [vmem:[#allocation3 + $0xf8] sm:$0xff] %vm457, -1e+30
          %490 = vst.msk [vmem:[#allocation4] sm:$0xff] %vm457, 0.0
          %491 = vst.msk [vmem:[#allocation4 + $0x8] sm:$0xff] %vm457, 0.0
          %492 = vst.msk [vmem:[#allocation4 + $0x10] sm:$0xff] %vm457, 0.0
          %493 = vst.msk [vmem:[#allocation4 + $0x18] sm:$0xff] %vm457, 0.0
          %494 = vst.msk [vmem:[#allocation4 + $0x20] sm:$0xff] %vm457, 0.0
          %495 = vst.msk [vmem:[#allocation4 + $0x28] sm:$0xff] %vm457, 0.0
          %496 = vst.msk [vmem:[#allocation4 + $0x30] sm:$0xff] %vm457, 0.0
          %497 = vst.msk [vmem:[#allocation4 + $0x38] sm:$0xff] %vm457, 0.0
          %498 = vst.msk [vmem:[#allocation4 + $0x40] sm:$0xff] %vm457, 0.0
          %499 = vst.msk [vmem:[#allocation4 + $0x48] sm:$0xff] %vm457, 0.0
          %500 = vst.msk [vmem:[#allocation4 + $0x50] sm:$0xff] %vm457, 0.0
          %501 = vst.msk [vmem:[#allocation4 + $0x58] sm:$0xff] %vm457, 0.0
          %502 = vst.msk [vmem:[#allocation4 + $0x60] sm:$0xff] %vm457, 0.0
          %503 = vst.msk [vmem:[#allocation4 + $0x68] sm:$0xff] %vm457, 0.0
          %504 = vst.msk [vmem:[#allocation4 + $0x70] sm:$0xff] %vm457, 0.0
          %505 = vst.msk [vmem:[#allocation4 + $0x78] sm:$0xff] %vm457, 0.0
          %506 = vst.msk [vmem:[#allocation4 + $0x80] sm:$0xff] %vm457, 0.0
          %507 = vst.msk [vmem:[#allocation4 + $0x88] sm:$0xff] %vm457, 0.0
          %508 = vst.msk [vmem:[#allocation4 + $0x90] sm:$0xff] %vm457, 0.0
          %509 = vst.msk [vmem:[#allocation4 + $0x98] sm:$0xff] %vm457, 0.0
          %510 = vst.msk [vmem:[#allocation4 + $0xa0] sm:$0xff] %vm457, 0.0
          %511 = vst.msk [vmem:[#allocation4 + $0xa8] sm:$0xff] %vm457, 0.0
          %512 = vst.msk [vmem:[#allocation4 + $0xb0] sm:$0xff] %vm457, 0.0
          %513 = vst.msk [vmem:[#allocation4 + $0xb8] sm:$0xff] %vm457, 0.0
          %514 = vst.msk [vmem:[#allocation4 + $0xc0] sm:$0xff] %vm457, 0.0
          %515 = vst.msk [vmem:[#allocation4 + $0xc8] sm:$0xff] %vm457, 0.0
          %516 = vst.msk [vmem:[#allocation4 + $0xd0] sm:$0xff] %vm457, 0.0
          %517 = vst.msk [vmem:[#allocation4 + $0xd8] sm:$0xff] %vm457, 0.0
          %518 = vst.msk [vmem:[#allocation4 + $0xe0] sm:$0xff] %vm457, 0.0
          %519 = vst.msk [vmem:[#allocation4 + $0xe8] sm:$0xff] %vm457, 0.0
          %520 = vst.msk [vmem:[#allocation4 + $0xf0] sm:$0xff] %vm457, 0.0
          %521 = vst.msk [vmem:[#allocation4 + $0xf8] sm:$0xff] %vm457, 0.0
        $region64: #{attention_block.3} parent=39 // pred_fallthru
          _
        %p522 = scmp.le.s32.totalorder %s35, %s34
        // Predicated region
        $region65: #{attention_block.3} parent=39 // pred_check
          %p523 = pneg %p522
        $region66: #{attention_block.3} parent=39 // pred_check_branch
          %525 = sbr.rel (%p523) target = $region68
        $region67: #{attention_block.3} parent=39 // pred_region
          %v526 = vld [vmem:[%s351] sm:$0xff]
          %v527 = vld [vmem:[%s351 + $0x8] sm:$0xff]
          %v528 = vld [vmem:[%s351 + $0x10] sm:$0xff]
          %v529 = vld [vmem:[%s351 + $0x18] sm:$0xff]
          %v530 = vld [vmem:[%s351 + $0x20] sm:$0xff]
          %v531 = vld [vmem:[%s351 + $0x28] sm:$0xff]
          %v532 = vld [vmem:[%s351 + $0x30] sm:$0xff]
          %v533 = vld [vmem:[%s351 + $0x38] sm:$0xff]
          %v534 = vld [vmem:[%s351 + $0x40] sm:$0xff]
          %v535 = vld [vmem:[%s351 + $0x48] sm:$0xff]
          %v536 = vld [vmem:[%s351 + $0x50] sm:$0xff]
          %v537 = vld [vmem:[%s351 + $0x58] sm:$0xff]
          %v538 = vld [vmem:[%s351 + $0x60] sm:$0xff]
          %v539 = vld [vmem:[%s351 + $0x68] sm:$0xff]
          %v540 = vld [vmem:[%s351 + $0x70] sm:$0xff]
          %v541 = vld [vmem:[%s351 + $0x78] sm:$0xff]
          %v542 = vld [vmem:[%s360] sm:$0xff]
          %v543 = vld [vmem:[%s360 + $0x8] sm:$0xff]
          %v544 = vld [vmem:[%s360 + $0x10] sm:$0xff]
          %v545 = vld [vmem:[%s360 + $0x18] sm:$0xff]
          %v546 = vld [vmem:[%s360 + $0x20] sm:$0xff]
          %v547 = vld [vmem:[%s360 + $0x28] sm:$0xff]
          %v548 = vld [vmem:[%s360 + $0x30] sm:$0xff]
          %v549 = vld [vmem:[%s360 + $0x38] sm:$0xff]
          %v550 = vld [vmem:[%s360 + $0x40] sm:$0xff]
          %v551 = vld [vmem:[%s360 + $0x48] sm:$0xff]
          %v552 = vld [vmem:[%s360 + $0x50] sm:$0xff]
          %v553 = vld [vmem:[%s360 + $0x58] sm:$0xff]
          %v554 = vld [vmem:[%s360 + $0x60] sm:$0xff]
          %v555 = vld [vmem:[%s360 + $0x68] sm:$0xff]
          %v556 = vld [vmem:[%s360 + $0x70] sm:$0xff]
          %v557 = vld [vmem:[%s360 + $0x78] sm:$0xff]
          %v558 = vld [vmem:[%s369] sm:$0xff]
          %v559 = vld [vmem:[%s369 + $0x8] sm:$0xff]
          %v560 = vld [vmem:[%s369 + $0x10] sm:$0xff]
          %v561 = vld [vmem:[%s369 + $0x18] sm:$0xff]
          %v562 = vld [vmem:[%s369 + $0x20] sm:$0xff]
          %v563 = vld [vmem:[%s369 + $0x28] sm:$0xff]
          %v564 = vld [vmem:[%s369 + $0x30] sm:$0xff]
          %v565 = vld [vmem:[%s369 + $0x38] sm:$0xff]
          %v566 = vld [vmem:[%s369 + $0x40] sm:$0xff]
          %v567 = vld [vmem:[%s369 + $0x48] sm:$0xff]
          %v568 = vld [vmem:[%s369 + $0x50] sm:$0xff]
          %v569 = vld [vmem:[%s369 + $0x58] sm:$0xff]
          %v570 = vld [vmem:[%s369 + $0x60] sm:$0xff]
          %v571 = vld [vmem:[%s369 + $0x68] sm:$0xff]
          %v572 = vld [vmem:[%s369 + $0x70] sm:$0xff]
          %v573 = vld [vmem:[%s369 + $0x78] sm:$0xff]
          %s574 = smul.u32 %s34, 128
          %v575 = vlaneseq
          %v576 = vshrl.u32 %v575, 7
          %v577 = vadd.s32 %v576, 8
          %v578 = vadd.s32 %v576, 16
          %v579 = vadd.s32 %v576, 24
          %v580 = vadd.s32 %v576, 32
          %v581 = vadd.s32 %v576, 40
          %v582 = vadd.s32 %v576, 48
          %v583 = vadd.s32 %v576, 56
          %v584 = vadd.s32 %v576, 64
          %v585 = vadd.s32 %v576, 72
          %v586 = vadd.s32 %v576, 80
          %v587 = vadd.s32 %v576, 88
          %v588 = vadd.s32 %v576, 96
          %v589 = vadd.s32 %v576, 104
          %v590 = vadd.s32 %v576, 112
          %v591 = vadd.s32 %v576, 120
          %v592 = vstv %s574
          %v593 = vadd.s32 %v592, %v576
          %v594 = vadd.s32 %v592, %v577
          %v595 = vadd.s32 %v592, %v578
          %v596 = vadd.s32 %v592, %v579
          %v597 = vadd.s32 %v592, %v580
          %v598 = vadd.s32 %v592, %v581
          %v599 = vadd.s32 %v592, %v582
          %v600 = vadd.s32 %v592, %v583
          %v601 = vadd.s32 %v592, %v584
          %v602 = vadd.s32 %v592, %v585
          %v603 = vadd.s32 %v592, %v586
          %v604 = vadd.s32 %v592, %v587
          %v605 = vadd.s32 %v592, %v588
          %v606 = vadd.s32 %v592, %v589
          %v607 = vadd.s32 %v592, %v590
          %v608 = vadd.s32 %v592, %v591
          %s609 = smul.u32 %s35, 128
          %v610 = vlaneseq
          %v611 = vand.u32 %v610, 127
          %v612 = vstv %s609
          %v613 = vadd.s32 %v612, %v611
          %vm614 = vcmp.le.s32.totalorder %v613, %v593
          %vm615 = vcmp.le.s32.totalorder %v613, %v594
          %vm616 = vcmp.le.s32.totalorder %v613, %v595
          %vm617 = vcmp.le.s32.totalorder %v613, %v596
          %vm618 = vcmp.le.s32.totalorder %v613, %v597
          %vm619 = vcmp.le.s32.totalorder %v613, %v598
          %vm620 = vcmp.le.s32.totalorder %v613, %v599
          %vm621 = vcmp.le.s32.totalorder %v613, %v600
          %vm622 = vcmp.le.s32.totalorder %v613, %v601
          %vm623 = vcmp.le.s32.totalorder %v613, %v602
          %vm624 = vcmp.le.s32.totalorder %v613, %v603
          %vm625 = vcmp.le.s32.totalorder %v613, %v604
          %vm626 = vcmp.le.s32.totalorder %v613, %v605
          %vm627 = vcmp.le.s32.totalorder %v613, %v606
          %vm628 = vcmp.le.s32.totalorder %v613, %v607
          %vm629 = vcmp.le.s32.totalorder %v613, %v608
          %v646 = vunpack.c.l.b16 %v526
          %v647 = vunpack.c.l.b16 %v527
          %v648 = vunpack.c.l.b16 %v528
          %v649 = vunpack.c.l.b16 %v529
          %v650 = vunpack.c.l.b16 %v530
          %v651 = vunpack.c.l.b16 %v531
          %v652 = vunpack.c.l.b16 %v532
          %v653 = vunpack.c.l.b16 %v533
          %v654 = vunpack.c.l.b16 %v534
          %v655 = vunpack.c.l.b16 %v535
          %v656 = vunpack.c.l.b16 %v536
          %v657 = vunpack.c.l.b16 %v537
          %v658 = vunpack.c.l.b16 %v538
          %v659 = vunpack.c.l.b16 %v539
          %v660 = vunpack.c.l.b16 %v540
          %v661 = vunpack.c.l.b16 %v541
          %v662 = vpack.c.b16 %v647, %v646
          %v663 = vpack.c.b16 %v649, %v648
          %v664 = vpack.c.b16 %v651, %v650
          %v665 = vpack.c.b16 %v653, %v652
          %v666 = vpack.c.b16 %v655, %v654
          %v667 = vpack.c.b16 %v657, %v656
          %v668 = vpack.c.b16 %v659, %v658
          %v669 = vpack.c.b16 %v661, %v660
          %v694 = vunpack.c.l.b16 %v542
          %v695 = vunpack.c.l.b16 %v543
          %v696 = vunpack.c.l.b16 %v544
          %v697 = vunpack.c.l.b16 %v545
          %v698 = vunpack.c.l.b16 %v546
          %v699 = vunpack.c.l.b16 %v547
          %v700 = vunpack.c.l.b16 %v548
          %v701 = vunpack.c.l.b16 %v549
          %v702 = vunpack.c.l.b16 %v550
          %v703 = vunpack.c.l.b16 %v551
          %v704 = vunpack.c.l.b16 %v552
          %v705 = vunpack.c.l.b16 %v553
          %v706 = vunpack.c.l.b16 %v554
          %v707 = vunpack.c.l.b16 %v555
          %v708 = vunpack.c.l.b16 %v556
          %v709 = vunpack.c.l.b16 %v557
          %v710 = vpack.c.b16 %v695, %v694
          %v711 = vpack.c.b16 %v697, %v696
          %v712 = vpack.c.b16 %v699, %v698
          %v713 = vpack.c.b16 %v701, %v700
          %v714 = vpack.c.b16 %v703, %v702
          %v715 = vpack.c.b16 %v705, %v704
          %v716 = vpack.c.b16 %v707, %v706
          %v717 = vpack.c.b16 %v709, %v708
          %726 = vmatprep.subr.bf16.mxu0 0
          %727 = vmatpush1.bf16.xpose.msra.mxu0 %v710
          %728 = vmatprep.subr.bf16.mxu0 0
          %729 = vmatpush1.bf16.xpose.msra.mxu0 %v711
          %730 = vmatprep.subr.bf16.mxu0 0
          %731 = vmatpush1.bf16.xpose.msra.mxu0 %v712
          %732 = vmatprep.subr.bf16.mxu0 0
          %733 = vmatpush1.bf16.xpose.msra.mxu0 %v713
          %734 = vmatprep.subr.bf16.mxu0 0
          %735 = vmatpush1.bf16.xpose.msra.mxu0 %v714
          %736 = vmatprep.subr.bf16.mxu0 0
          %737 = vmatpush1.bf16.xpose.msra.mxu0 %v715
          %738 = vmatprep.subr.bf16.mxu0 0
          %739 = vmatpush1.bf16.xpose.msra.mxu0 %v716
          %740 = vmatprep.subr.bf16.mxu0 0
          %741 = vmatpush1.bf16.xpose.msra.mxu0 %v717
          %742 = vmatprep.subr.bf16.mxu0 0
          %743 = vmatpush1.bf16.xpose.msra.mxu0 0
          %744 = vmatprep.subr.bf16.mxu0 0
          %745 = vmatpush1.bf16.xpose.msra.mxu0 0
          %746 = vmatprep.subr.bf16.mxu0 0
          %747 = vmatpush1.bf16.xpose.msra.mxu0 0
          %748 = vmatprep.subr.bf16.mxu0 0
          %749 = vmatpush1.bf16.xpose.msra.mxu0 0
          %750 = vmatprep.subr.bf16.mxu0 0
          %751 = vmatpush1.bf16.xpose.msra.mxu0 0
          %752 = vmatprep.subr.bf16.mxu0 0
          %753 = vmatpush1.bf16.xpose.msra.mxu0 0
          %754 = vmatprep.subr.bf16.mxu0 0
          %755 = vmatpush1.bf16.xpose.msra.mxu0 0
          %756 = vmatprep.subr.bf16.mxu0 0
          %757 = vmatpush1.bf16.xpose.msra.mxu0 0
          %758 = vmatprep.mubr.bf16.mxu0 0
          %759 = vmatmul.mubr.bf16.gmra.mrb[0].mxu0 %v662
          %v760 = vpop.f32.mrb[0].mxu0
          %v761 = vadd.f32 0.0, %v760
          %v762 = vpop.f32.mrb[0].mxu0
          %v763 = vpop.f32.mrb[0].mxu0
          %v764 = vadd.f32 0.0, %v763
          %v765 = vpop.f32.mrb[0].mxu0
          %766 = vmatprep.mubr.bf16.mxu0 0
          %767 = vmatmul.mubr.bf16.gmra.mrb[0].mxu0 %v663
          %v768 = vpop.f32.mrb[0].mxu0
          %v769 = vadd.f32 0.0, %v768
          %v770 = vpop.f32.mrb[0].mxu0
          %v771 = vpop.f32.mrb[0].mxu0
          %v772 = vadd.f32 0.0, %v771
          %v773 = vpop.f32.mrb[0].mxu0
          %774 = vmatprep.mubr.bf16.mxu0 0
          %775 = vmatmul.mubr.bf16.gmra.mrb[0].mxu0 %v664
          %v776 = vpop.f32.mrb[0].mxu0
          %v777 = vadd.f32 0.0, %v776
          %v778 = vpop.f32.mrb[0].mxu0
          %v779 = vpop.f32.mrb[0].mxu0
          %v780 = vadd.f32 0.0, %v779
          %v781 = vpop.f32.mrb[0].mxu0
          %782 = vmatprep.mubr.bf16.mxu0 0
          %783 = vmatmul.mubr.bf16.gmra.mrb[0].mxu0 %v665
          %v784 = vpop.f32.mrb[0].mxu0
          %v785 = vadd.f32 0.0, %v784
          %v786 = vpop.f32.mrb[0].mxu0
          %v787 = vpop.f32.mrb[0].mxu0
          %v788 = vadd.f32 0.0, %v787
          %v789 = vpop.f32.mrb[0].mxu0
          %790 = vmatprep.mubr.bf16.mxu0 0
          %791 = vmatmul.mubr.bf16.gmra.mrb[0].mxu0 %v666
          %v792 = vpop.f32.mrb[0].mxu0
          %v793 = vadd.f32 0.0, %v792
          %v794 = vpop.f32.mrb[0].mxu0
          %v795 = vpop.f32.mrb[0].mxu0
          %v796 = vadd.f32 0.0, %v795
          %v797 = vpop.f32.mrb[0].mxu0
          %798 = vmatprep.mubr.bf16.mxu0 0
          %799 = vmatmul.mubr.bf16.gmra.mrb[0].mxu0 %v667
          %v800 = vpop.f32.mrb[0].mxu0
          %v801 = vadd.f32 0.0, %v800
          %v802 = vpop.f32.mrb[0].mxu0
          %v803 = vpop.f32.mrb[0].mxu0
          %v804 = vadd.f32 0.0, %v803
          %v805 = vpop.f32.mrb[0].mxu0
          %806 = vmatprep.mubr.bf16.mxu0 0
          %807 = vmatmul.mubr.bf16.gmra.mrb[0].mxu0 %v668
          %v808 = vpop.f32.mrb[0].mxu0
          %v809 = vadd.f32 0.0, %v808
          %v810 = vpop.f32.mrb[0].mxu0
          %v811 = vpop.f32.mrb[0].mxu0
          %v812 = vadd.f32 0.0, %v811
          %v813 = vpop.f32.mrb[0].mxu0
          %814 = vmatprep.mubr.bf16.mxu0 0
          %815 = vmatmul.mubr.bf16.gmra.mrb[0].mxu0 %v669
          %v816 = vpop.f32.mrb[0].mxu0
          %v817 = vadd.f32 0.0, %v816
          %v818 = vpop.f32.mrb[0].mxu0
          %v819 = vpop.f32.mrb[0].mxu0
          %v820 = vadd.f32 0.0, %v819
          %v821 = vpop.f32.mrb[0].mxu0
          %822 = vdwg.mxu0
          %v823 = vsel %vm614, %v761, -1e+30
          %v824 = vsel %vm615, %v764, -1e+30
          %v825 = vsel %vm616, %v769, -1e+30
          %v826 = vsel %vm617, %v772, -1e+30
          %v827 = vsel %vm618, %v777, -1e+30
          %v828 = vsel %vm619, %v780, -1e+30
          %v829 = vsel %vm620, %v785, -1e+30
          %v830 = vsel %vm621, %v788, -1e+30
          %v831 = vsel %vm622, %v793, -1e+30
          %v832 = vsel %vm623, %v796, -1e+30
          %v833 = vsel %vm624, %v801, -1e+30
          %v834 = vsel %vm625, %v804, -1e+30
          %v835 = vsel %vm626, %v809, -1e+30
          %v836 = vsel %vm627, %v812, -1e+30
          %v837 = vsel %vm628, %v817, -1e+30
          %v838 = vsel %vm629, %v820, -1e+30
          %v839 = vld [vmem:[#allocation3] sm:$0xff]
          %v840 = vld [vmem:[#allocation3 + $0x8] sm:$0xff]
          %v841 = vld [vmem:[#allocation3 + $0x10] sm:$0xff]
          %v842 = vld [vmem:[#allocation3 + $0x18] sm:$0xff]
          %v843 = vld [vmem:[#allocation3 + $0x20] sm:$0xff]
          %v844 = vld [vmem:[#allocation3 + $0x28] sm:$0xff]
          %v845 = vld [vmem:[#allocation3 + $0x30] sm:$0xff]
          %v846 = vld [vmem:[#allocation3 + $0x38] sm:$0xff]
          %v847 = vld [vmem:[#allocation3 + $0x40] sm:$0xff]
          %v848 = vld [vmem:[#allocation3 + $0x48] sm:$0xff]
          %v849 = vld [vmem:[#allocation3 + $0x50] sm:$0xff]
          %v850 = vld [vmem:[#allocation3 + $0x58] sm:$0xff]
          %v851 = vld [vmem:[#allocation3 + $0x60] sm:$0xff]
          %v852 = vld [vmem:[#allocation3 + $0x68] sm:$0xff]
          %v853 = vld [vmem:[#allocation3 + $0x70] sm:$0xff]
          %v854 = vld [vmem:[#allocation3 + $0x78] sm:$0xff]
          %855 = vmax.xlane.f32.xlu0 %v823
          %v856 = vpop.xlane.xlu0 %855
          %857 = vmax.xlane.f32.xlu0 %v824
          %v858 = vpop.xlane.xlu0 %857
          %859 = vmax.xlane.f32.xlu0 %v825
          %v860 = vpop.xlane.xlu0 %859
          %861 = vmax.xlane.f32.xlu0 %v826
          %v862 = vpop.xlane.xlu0 %861
          %863 = vmax.xlane.f32.xlu0 %v827
          %v864 = vpop.xlane.xlu0 %863
          %865 = vmax.xlane.f32.xlu0 %v828
          %v866 = vpop.xlane.xlu0 %865
          %867 = vmax.xlane.f32.xlu0 %v829
          %v868 = vpop.xlane.xlu0 %867
          %869 = vmax.xlane.f32.xlu0 %v830
          %v870 = vpop.xlane.xlu0 %869
          %871 = vmax.xlane.f32.xlu0 %v831
          %v872 = vpop.xlane.xlu0 %871
          %873 = vmax.xlane.f32.xlu0 %v832
          %v874 = vpop.xlane.xlu0 %873
          %875 = vmax.xlane.f32.xlu0 %v833
          %v876 = vpop.xlane.xlu0 %875
          %877 = vmax.xlane.f32.xlu0 %v834
          %v878 = vpop.xlane.xlu0 %877
          %879 = vmax.xlane.f32.xlu0 %v835
          %v880 = vpop.xlane.xlu0 %879
          %881 = vmax.xlane.f32.xlu0 %v836
          %v882 = vpop.xlane.xlu0 %881
          %883 = vmax.xlane.f32.xlu0 %v837
          %v884 = vpop.xlane.xlu0 %883
          %885 = vmax.xlane.f32.xlu0 %v838
          %v886 = vpop.xlane.xlu0 %885
          %v887 = vmax.f32 %v839, %v856
          %v888 = vmax.f32 %v840, %v858
          %v889 = vmax.f32 %v841, %v860
          %v890 = vmax.f32 %v842, %v862
          %v891 = vmax.f32 %v843, %v864
          %v892 = vmax.f32 %v844, %v866
          %v893 = vmax.f32 %v845, %v868
          %v894 = vmax.f32 %v846, %v870
          %v895 = vmax.f32 %v847, %v872
          %v896 = vmax.f32 %v848, %v874
          %v897 = vmax.f32 %v849, %v876
          %v898 = vmax.f32 %v850, %v878
          %v899 = vmax.f32 %v851, %v880
          %v900 = vmax.f32 %v852, %v882
          %v901 = vmax.f32 %v853, %v884
          %v902 = vmax.f32 %v854, %v886
          %v903 = vsub.f32 %v839, %v887
          %v904 = vsub.f32 %v840, %v888
          %v905 = vsub.f32 %v841, %v889
          %v906 = vsub.f32 %v842, %v890
          %v907 = vsub.f32 %v843, %v891
          %v908 = vsub.f32 %v844, %v892
          %v909 = vsub.f32 %v845, %v893
          %v910 = vsub.f32 %v846, %v894
          %v911 = vsub.f32 %v847, %v895
          %v912 = vsub.f32 %v848, %v896
          %v913 = vsub.f32 %v849, %v897
          %v914 = vsub.f32 %v850, %v898
          %v915 = vsub.f32 %v851, %v899
          %v916 = vsub.f32 %v852, %v900
          %v917 = vsub.f32 %v853, %v901
          %v918 = vsub.f32 %v854, %v902
          %v919 = vmul.f32 %v903, 1.442695
          %v920 = vpow.pop %v919
          %v921 = vmul.f32 %v904, 1.442695
          %v922 = vpow.pop %v921
          %v923 = vmul.f32 %v905, 1.442695
          %v924 = vpow.pop %v923
          %v925 = vmul.f32 %v906, 1.442695
          %v926 = vpow.pop %v925
          %v927 = vmul.f32 %v907, 1.442695
          %v928 = vpow.pop %v927
          %v929 = vmul.f32 %v908, 1.442695
          %v930 = vpow.pop %v929
          %v931 = vmul.f32 %v909, 1.442695
          %v932 = vpow.pop %v931
          %v933 = vmul.f32 %v910, 1.442695
          %v934 = vpow.pop %v933
          %v935 = vmul.f32 %v911, 1.442695
          %v936 = vpow.pop %v935
          %v937 = vmul.f32 %v912, 1.442695
          %v938 = vpow.pop %v937
          %v939 = vmul.f32 %v913, 1.442695
          %v940 = vpow.pop %v939
          %v941 = vmul.f32 %v914, 1.442695
          %v942 = vpow.pop %v941
          %v943 = vmul.f32 %v915, 1.442695
          %v944 = vpow.pop %v943
          %v945 = vmul.f32 %v916, 1.442695
          %v946 = vpow.pop %v945
          %v947 = vmul.f32 %v917, 1.442695
          %v948 = vpow.pop %v947
          %v949 = vmul.f32 %v918, 1.442695
          %v950 = vpow.pop %v949
          %952 = vset.pattern.permute.xlu0 0
          %953 = vperm.xlu0 %952, %v887
          %v954 = vpop.permute.xlu0 %953
          %957 = vset.pattern.permute.xlu0 0
          %958 = vperm.xlu0 %957, %v888
          %v959 = vpop.permute.xlu0 %958
          %962 = vset.pattern.permute.xlu0 0
          %963 = vperm.xlu0 %962, %v889
          %v964 = vpop.permute.xlu0 %963
          %967 = vset.pattern.permute.xlu0 0
          %968 = vperm.xlu0 %967, %v890
          %v969 = vpop.permute.xlu0 %968
          %972 = vset.pattern.permute.xlu0 0
          %973 = vperm.xlu0 %972, %v891
          %v974 = vpop.permute.xlu0 %973
          %977 = vset.pattern.permute.xlu0 0
          %978 = vperm.xlu0 %977, %v892
          %v979 = vpop.permute.xlu0 %978
          %982 = vset.pattern.permute.xlu0 0
          %983 = vperm.xlu0 %982, %v893
          %v984 = vpop.permute.xlu0 %983
          %987 = vset.pattern.permute.xlu0 0
          %988 = vperm.xlu0 %987, %v894
          %v989 = vpop.permute.xlu0 %988
          %992 = vset.pattern.permute.xlu0 0
          %993 = vperm.xlu0 %992, %v895
          %v994 = vpop.permute.xlu0 %993
          %997 = vset.pattern.permute.xlu0 0
          %998 = vperm.xlu0 %997, %v896
          %v999 = vpop.permute.xlu0 %998
          %1002 = vset.pattern.permute.xlu0 0
          %1003 = vperm.xlu0 %1002, %v897
          %v1004 = vpop.permute.xlu0 %1003
          %1007 = vset.pattern.permute.xlu0 0
          %1008 = vperm.xlu0 %1007, %v898
          %v1009 = vpop.permute.xlu0 %1008
          %1012 = vset.pattern.permute.xlu0 0
          %1013 = vperm.xlu0 %1012, %v899
          %v1014 = vpop.permute.xlu0 %1013
          %1017 = vset.pattern.permute.xlu0 0
          %1018 = vperm.xlu0 %1017, %v900
          %v1019 = vpop.permute.xlu0 %1018
          %1022 = vset.pattern.permute.xlu0 0
          %1023 = vperm.xlu0 %1022, %v901
          %v1024 = vpop.permute.xlu0 %1023
          %1027 = vset.pattern.permute.xlu0 0
          %1028 = vperm.xlu0 %1027, %v902
          %v1029 = vpop.permute.xlu0 %1028
          %v1031 = vsub.f32 %v823, %v954
          %v1032 = vsub.f32 %v824, %v959
          %v1033 = vsub.f32 %v825, %v964
          %v1034 = vsub.f32 %v826, %v969
          %v1035 = vsub.f32 %v827, %v974
          %v1036 = vsub.f32 %v828, %v979
          %v1037 = vsub.f32 %v829, %v984
          %v1038 = vsub.f32 %v830, %v989
          %v1039 = vsub.f32 %v831, %v994
          %v1040 = vsub.f32 %v832, %v999
          %v1041 = vsub.f32 %v833, %v1004
          %v1042 = vsub.f32 %v834, %v1009
          %v1043 = vsub.f32 %v835, %v1014
          %v1044 = vsub.f32 %v836, %v1019
          %v1045 = vsub.f32 %v837, %v1024
          %v1046 = vsub.f32 %v838, %v1029
          %v1047 = vmul.f32 %v1031, 1.442695
          %v1048 = vpow.pop %v1047
          %v1049 = vmul.f32 %v1032, 1.442695
          %v1050 = vpow.pop %v1049
          %v1051 = vmul.f32 %v1033, 1.442695
          %v1052 = vpow.pop %v1051
          %v1053 = vmul.f32 %v1034, 1.442695
          %v1054 = vpow.pop %v1053
          %v1055 = vmul.f32 %v1035, 1.442695
          %v1056 = vpow.pop %v1055
          %v1057 = vmul.f32 %v1036, 1.442695
          %v1058 = vpow.pop %v1057
          %v1059 = vmul.f32 %v1037, 1.442695
          %v1060 = vpow.pop %v1059
          %v1061 = vmul.f32 %v1038, 1.442695
          %v1062 = vpow.pop %v1061
          %v1063 = vmul.f32 %v1039, 1.442695
          %v1064 = vpow.pop %v1063
          %v1065 = vmul.f32 %v1040, 1.442695
          %v1066 = vpow.pop %v1065
          %v1067 = vmul.f32 %v1041, 1.442695
          %v1068 = vpow.pop %v1067
          %v1069 = vmul.f32 %v1042, 1.442695
          %v1070 = vpow.pop %v1069
          %v1071 = vmul.f32 %v1043, 1.442695
          %v1072 = vpow.pop %v1071
          %v1073 = vmul.f32 %v1044, 1.442695
          %v1074 = vpow.pop %v1073
          %v1075 = vmul.f32 %v1045, 1.442695
          %v1076 = vpow.pop %v1075
          %v1077 = vmul.f32 %v1046, 1.442695
          %v1078 = vpow.pop %v1077
          %v1079 = vld [vmem:[#allocation4] sm:$0xff]
          %v1080 = vld [vmem:[#allocation4 + $0x8] sm:$0xff]
          %v1081 = vld [vmem:[#allocation4 + $0x10] sm:$0xff]
          %v1082 = vld [vmem:[#allocation4 + $0x18] sm:$0xff]
          %v1083 = vld [vmem:[#allocation4 + $0x20] sm:$0xff]
          %v1084 = vld [vmem:[#allocation4 + $0x28] sm:$0xff]
          %v1085 = vld [vmem:[#allocation4 + $0x30] sm:$0xff]
          %v1086 = vld [vmem:[#allocation4 + $0x38] sm:$0xff]
          %v1087 = vld [vmem:[#allocation4 + $0x40] sm:$0xff]
          %v1088 = vld [vmem:[#allocation4 + $0x48] sm:$0xff]
          %v1089 = vld [vmem:[#allocation4 + $0x50] sm:$0xff]
          %v1090 = vld [vmem:[#allocation4 + $0x58] sm:$0xff]
          %v1091 = vld [vmem:[#allocation4 + $0x60] sm:$0xff]
          %v1092 = vld [vmem:[#allocation4 + $0x68] sm:$0xff]
          %v1093 = vld [vmem:[#allocation4 + $0x70] sm:$0xff]
          %v1094 = vld [vmem:[#allocation4 + $0x78] sm:$0xff]
          %v1095 = vmul.f32 %v920, %v1079
          %v1096 = vmul.f32 %v922, %v1080
          %v1097 = vmul.f32 %v924, %v1081
          %v1098 = vmul.f32 %v926, %v1082
          %v1099 = vmul.f32 %v928, %v1083
          %v1100 = vmul.f32 %v930, %v1084
          %v1101 = vmul.f32 %v932, %v1085
          %v1102 = vmul.f32 %v934, %v1086
          %v1103 = vmul.f32 %v936, %v1087
          %v1104 = vmul.f32 %v938, %v1088
          %v1105 = vmul.f32 %v940, %v1089
          %v1106 = vmul.f32 %v942, %v1090
          %v1107 = vmul.f32 %v944, %v1091
          %v1108 = vmul.f32 %v946, %v1092
          %v1109 = vmul.f32 %v948, %v1093
          %v1110 = vmul.f32 %v950, %v1094
          %1111 = vadd.xlane.f32.xlu0 %v1048
          %v1112 = vpop.xlane.xlu0 %1111
          %1113 = vadd.xlane.f32.xlu0 %v1050
          %v1114 = vpop.xlane.xlu0 %1113
          %1115 = vadd.xlane.f32.xlu0 %v1052
          %v1116 = vpop.xlane.xlu0 %1115
          %1117 = vadd.xlane.f32.xlu0 %v1054
          %v1118 = vpop.xlane.xlu0 %1117
          %1119 = vadd.xlane.f32.xlu0 %v1056
          %v1120 = vpop.xlane.xlu0 %1119
          %1121 = vadd.xlane.f32.xlu0 %v1058
          %v1122 = vpop.xlane.xlu0 %1121
          %1123 = vadd.xlane.f32.xlu0 %v1060
          %v1124 = vpop.xlane.xlu0 %1123
          %1125 = vadd.xlane.f32.xlu0 %v1062
          %v1126 = vpop.xlane.xlu0 %1125
          %1127 = vadd.xlane.f32.xlu0 %v1064
          %v1128 = vpop.xlane.xlu0 %1127
          %1129 = vadd.xlane.f32.xlu0 %v1066
          %v1130 = vpop.xlane.xlu0 %1129
          %1131 = vadd.xlane.f32.xlu0 %v1068
          %v1132 = vpop.xlane.xlu0 %1131
          %1133 = vadd.xlane.f32.xlu0 %v1070
          %v1134 = vpop.xlane.xlu0 %1133
          %1135 = vadd.xlane.f32.xlu0 %v1072
          %v1136 = vpop.xlane.xlu0 %1135
          %1137 = vadd.xlane.f32.xlu0 %v1074
          %v1138 = vpop.xlane.xlu0 %1137
          %1139 = vadd.xlane.f32.xlu0 %v1076
          %v1140 = vpop.xlane.xlu0 %1139
          %1141 = vadd.xlane.f32.xlu0 %v1078
          %v1142 = vpop.xlane.xlu0 %1141
          %v1143 = vadd.f32 %v1095, %v1112
          %v1144 = vadd.f32 %v1096, %v1114
          %v1145 = vadd.f32 %v1097, %v1116
          %v1146 = vadd.f32 %v1098, %v1118
          %v1147 = vadd.f32 %v1099, %v1120
          %v1148 = vadd.f32 %v1100, %v1122
          %v1149 = vadd.f32 %v1101, %v1124
          %v1150 = vadd.f32 %v1102, %v1126
          %v1151 = vadd.f32 %v1103, %v1128
          %v1152 = vadd.f32 %v1104, %v1130
          %v1153 = vadd.f32 %v1105, %v1132
          %v1154 = vadd.f32 %v1106, %v1134
          %v1155 = vadd.f32 %v1107, %v1136
          %v1156 = vadd.f32 %v1108, %v1138
          %v1157 = vadd.f32 %v1109, %v1140
          %v1158 = vadd.f32 %v1110, %v1142
          %vm1159 = vcmask 7168
          %1160 = vst.msk [vmem:[#allocation4] sm:$0xff] %vm1159, %v1143
          %1161 = vst.msk [vmem:[#allocation4 + $0x8] sm:$0xff] %vm1159, %v1144
          %1162 = vst.msk [vmem:[#allocation4 + $0x10] sm:$0xff] %vm1159, %v1145
          %1163 = vst.msk [vmem:[#allocation4 + $0x18] sm:$0xff] %vm1159, %v1146
          %1164 = vst.msk [vmem:[#allocation4 + $0x20] sm:$0xff] %vm1159, %v1147
          %1165 = vst.msk [vmem:[#allocation4 + $0x28] sm:$0xff] %vm1159, %v1148
          %1166 = vst.msk [vmem:[#allocation4 + $0x30] sm:$0xff] %vm1159, %v1149
          %1167 = vst.msk [vmem:[#allocation4 + $0x38] sm:$0xff] %vm1159, %v1150
          %1168 = vst.msk [vmem:[#allocation4 + $0x40] sm:$0xff] %vm1159, %v1151
          %1169 = vst.msk [vmem:[#allocation4 + $0x48] sm:$0xff] %vm1159, %v1152
          %1170 = vst.msk [vmem:[#allocation4 + $0x50] sm:$0xff] %vm1159, %v1153
          %1171 = vst.msk [vmem:[#allocation4 + $0x58] sm:$0xff] %vm1159, %v1154
          %1172 = vst.msk [vmem:[#allocation4 + $0x60] sm:$0xff] %vm1159, %v1155
          %1173 = vst.msk [vmem:[#allocation4 + $0x68] sm:$0xff] %vm1159, %v1156
          %1174 = vst.msk [vmem:[#allocation4 + $0x70] sm:$0xff] %vm1159, %v1157
          %1175 = vst.msk [vmem:[#allocation4 + $0x78] sm:$0xff] %vm1159, %v1158
          %v1176 = vld [vmem:[#allocation2] sm:$0xff]
          %v1177 = vld [vmem:[#allocation2 + $0x10] sm:$0xff]
          %v1178 = vld [vmem:[#allocation2 + $0x20] sm:$0xff]
          %v1179 = vld [vmem:[#allocation2 + $0x30] sm:$0xff]
          %v1180 = vld [vmem:[#allocation2 + $0x40] sm:$0xff]
          %v1181 = vld [vmem:[#allocation2 + $0x50] sm:$0xff]
          %v1182 = vld [vmem:[#allocation2 + $0x60] sm:$0xff]
          %v1183 = vld [vmem:[#allocation2 + $0x70] sm:$0xff]
          %v1184 = vld [vmem:[#allocation2 + $0x80] sm:$0xff]
          %v1185 = vld [vmem:[#allocation2 + $0x90] sm:$0xff]
          %v1186 = vld [vmem:[#allocation2 + $0xa0] sm:$0xff]
          %v1187 = vld [vmem:[#allocation2 + $0xb0] sm:$0xff]
          %v1188 = vld [vmem:[#allocation2 + $0xc0] sm:$0xff]
          %v1189 = vld [vmem:[#allocation2 + $0xd0] sm:$0xff]
          %v1190 = vld [vmem:[#allocation2 + $0xe0] sm:$0xff]
          %v1191 = vld [vmem:[#allocation2 + $0xf0] sm:$0xff]
          %1193 = vset.pattern.permute.xlu0 0
          %1194 = vperm.xlu0 %1193, %v920
          %v1195 = vpop.permute.xlu0 %1194
          %1198 = vset.pattern.permute.xlu0 0
          %1199 = vperm.xlu0 %1198, %v922
          %v1200 = vpop.permute.xlu0 %1199
          %1203 = vset.pattern.permute.xlu0 0
          %1204 = vperm.xlu0 %1203, %v924
          %v1205 = vpop.permute.xlu0 %1204
          %1208 = vset.pattern.permute.xlu0 0
          %1209 = vperm.xlu0 %1208, %v926
          %v1210 = vpop.permute.xlu0 %1209
          %1213 = vset.pattern.permute.xlu0 0
          %1214 = vperm.xlu0 %1213, %v928
          %v1215 = vpop.permute.xlu0 %1214
          %1218 = vset.pattern.permute.xlu0 0
          %1219 = vperm.xlu0 %1218, %v930
          %v1220 = vpop.permute.xlu0 %1219
          %1223 = vset.pattern.permute.xlu0 0
          %1224 = vperm.xlu0 %1223, %v932
          %v1225 = vpop.permute.xlu0 %1224
          %1228 = vset.pattern.permute.xlu0 0
          %1229 = vperm.xlu0 %1228, %v934
          %v1230 = vpop.permute.xlu0 %1229
          %1233 = vset.pattern.permute.xlu0 0
          %1234 = vperm.xlu0 %1233, %v936
          %v1235 = vpop.permute.xlu0 %1234
          %1238 = vset.pattern.permute.xlu0 0
          %1239 = vperm.xlu0 %1238, %v938
          %v1240 = vpop.permute.xlu0 %1239
          %1243 = vset.pattern.permute.xlu0 0
          %1244 = vperm.xlu0 %1243, %v940
          %v1245 = vpop.permute.xlu0 %1244
          %1248 = vset.pattern.permute.xlu0 0
          %1249 = vperm.xlu0 %1248, %v942
          %v1250 = vpop.permute.xlu0 %1249
          %1253 = vset.pattern.permute.xlu0 0
          %1254 = vperm.xlu0 %1253, %v944
          %v1255 = vpop.permute.xlu0 %1254
          %1258 = vset.pattern.permute.xlu0 0
          %1259 = vperm.xlu0 %1258, %v946
          %v1260 = vpop.permute.xlu0 %1259
          %1263 = vset.pattern.permute.xlu0 0
          %1264 = vperm.xlu0 %1263, %v948
          %v1265 = vpop.permute.xlu0 %1264
          %1268 = vset.pattern.permute.xlu0 0
          %1269 = vperm.xlu0 %1268, %v950
          %v1270 = vpop.permute.xlu0 %1269
          %v1272 = vmul.f32 %v1195, %v1176
          %v1273 = vmul.f32 %v1200, %v1177
          %v1274 = vmul.f32 %v1205, %v1178
          %v1275 = vmul.f32 %v1210, %v1179
          %v1276 = vmul.f32 %v1215, %v1180
          %v1277 = vmul.f32 %v1220, %v1181
          %v1278 = vmul.f32 %v1225, %v1182
          %v1279 = vmul.f32 %v1230, %v1183
          %v1280 = vmul.f32 %v1235, %v1184
          %v1281 = vmul.f32 %v1240, %v1185
          %v1282 = vmul.f32 %v1245, %v1186
          %v1283 = vmul.f32 %v1250, %v1187
          %v1284 = vmul.f32 %v1255, %v1188
          %v1285 = vmul.f32 %v1260, %v1189
          %v1286 = vmul.f32 %v1265, %v1190
          %v1287 = vmul.f32 %v1270, %v1191
          %v1288 = vpack.c.bf16 %v1050, %v1048
          %v1289 = vpack.c.bf16 %v1054, %v1052
          %v1290 = vpack.c.bf16 %v1058, %v1056
          %v1291 = vpack.c.bf16 %v1062, %v1060
          %v1292 = vpack.c.bf16 %v1066, %v1064
          %v1293 = vpack.c.bf16 %v1070, %v1068
          %v1294 = vpack.c.bf16 %v1074, %v1072
          %v1295 = vpack.c.bf16 %v1078, %v1076
          %v1312 = vunpack.c.l.b16 %v558
          %v1313 = vunpack.c.l.b16 %v559
          %v1314 = vunpack.c.l.b16 %v560
          %v1315 = vunpack.c.l.b16 %v561
          %v1316 = vunpack.c.l.b16 %v562
          %v1317 = vunpack.c.l.b16 %v563
          %v1318 = vunpack.c.l.b16 %v564
          %v1319 = vunpack.c.l.b16 %v565
          %v1320 = vunpack.c.l.b16 %v566
          %v1321 = vunpack.c.l.b16 %v567
          %v1322 = vunpack.c.l.b16 %v568
          %v1323 = vunpack.c.l.b16 %v569
          %v1324 = vunpack.c.l.b16 %v570
          %v1325 = vunpack.c.l.b16 %v571
          %v1326 = vunpack.c.l.b16 %v572
          %v1327 = vunpack.c.l.b16 %v573
          %v1328 = vpack.c.b16 %v1313, %v1312
          %v1329 = vpack.c.b16 %v1315, %v1314
          %v1330 = vpack.c.b16 %v1317, %v1316
          %v1331 = vpack.c.b16 %v1319, %v1318
          %v1332 = vpack.c.b16 %v1321, %v1320
          %v1333 = vpack.c.b16 %v1323, %v1322
          %v1334 = vpack.c.b16 %v1325, %v1324
          %v1335 = vpack.c.b16 %v1327, %v1326
          %1344 = vmatprep.subr.bf16.mxu0 0
          %1345 = vmatpush1.bf16.msra.mxu0 %v1328
          %1346 = vmatprep.subr.bf16.mxu0 0
          %1347 = vmatpush1.bf16.msra.mxu0 %v1329
          %1348 = vmatprep.subr.bf16.mxu0 0
          %1349 = vmatpush1.bf16.msra.mxu0 %v1330
          %1350 = vmatprep.subr.bf16.mxu0 0
          %1351 = vmatpush1.bf16.msra.mxu0 %v1331
          %1352 = vmatprep.subr.bf16.mxu0 0
          %1353 = vmatpush1.bf16.msra.mxu0 %v1332
          %1354 = vmatprep.subr.bf16.mxu0 0
          %1355 = vmatpush1.bf16.msra.mxu0 %v1333
          %1356 = vmatprep.subr.bf16.mxu0 0
          %1357 = vmatpush1.bf16.msra.mxu0 %v1334
          %1358 = vmatprep.subr.bf16.mxu0 0
          %1359 = vmatpush1.bf16.msra.mxu0 %v1335
          %1360 = vmatprep.subr.bf16.mxu0 0
          %1361 = vmatpush1.bf16.msra.mxu0 0
          %1362 = vmatprep.subr.bf16.mxu0 0
          %1363 = vmatpush1.bf16.msra.mxu0 0
          %1364 = vmatprep.subr.bf16.mxu0 0
          %1365 = vmatpush1.bf16.msra.mxu0 0
          %1366 = vmatprep.subr.bf16.mxu0 0
          %1367 = vmatpush1.bf16.msra.mxu0 0
          %1368 = vmatprep.subr.bf16.mxu0 0
          %1369 = vmatpush1.bf16.msra.mxu0 0
          %1370 = vmatprep.subr.bf16.mxu0 0
          %1371 = vmatpush1.bf16.msra.mxu0 0
          %1372 = vmatprep.subr.bf16.mxu0 0
          %1373 = vmatpush1.bf16.msra.mxu0 0
          %1374 = vmatprep.subr.bf16.mxu0 0
          %1375 = vmatpush1.bf16.msra.mxu0 0
          %1376 = vmatprep.mubr.bf16.mxu0 0
          %1377 = vmatmul.mubr.bf16.gmra.mrb[0].mxu0 %v1288
          %v1378 = vpop.f32.mrb[0].mxu0
          %v1379 = vadd.f32 0.0, %v1378
          %v1380 = vpop.f32.mrb[0].mxu0
          %v1381 = vpop.f32.mrb[0].mxu0
          %v1382 = vadd.f32 0.0, %v1381
          %v1383 = vpop.f32.mrb[0].mxu0
          %1384 = vmatprep.mubr.bf16.mxu0 0
          %1385 = vmatmul.mubr.bf16.gmra.mrb[0].mxu0 %v1289
          %v1386 = vpop.f32.mrb[0].mxu0
          %v1387 = vadd.f32 0.0, %v1386
          %v1388 = vpop.f32.mrb[0].mxu0
          %v1389 = vpop.f32.mrb[0].mxu0
          %v1390 = vadd.f32 0.0, %v1389
          %v1391 = vpop.f32.mrb[0].mxu0
          %1392 = vmatprep.mubr.bf16.mxu0 0
          %1393 = vmatmul.mubr.bf16.gmra.mrb[0].mxu0 %v1290
          %v1394 = vpop.f32.mrb[0].mxu0
          %v1395 = vadd.f32 0.0, %v1394
          %v1396 = vpop.f32.mrb[0].mxu0
          %v1397 = vpop.f32.mrb[0].mxu0
          %v1398 = vadd.f32 0.0, %v1397
          %v1399 = vpop.f32.mrb[0].mxu0
          %1400 = vmatprep.mubr.bf16.mxu0 0
          %1401 = vmatmul.mubr.bf16.gmra.mrb[0].mxu0 %v1291
          %v1402 = vpop.f32.mrb[0].mxu0
          %v1403 = vadd.f32 0.0, %v1402
          %v1404 = vpop.f32.mrb[0].mxu0
          %v1405 = vpop.f32.mrb[0].mxu0
          %v1406 = vadd.f32 0.0, %v1405
          %v1407 = vpop.f32.mrb[0].mxu0
          %1408 = vmatprep.mubr.bf16.mxu0 0
          %1409 = vmatmul.mubr.bf16.gmra.mrb[0].mxu0 %v1292
          %v1410 = vpop.f32.mrb[0].mxu0
          %v1411 = vadd.f32 0.0, %v1410
          %v1412 = vpop.f32.mrb[0].mxu0
          %v1413 = vpop.f32.mrb[0].mxu0
          %v1414 = vadd.f32 0.0, %v1413
          %v1415 = vpop.f32.mrb[0].mxu0
          %1416 = vmatprep.mubr.bf16.mxu0 0
          %1417 = vmatmul.mubr.bf16.gmra.mrb[0].mxu0 %v1293
          %v1418 = vpop.f32.mrb[0].mxu0
          %v1419 = vadd.f32 0.0, %v1418
          %v1420 = vpop.f32.mrb[0].mxu0
          %v1421 = vpop.f32.mrb[0].mxu0
          %v1422 = vadd.f32 0.0, %v1421
          %v1423 = vpop.f32.mrb[0].mxu0
          %1424 = vmatprep.mubr.bf16.mxu0 0
          %1425 = vmatmul.mubr.bf16.gmra.mrb[0].mxu0 %v1294
          %v1426 = vpop.f32.mrb[0].mxu0
          %v1427 = vadd.f32 0.0, %v1426
          %v1428 = vpop.f32.mrb[0].mxu0
          %v1429 = vpop.f32.mrb[0].mxu0
          %v1430 = vadd.f32 0.0, %v1429
          %v1431 = vpop.f32.mrb[0].mxu0
          %1432 = vmatprep.mubr.bf16.mxu0 0
          %1433 = vmatmul.mubr.bf16.gmra.mrb[0].mxu0 %v1295
          %v1434 = vpop.f32.mrb[0].mxu0
          %v1435 = vadd.f32 0.0, %v1434
          %v1436 = vpop.f32.mrb[0].mxu0
          %v1437 = vpop.f32.mrb[0].mxu0
          %v1438 = vadd.f32 0.0, %v1437
          %v1439 = vpop.f32.mrb[0].mxu0
          %1440 = vdwg.mxu0
          %v1441 = vadd.f32 %v1272, %v1379
          %v1442 = vadd.f32 %v1273, %v1382
          %v1443 = vadd.f32 %v1274, %v1387
          %v1444 = vadd.f32 %v1275, %v1390
          %v1445 = vadd.f32 %v1276, %v1395
          %v1446 = vadd.f32 %v1277, %v1398
          %v1447 = vadd.f32 %v1278, %v1403
          %v1448 = vadd.f32 %v1279, %v1406
          %v1449 = vadd.f32 %v1280, %v1411
          %v1450 = vadd.f32 %v1281, %v1414
          %v1451 = vadd.f32 %v1282, %v1419
          %v1452 = vadd.f32 %v1283, %v1422
          %v1453 = vadd.f32 %v1284, %v1427
          %v1454 = vadd.f32 %v1285, %v1430
          %v1455 = vadd.f32 %v1286, %v1435
          %v1456 = vadd.f32 %v1287, %v1438
          %1457 = vst [vmem:[#allocation2] sm:$0xff] %v1441
          %1458 = vst [vmem:[#allocation2 + $0x10] sm:$0xff] %v1442
          %1459 = vst [vmem:[#allocation2 + $0x20] sm:$0xff] %v1443
          %1460 = vst [vmem:[#allocation2 + $0x30] sm:$0xff] %v1444
          %1461 = vst [vmem:[#allocation2 + $0x40] sm:$0xff] %v1445
          %1462 = vst [vmem:[#allocation2 + $0x50] sm:$0xff] %v1446
          %1463 = vst [vmem:[#allocation2 + $0x60] sm:$0xff] %v1447
          %1464 = vst [vmem:[#allocation2 + $0x70] sm:$0xff] %v1448
          %1465 = vst [vmem:[#allocation2 + $0x80] sm:$0xff] %v1449
          %1466 = vst [vmem:[#allocation2 + $0x90] sm:$0xff] %v1450
          %1467 = vst [vmem:[#allocation2 + $0xa0] sm:$0xff] %v1451
          %1468 = vst [vmem:[#allocation2 + $0xb0] sm:$0xff] %v1452
          %1469 = vst [vmem:[#allocation2 + $0xc0] sm:$0xff] %v1453
          %1470 = vst [vmem:[#allocation2 + $0xd0] sm:$0xff] %v1454
          %1471 = vst [vmem:[#allocation2 + $0xe0] sm:$0xff] %v1455
          %1472 = vst [vmem:[#allocation2 + $0xf0] sm:$0xff] %v1456
          %1473 = vst.msk [vmem:[#allocation3] sm:$0xff] %vm1159, %v887
          %1474 = vst.msk [vmem:[#allocation3 + $0x8] sm:$0xff] %vm1159, %v888
          %1475 = vst.msk [vmem:[#allocation3 + $0x10] sm:$0xff] %vm1159, %v889
          %1476 = vst.msk [vmem:[#allocation3 + $0x18] sm:$0xff] %vm1159, %v890
          %1477 = vst.msk [vmem:[#allocation3 + $0x20] sm:$0xff] %vm1159, %v891
          %1478 = vst.msk [vmem:[#allocation3 + $0x28] sm:$0xff] %vm1159, %v892
          %1479 = vst.msk [vmem:[#allocation3 + $0x30] sm:$0xff] %vm1159, %v893
          %1480 = vst.msk [vmem:[#allocation3 + $0x38] sm:$0xff] %vm1159, %v894
          %1481 = vst.msk [vmem:[#allocation3 + $0x40] sm:$0xff] %vm1159, %v895
          %1482 = vst.msk [vmem:[#allocation3 + $0x48] sm:$0xff] %vm1159, %v896
          %1483 = vst.msk [vmem:[#allocation3 + $0x50] sm:$0xff] %vm1159, %v897
          %1484 = vst.msk [vmem:[#allocation3 + $0x58] sm:$0xff] %vm1159, %v898
          %1485 = vst.msk [vmem:[#allocation3 + $0x60] sm:$0xff] %vm1159, %v899
          %1486 = vst.msk [vmem:[#allocation3 + $0x68] sm:$0xff] %vm1159, %v900
          %1487 = vst.msk [vmem:[#allocation3 + $0x70] sm:$0xff] %vm1159, %v901
          %1488 = vst.msk [vmem:[#allocation3 + $0x78] sm:$0xff] %vm1159, %v902
          %v1489 = vunpack.c.h.b16 %v526
          %v1490 = vunpack.c.h.b16 %v527
          %v1491 = vunpack.c.h.b16 %v528
          %v1492 = vunpack.c.h.b16 %v529
          %v1493 = vunpack.c.h.b16 %v530
          %v1494 = vunpack.c.h.b16 %v531
          %v1495 = vunpack.c.h.b16 %v532
          %v1496 = vunpack.c.h.b16 %v533
          %v1497 = vunpack.c.h.b16 %v534
          %v1498 = vunpack.c.h.b16 %v535
          %v1499 = vunpack.c.h.b16 %v536
          %v1500 = vunpack.c.h.b16 %v537
          %v1501 = vunpack.c.h.b16 %v538
          %v1502 = vunpack.c.h.b16 %v539
          %v1503 = vunpack.c.h.b16 %v540
          %v1504 = vunpack.c.h.b16 %v541
          %v1505 = vpack.c.b16 %v1490, %v1489
          %v1506 = vpack.c.b16 %v1492, %v1491
          %v1507 = vpack.c.b16 %v1494, %v1493
          %v1508 = vpack.c.b16 %v1496, %v1495
          %v1509 = vpack.c.b16 %v1498, %v1497
          %v1510 = vpack.c.b16 %v1500, %v1499
          %v1511 = vpack.c.b16 %v1502, %v1501
          %v1512 = vpack.c.b16 %v1504, %v1503
          %v1521 = vunpack.c.h.b16 %v542
          %v1522 = vunpack.c.h.b16 %v543
          %v1523 = vunpack.c.h.b16 %v544
          %v1524 = vunpack.c.h.b16 %v545
          %v1525 = vunpack.c.h.b16 %v546
          %v1526 = vunpack.c.h.b16 %v547
          %v1527 = vunpack.c.h.b16 %v548
          %v1528 = vunpack.c.h.b16 %v549
          %v1529 = vunpack.c.h.b16 %v550
          %v1530 = vunpack.c.h.b16 %v551
          %v1531 = vunpack.c.h.b16 %v552
          %v1532 = vunpack.c.h.b16 %v553
          %v1533 = vunpack.c.h.b16 %v554
          %v1534 = vunpack.c.h.b16 %v555
          %v1535 = vunpack.c.h.b16 %v556
          %v1536 = vunpack.c.h.b16 %v557
          %v1537 = vpack.c.b16 %v1522, %v1521
          %v1538 = vpack.c.b16 %v1524, %v1523
          %v1539 = vpack.c.b16 %v1526, %v1525
          %v1540 = vpack.c.b16 %v1528, %v1527
          %v1541 = vpack.c.b16 %v1530, %v1529
          %v1542 = vpack.c.b16 %v1532, %v1531
          %v1543 = vpack.c.b16 %v1534, %v1533
          %v1544 = vpack.c.b16 %v1536, %v1535
          %1553 = vmatprep.subr.bf16.mxu0 0
          %1554 = vmatpush1.bf16.xpose.msra.mxu0 %v1537
          %1555 = vmatprep.subr.bf16.mxu0 0
          %1556 = vmatpush1.bf16.xpose.msra.mxu0 %v1538
          %1557 = vmatprep.subr.bf16.mxu0 0
          %1558 = vmatpush1.bf16.xpose.msra.mxu0 %v1539
          %1559 = vmatprep.subr.bf16.mxu0 0
          %1560 = vmatpush1.bf16.xpose.msra.mxu0 %v1540
          %1561 = vmatprep.subr.bf16.mxu0 0
          %1562 = vmatpush1.bf16.xpose.msra.mxu0 %v1541
          %1563 = vmatprep.subr.bf16.mxu0 0
          %1564 = vmatpush1.bf16.xpose.msra.mxu0 %v1542
          %1565 = vmatprep.subr.bf16.mxu0 0
          %1566 = vmatpush1.bf16.xpose.msra.mxu0 %v1543
          %1567 = vmatprep.subr.bf16.mxu0 0
          %1568 = vmatpush1.bf16.xpose.msra.mxu0 %v1544
          %1569 = vmatprep.subr.bf16.mxu0 0
          %1570 = vmatpush1.bf16.xpose.msra.mxu0 0
          %1571 = vmatprep.subr.bf16.mxu0 0
          %1572 = vmatpush1.bf16.xpose.msra.mxu0 0
          %1573 = vmatprep.subr.bf16.mxu0 0
          %1574 = vmatpush1.bf16.xpose.msra.mxu0 0
          %1575 = vmatprep.subr.bf16.mxu0 0
          %1576 = vmatpush1.bf16.xpose.msra.mxu0 0
          %1577 = vmatprep.subr.bf16.mxu0 0
          %1578 = vmatpush1.bf16.xpose.msra.mxu0 0
          %1579 = vmatprep.subr.bf16.mxu0 0
          %1580 = vmatpush1.bf16.xpose.msra.mxu0 0
          %1581 = vmatprep.subr.bf16.mxu0 0
          %1582 = vmatpush1.bf16.xpose.msra.mxu0 0
          %1583 = vmatprep.subr.bf16.mxu0 0
          %1584 = vmatpush1.bf16.xpose.msra.mxu0 0
          %1585 = vmatprep.mubr.bf16.mxu0 0
          %1586 = vmatmul.mubr.bf16.gmra.mrb[0].mxu0 %v1505
          %v1587 = vpop.f32.mrb[0].mxu0
          %v1588 = vadd.f32 0.0, %v1587
          %v1589 = vpop.f32.mrb[0].mxu0
          %v1590 = vpop.f32.mrb[0].mxu0
          %v1591 = vadd.f32 0.0, %v1590
          %v1592 = vpop.f32.mrb[0].mxu0
          %1593 = vmatprep.mubr.bf16.mxu0 0
          %1594 = vmatmul.mubr.bf16.gmra.mrb[0].mxu0 %v1506
          %v1595 = vpop.f32.mrb[0].mxu0
          %v1596 = vadd.f32 0.0, %v1595
          %v1597 = vpop.f32.mrb[0].mxu0
          %v1598 = vpop.f32.mrb[0].mxu0
          %v1599 = vadd.f32 0.0, %v1598
          %v1600 = vpop.f32.mrb[0].mxu0
          %1601 = vmatprep.mubr.bf16.mxu0 0
          %1602 = vmatmul.mubr.bf16.gmra.mrb[0].mxu0 %v1507
          %v1603 = vpop.f32.mrb[0].mxu0
          %v1604 = vadd.f32 0.0, %v1603
          %v1605 = vpop.f32.mrb[0].mxu0
          %v1606 = vpop.f32.mrb[0].mxu0
          %v1607 = vadd.f32 0.0, %v1606
          %v1608 = vpop.f32.mrb[0].mxu0
          %1609 = vmatprep.mubr.bf16.mxu0 0
          %1610 = vmatmul.mubr.bf16.gmra.mrb[0].mxu0 %v1508
          %v1611 = vpop.f32.mrb[0].mxu0
          %v1612 = vadd.f32 0.0, %v1611
          %v1613 = vpop.f32.mrb[0].mxu0
          %v1614 = vpop.f32.mrb[0].mxu0
          %v1615 = vadd.f32 0.0, %v1614
          %v1616 = vpop.f32.mrb[0].mxu0
          %1617 = vmatprep.mubr.bf16.mxu0 0
          %1618 = vmatmul.mubr.bf16.gmra.mrb[0].mxu0 %v1509
          %v1619 = vpop.f32.mrb[0].mxu0
          %v1620 = vadd.f32 0.0, %v1619
          %v1621 = vpop.f32.mrb[0].mxu0
          %v1622 = vpop.f32.mrb[0].mxu0
          %v1623 = vadd.f32 0.0, %v1622
          %v1624 = vpop.f32.mrb[0].mxu0
          %1625 = vmatprep.mubr.bf16.mxu0 0
          %1626 = vmatmul.mubr.bf16.gmra.mrb[0].mxu0 %v1510
          %v1627 = vpop.f32.mrb[0].mxu0
          %v1628 = vadd.f32 0.0, %v1627
          %v1629 = vpop.f32.mrb[0].mxu0
          %v1630 = vpop.f32.mrb[0].mxu0
          %v1631 = vadd.f32 0.0, %v1630
          %v1632 = vpop.f32.mrb[0].mxu0
          %1633 = vmatprep.mubr.bf16.mxu0 0
          %1634 = vmatmul.mubr.bf16.gmra.mrb[0].mxu0 %v1511
          %v1635 = vpop.f32.mrb[0].mxu0
          %v1636 = vadd.f32 0.0, %v1635
          %v1637 = vpop.f32.mrb[0].mxu0
          %v1638 = vpop.f32.mrb[0].mxu0
          %v1639 = vadd.f32 0.0, %v1638
          %v1640 = vpop.f32.mrb[0].mxu0
          %1641 = vmatprep.mubr.bf16.mxu0 0
          %1642 = vmatmul.mubr.bf16.gmra.mrb[0].mxu0 %v1512
          %v1643 = vpop.f32.mrb[0].mxu0
          %v1644 = vadd.f32 0.0, %v1643
          %v1645 = vpop.f32.mrb[0].mxu0
          %v1646 = vpop.f32.mrb[0].mxu0
          %v1647 = vadd.f32 0.0, %v1646
          %v1648 = vpop.f32.mrb[0].mxu0
          %1649 = vdwg.mxu0
          %v1650 = vsel %vm614, %v1588, -1e+30
          %v1651 = vsel %vm615, %v1591, -1e+30
          %v1652 = vsel %vm616, %v1596, -1e+30
          %v1653 = vsel %vm617, %v1599, -1e+30
          %v1654 = vsel %vm618, %v1604, -1e+30
          %v1655 = vsel %vm619, %v1607, -1e+30
          %v1656 = vsel %vm620, %v1612, -1e+30
          %v1657 = vsel %vm621, %v1615, -1e+30
          %v1658 = vsel %vm622, %v1620, -1e+30
          %v1659 = vsel %vm623, %v1623, -1e+30
          %v1660 = vsel %vm624, %v1628, -1e+30
          %v1661 = vsel %vm625, %v1631, -1e+30
          %v1662 = vsel %vm626, %v1636, -1e+30
          %v1663 = vsel %vm627, %v1639, -1e+30
          %v1664 = vsel %vm628, %v1644, -1e+30
          %v1665 = vsel %vm629, %v1647, -1e+30
          %s1666 = scalar_lea.vmem [#allocation3], 128
          %v1667 = vld [vmem:[%s1666] sm:$0xff]
          %v1668 = vld [vmem:[%s1666 + $0x8] sm:$0xff]
          %v1669 = vld [vmem:[%s1666 + $0x10] sm:$0xff]
          %v1670 = vld [vmem:[%s1666 + $0x18] sm:$0xff]
          %v1671 = vld [vmem:[%s1666 + $0x20] sm:$0xff]
          %v1672 = vld [vmem:[%s1666 + $0x28] sm:$0xff]
          %v1673 = vld [vmem:[%s1666 + $0x30] sm:$0xff]
          %v1674 = vld [vmem:[%s1666 + $0x38] sm:$0xff]
          %v1675 = vld [vmem:[%s1666 + $0x40] sm:$0xff]
          %v1676 = vld [vmem:[%s1666 + $0x48] sm:$0xff]
          %v1677 = vld [vmem:[%s1666 + $0x50] sm:$0xff]
          %v1678 = vld [vmem:[%s1666 + $0x58] sm:$0xff]
          %v1679 = vld [vmem:[%s1666 + $0x60] sm:$0xff]
          %v1680 = vld [vmem:[%s1666 + $0x68] sm:$0xff]
          %v1681 = vld [vmem:[%s1666 + $0x70] sm:$0xff]
          %v1682 = vld [vmem:[%s1666 + $0x78] sm:$0xff]
          %1683 = vmax.xlane.f32.xlu0 %v1650
          %v1684 = vpop.xlane.xlu0 %1683
          %1685 = vmax.xlane.f32.xlu0 %v1651
          %v1686 = vpop.xlane.xlu0 %1685
          %1687 = vmax.xlane.f32.xlu0 %v1652
          %v1688 = vpop.xlane.xlu0 %1687
          %1689 = vmax.xlane.f32.xlu0 %v1653
          %v1690 = vpop.xlane.xlu0 %1689
          %1691 = vmax.xlane.f32.xlu0 %v1654
          %v1692 = vpop.xlane.xlu0 %1691
          %1693 = vmax.xlane.f32.xlu0 %v1655
          %v1694 = vpop.xlane.xlu0 %1693
          %1695 = vmax.xlane.f32.xlu0 %v1656
          %v1696 = vpop.xlane.xlu0 %1695
          %1697 = vmax.xlane.f32.xlu0 %v1657
          %v1698 = vpop.xlane.xlu0 %1697
          %1699 = vmax.xlane.f32.xlu0 %v1658
          %v1700 = vpop.xlane.xlu0 %1699
          %1701 = vmax.xlane.f32.xlu0 %v1659
          %v1702 = vpop.xlane.xlu0 %1701
          %1703 = vmax.xlane.f32.xlu0 %v1660
          %v1704 = vpop.xlane.xlu0 %1703
          %1705 = vmax.xlane.f32.xlu0 %v1661
          %v1706 = vpop.xlane.xlu0 %1705
          %1707 = vmax.xlane.f32.xlu0 %v1662
          %v1708 = vpop.xlane.xlu0 %1707
          %1709 = vmax.xlane.f32.xlu0 %v1663
          %v1710 = vpop.xlane.xlu0 %1709
          %1711 = vmax.xlane.f32.xlu0 %v1664
          %v1712 = vpop.xlane.xlu0 %1711
          %1713 = vmax.xlane.f32.xlu0 %v1665
          %v1714 = vpop.xlane.xlu0 %1713
          %v1715 = vmax.f32 %v1667, %v1684
          %v1716 = vmax.f32 %v1668, %v1686
          %v1717 = vmax.f32 %v1669, %v1688
          %v1718 = vmax.f32 %v1670, %v1690
          %v1719 = vmax.f32 %v1671, %v1692
          %v1720 = vmax.f32 %v1672, %v1694
          %v1721 = vmax.f32 %v1673, %v1696
          %v1722 = vmax.f32 %v1674, %v1698
          %v1723 = vmax.f32 %v1675, %v1700
          %v1724 = vmax.f32 %v1676, %v1702
          %v1725 = vmax.f32 %v1677, %v1704
          %v1726 = vmax.f32 %v1678, %v1706
          %v1727 = vmax.f32 %v1679, %v1708
          %v1728 = vmax.f32 %v1680, %v1710
          %v1729 = vmax.f32 %v1681, %v1712
          %v1730 = vmax.f32 %v1682, %v1714
          %v1731 = vsub.f32 %v1667, %v1715
          %v1732 = vsub.f32 %v1668, %v1716
          %v1733 = vsub.f32 %v1669, %v1717
          %v1734 = vsub.f32 %v1670, %v1718
          %v1735 = vsub.f32 %v1671, %v1719
          %v1736 = vsub.f32 %v1672, %v1720
          %v1737 = vsub.f32 %v1673, %v1721
          %v1738 = vsub.f32 %v1674, %v1722
          %v1739 = vsub.f32 %v1675, %v1723
          %v1740 = vsub.f32 %v1676, %v1724
          %v1741 = vsub.f32 %v1677, %v1725
          %v1742 = vsub.f32 %v1678, %v1726
          %v1743 = vsub.f32 %v1679, %v1727
          %v1744 = vsub.f32 %v1680, %v1728
          %v1745 = vsub.f32 %v1681, %v1729
          %v1746 = vsub.f32 %v1682, %v1730
          %v1747 = vmul.f32 %v1731, 1.442695
          %v1748 = vpow.pop %v1747
          %v1749 = vmul.f32 %v1732, 1.442695
          %v1750 = vpow.pop %v1749
          %v1751 = vmul.f32 %v1733, 1.442695
          %v1752 = vpow.pop %v1751
          %v1753 = vmul.f32 %v1734, 1.442695
          %v1754 = vpow.pop %v1753
          %v1755 = vmul.f32 %v1735, 1.442695
          %v1756 = vpow.pop %v1755
          %v1757 = vmul.f32 %v1736, 1.442695
          %v1758 = vpow.pop %v1757
          %v1759 = vmul.f32 %v1737, 1.442695
          %v1760 = vpow.pop %v1759
          %v1761 = vmul.f32 %v1738, 1.442695
          %v1762 = vpow.pop %v1761
          %v1763 = vmul.f32 %v1739, 1.442695
          %v1764 = vpow.pop %v1763
          %v1765 = vmul.f32 %v1740, 1.442695
          %v1766 = vpow.pop %v1765
          %v1767 = vmul.f32 %v1741, 1.442695
          %v1768 = vpow.pop %v1767
          %v1769 = vmul.f32 %v1742, 1.442695
          %v1770 = vpow.pop %v1769
          %v1771 = vmul.f32 %v1743, 1.442695
          %v1772 = vpow.pop %v1771
          %v1773 = vmul.f32 %v1744, 1.442695
          %v1774 = vpow.pop %v1773
          %v1775 = vmul.f32 %v1745, 1.442695
          %v1776 = vpow.pop %v1775
          %v1777 = vmul.f32 %v1746, 1.442695
          %v1778 = vpow.pop %v1777
          %1780 = vset.pattern.permute.xlu0 0
          %1781 = vperm.xlu0 %1780, %v1715
          %v1782 = vpop.permute.xlu0 %1781
          %1785 = vset.pattern.permute.xlu0 0
          %1786 = vperm.xlu0 %1785, %v1716
          %v1787 = vpop.permute.xlu0 %1786
          %1790 = vset.pattern.permute.xlu0 0
          %1791 = vperm.xlu0 %1790, %v1717
          %v1792 = vpop.permute.xlu0 %1791
          %1795 = vset.pattern.permute.xlu0 0
          %1796 = vperm.xlu0 %1795, %v1718
          %v1797 = vpop.permute.xlu0 %1796
          %1800 = vset.pattern.permute.xlu0 0
          %1801 = vperm.xlu0 %1800, %v1719
          %v1802 = vpop.permute.xlu0 %1801
          %1805 = vset.pattern.permute.xlu0 0
          %1806 = vperm.xlu0 %1805, %v1720
          %v1807 = vpop.permute.xlu0 %1806
          %1810 = vset.pattern.permute.xlu0 0
          %1811 = vperm.xlu0 %1810, %v1721
          %v1812 = vpop.permute.xlu0 %1811
          %1815 = vset.pattern.permute.xlu0 0
          %1816 = vperm.xlu0 %1815, %v1722
          %v1817 = vpop.permute.xlu0 %1816
          %1820 = vset.pattern.permute.xlu0 0
          %1821 = vperm.xlu0 %1820, %v1723
          %v1822 = vpop.permute.xlu0 %1821
          %1825 = vset.pattern.permute.xlu0 0
          %1826 = vperm.xlu0 %1825, %v1724
          %v1827 = vpop.permute.xlu0 %1826
          %1830 = vset.pattern.permute.xlu0 0
          %1831 = vperm.xlu0 %1830, %v1725
          %v1832 = vpop.permute.xlu0 %1831
          %1835 = vset.pattern.permute.xlu0 0
          %1836 = vperm.xlu0 %1835, %v1726
          %v1837 = vpop.permute.xlu0 %1836
          %1840 = vset.pattern.permute.xlu0 0
          %1841 = vperm.xlu0 %1840, %v1727
          %v1842 = vpop.permute.xlu0 %1841
          %1845 = vset.pattern.permute.xlu0 0
          %1846 = vperm.xlu0 %1845, %v1728
          %v1847 = vpop.permute.xlu0 %1846
          %1850 = vset.pattern.permute.xlu0 0
          %1851 = vperm.xlu0 %1850, %v1729
          %v1852 = vpop.permute.xlu0 %1851
          %1855 = vset.pattern.permute.xlu0 0
          %1856 = vperm.xlu0 %1855, %v1730
          %v1857 = vpop.permute.xlu0 %1856
          %v1859 = vsub.f32 %v1650, %v1782
          %v1860 = vsub.f32 %v1651, %v1787
          %v1861 = vsub.f32 %v1652, %v1792
          %v1862 = vsub.f32 %v1653, %v1797
          %v1863 = vsub.f32 %v1654, %v1802
          %v1864 = vsub.f32 %v1655, %v1807
          %v1865 = vsub.f32 %v1656, %v1812
          %v1866 = vsub.f32 %v1657, %v1817
          %v1867 = vsub.f32 %v1658, %v1822
          %v1868 = vsub.f32 %v1659, %v1827
          %v1869 = vsub.f32 %v1660, %v1832
          %v1870 = vsub.f32 %v1661, %v1837
          %v1871 = vsub.f32 %v1662, %v1842
          %v1872 = vsub.f32 %v1663, %v1847
          %v1873 = vsub.f32 %v1664, %v1852
          %v1874 = vsub.f32 %v1665, %v1857
          %v1875 = vmul.f32 %v1859, 1.442695
          %v1876 = vpow.pop %v1875
          %v1877 = vmul.f32 %v1860, 1.442695
          %v1878 = vpow.pop %v1877
          %v1879 = vmul.f32 %v1861, 1.442695
          %v1880 = vpow.pop %v1879
          %v1881 = vmul.f32 %v1862, 1.442695
          %v1882 = vpow.pop %v1881
          %v1883 = vmul.f32 %v1863, 1.442695
          %v1884 = vpow.pop %v1883
          %v1885 = vmul.f32 %v1864, 1.442695
          %v1886 = vpow.pop %v1885
          %v1887 = vmul.f32 %v1865, 1.442695
          %v1888 = vpow.pop %v1887
          %v1889 = vmul.f32 %v1866, 1.442695
          %v1890 = vpow.pop %v1889
          %v1891 = vmul.f32 %v1867, 1.442695
          %v1892 = vpow.pop %v1891
          %v1893 = vmul.f32 %v1868, 1.442695
          %v1894 = vpow.pop %v1893
          %v1895 = vmul.f32 %v1869, 1.442695
          %v1896 = vpow.pop %v1895
          %v1897 = vmul.f32 %v1870, 1.442695
          %v1898 = vpow.pop %v1897
          %v1899 = vmul.f32 %v1871, 1.442695
          %v1900 = vpow.pop %v1899
          %v1901 = vmul.f32 %v1872, 1.442695
          %v1902 = vpow.pop %v1901
          %v1903 = vmul.f32 %v1873, 1.442695
          %v1904 = vpow.pop %v1903
          %v1905 = vmul.f32 %v1874, 1.442695
          %v1906 = vpow.pop %v1905
          %s1907 = scalar_lea.vmem [#allocation4], 128
          %v1908 = vld [vmem:[%s1907] sm:$0xff]
          %v1909 = vld [vmem:[%s1907 + $0x8] sm:$0xff]
          %v1910 = vld [vmem:[%s1907 + $0x10] sm:$0xff]
          %v1911 = vld [vmem:[%s1907 + $0x18] sm:$0xff]
          %v1912 = vld [vmem:[%s1907 + $0x20] sm:$0xff]
          %v1913 = vld [vmem:[%s1907 + $0x28] sm:$0xff]
          %v1914 = vld [vmem:[%s1907 + $0x30] sm:$0xff]
          %v1915 = vld [vmem:[%s1907 + $0x38] sm:$0xff]
          %v1916 = vld [vmem:[%s1907 + $0x40] sm:$0xff]
          %v1917 = vld [vmem:[%s1907 + $0x48] sm:$0xff]
          %v1918 = vld [vmem:[%s1907 + $0x50] sm:$0xff]
          %v1919 = vld [vmem:[%s1907 + $0x58] sm:$0xff]
          %v1920 = vld [vmem:[%s1907 + $0x60] sm:$0xff]
          %v1921 = vld [vmem:[%s1907 + $0x68] sm:$0xff]
          %v1922 = vld [vmem:[%s1907 + $0x70] sm:$0xff]
          %v1923 = vld [vmem:[%s1907 + $0x78] sm:$0xff]
          %v1924 = vmul.f32 %v1748, %v1908
          %v1925 = vmul.f32 %v1750, %v1909
          %v1926 = vmul.f32 %v1752, %v1910
          %v1927 = vmul.f32 %v1754, %v1911
          %v1928 = vmul.f32 %v1756, %v1912
          %v1929 = vmul.f32 %v1758, %v1913
          %v1930 = vmul.f32 %v1760, %v1914
          %v1931 = vmul.f32 %v1762, %v1915
          %v1932 = vmul.f32 %v1764, %v1916
          %v1933 = vmul.f32 %v1766, %v1917
          %v1934 = vmul.f32 %v1768, %v1918
          %v1935 = vmul.f32 %v1770, %v1919
          %v1936 = vmul.f32 %v1772, %v1920
          %v1937 = vmul.f32 %v1774, %v1921
          %v1938 = vmul.f32 %v1776, %v1922
          %v1939 = vmul.f32 %v1778, %v1923
          %1940 = vadd.xlane.f32.xlu0 %v1876
          %v1941 = vpop.xlane.xlu0 %1940
          %1942 = vadd.xlane.f32.xlu0 %v1878
          %v1943 = vpop.xlane.xlu0 %1942
          %1944 = vadd.xlane.f32.xlu0 %v1880
          %v1945 = vpop.xlane.xlu0 %1944
          %1946 = vadd.xlane.f32.xlu0 %v1882
          %v1947 = vpop.xlane.xlu0 %1946
          %1948 = vadd.xlane.f32.xlu0 %v1884
          %v1949 = vpop.xlane.xlu0 %1948
          %1950 = vadd.xlane.f32.xlu0 %v1886
          %v1951 = vpop.xlane.xlu0 %1950
          %1952 = vadd.xlane.f32.xlu0 %v1888
          %v1953 = vpop.xlane.xlu0 %1952
          %1954 = vadd.xlane.f32.xlu0 %v1890
          %v1955 = vpop.xlane.xlu0 %1954
          %1956 = vadd.xlane.f32.xlu0 %v1892
          %v1957 = vpop.xlane.xlu0 %1956
          %1958 = vadd.xlane.f32.xlu0 %v1894
          %v1959 = vpop.xlane.xlu0 %1958
          %1960 = vadd.xlane.f32.xlu0 %v1896
          %v1961 = vpop.xlane.xlu0 %1960
          %1962 = vadd.xlane.f32.xlu0 %v1898
          %v1963 = vpop.xlane.xlu0 %1962
          %1964 = vadd.xlane.f32.xlu0 %v1900
          %v1965 = vpop.xlane.xlu0 %1964
          %1966 = vadd.xlane.f32.xlu0 %v1902
          %v1967 = vpop.xlane.xlu0 %1966
          %1968 = vadd.xlane.f32.xlu0 %v1904
          %v1969 = vpop.xlane.xlu0 %1968
          %1970 = vadd.xlane.f32.xlu0 %v1906
          %v1971 = vpop.xlane.xlu0 %1970
          %v1972 = vadd.f32 %v1924, %v1941
          %v1973 = vadd.f32 %v1925, %v1943
          %v1974 = vadd.f32 %v1926, %v1945
          %v1975 = vadd.f32 %v1927, %v1947
          %v1976 = vadd.f32 %v1928, %v1949
          %v1977 = vadd.f32 %v1929, %v1951
          %v1978 = vadd.f32 %v1930, %v1953
          %v1979 = vadd.f32 %v1931, %v1955
          %v1980 = vadd.f32 %v1932, %v1957
          %v1981 = vadd.f32 %v1933, %v1959
          %v1982 = vadd.f32 %v1934, %v1961
          %v1983 = vadd.f32 %v1935, %v1963
          %v1984 = vadd.f32 %v1936, %v1965
          %v1985 = vadd.f32 %v1937, %v1967
          %v1986 = vadd.f32 %v1938, %v1969
          %v1987 = vadd.f32 %v1939, %v1971
          %1988 = vst.msk [vmem:[%s1907] sm:$0xff] %vm1159, %v1972
          %1989 = vst.msk [vmem:[%s1907 + $0x8] sm:$0xff] %vm1159, %v1973
          %1990 = vst.msk [vmem:[%s1907 + $0x10] sm:$0xff] %vm1159, %v1974
          %1991 = vst.msk [vmem:[%s1907 + $0x18] sm:$0xff] %vm1159, %v1975
          %1992 = vst.msk [vmem:[%s1907 + $0x20] sm:$0xff] %vm1159, %v1976
          %1993 = vst.msk [vmem:[%s1907 + $0x28] sm:$0xff] %vm1159, %v1977
          %1994 = vst.msk [vmem:[%s1907 + $0x30] sm:$0xff] %vm1159, %v1978
          %1995 = vst.msk [vmem:[%s1907 + $0x38] sm:$0xff] %vm1159, %v1979
          %1996 = vst.msk [vmem:[%s1907 + $0x40] sm:$0xff] %vm1159, %v1980
          %1997 = vst.msk [vmem:[%s1907 + $0x48] sm:$0xff] %vm1159, %v1981
          %1998 = vst.msk [vmem:[%s1907 + $0x50] sm:$0xff] %vm1159, %v1982
          %1999 = vst.msk [vmem:[%s1907 + $0x58] sm:$0xff] %vm1159, %v1983
          %2000 = vst.msk [vmem:[%s1907 + $0x60] sm:$0xff] %vm1159, %v1984
          %2001 = vst.msk [vmem:[%s1907 + $0x68] sm:$0xff] %vm1159, %v1985
          %2002 = vst.msk [vmem:[%s1907 + $0x70] sm:$0xff] %vm1159, %v1986
          %2003 = vst.msk [vmem:[%s1907 + $0x78] sm:$0xff] %vm1159, %v1987
          %v2004 = vld [vmem:[#allocation2 + $0x8] sm:$0xff]
          %v2005 = vld [vmem:[#allocation2 + $0x18] sm:$0xff]
          %v2006 = vld [vmem:[#allocation2 + $0x28] sm:$0xff]
          %v2007 = vld [vmem:[#allocation2 + $0x38] sm:$0xff]
          %v2008 = vld [vmem:[#allocation2 + $0x48] sm:$0xff]
          %v2009 = vld [vmem:[#allocation2 + $0x58] sm:$0xff]
          %v2010 = vld [vmem:[#allocation2 + $0x68] sm:$0xff]
          %v2011 = vld [vmem:[#allocation2 + $0x78] sm:$0xff]
          %v2012 = vld [vmem:[#allocation2 + $0x88] sm:$0xff]
          %v2013 = vld [vmem:[#allocation2 + $0x98] sm:$0xff]
          %v2014 = vld [vmem:[#allocation2 + $0xa8] sm:$0xff]
          %v2015 = vld [vmem:[#allocation2 + $0xb8] sm:$0xff]
          %v2016 = vld [vmem:[#allocation2 + $0xc8] sm:$0xff]
          %v2017 = vld [vmem:[#allocation2 + $0xd8] sm:$0xff]
          %v2018 = vld [vmem:[#allocation2 + $0xe8] sm:$0xff]
          %v2019 = vld [vmem:[#allocation2 + $0xf8] sm:$0xff]
          %2021 = vset.pattern.permute.xlu0 0
          %2022 = vperm.xlu0 %2021, %v1748
          %v2023 = vpop.permute.xlu0 %2022
          %2026 = vset.pattern.permute.xlu0 0
          %2027 = vperm.xlu0 %2026, %v1750
          %v2028 = vpop.permute.xlu0 %2027
          %2031 = vset.pattern.permute.xlu0 0
          %2032 = vperm.xlu0 %2031, %v1752
          %v2033 = vpop.permute.xlu0 %2032
          %2036 = vset.pattern.permute.xlu0 0
          %2037 = vperm.xlu0 %2036, %v1754
          %v2038 = vpop.permute.xlu0 %2037
          %2041 = vset.pattern.permute.xlu0 0
          %2042 = vperm.xlu0 %2041, %v1756
          %v2043 = vpop.permute.xlu0 %2042
          %2046 = vset.pattern.permute.xlu0 0
          %2047 = vperm.xlu0 %2046, %v1758
          %v2048 = vpop.permute.xlu0 %2047
          %2051 = vset.pattern.permute.xlu0 0
          %2052 = vperm.xlu0 %2051, %v1760
          %v2053 = vpop.permute.xlu0 %2052
          %2056 = vset.pattern.permute.xlu0 0
          %2057 = vperm.xlu0 %2056, %v1762
          %v2058 = vpop.permute.xlu0 %2057
          %2061 = vset.pattern.permute.xlu0 0
          %2062 = vperm.xlu0 %2061, %v1764
          %v2063 = vpop.permute.xlu0 %2062
          %2066 = vset.pattern.permute.xlu0 0
          %2067 = vperm.xlu0 %2066, %v1766
          %v2068 = vpop.permute.xlu0 %2067
          %2071 = vset.pattern.permute.xlu0 0
          %2072 = vperm.xlu0 %2071, %v1768
          %v2073 = vpop.permute.xlu0 %2072
          %2076 = vset.pattern.permute.xlu0 0
          %2077 = vperm.xlu0 %2076, %v1770
          %v2078 = vpop.permute.xlu0 %2077
          %2081 = vset.pattern.permute.xlu0 0
          %2082 = vperm.xlu0 %2081, %v1772
          %v2083 = vpop.permute.xlu0 %2082
          %2086 = vset.pattern.permute.xlu0 0
          %2087 = vperm.xlu0 %2086, %v1774
          %v2088 = vpop.permute.xlu0 %2087
          %2091 = vset.pattern.permute.xlu0 0
          %2092 = vperm.xlu0 %2091, %v1776
          %v2093 = vpop.permute.xlu0 %2092
          %2096 = vset.pattern.permute.xlu0 0
          %2097 = vperm.xlu0 %2096, %v1778
          %v2098 = vpop.permute.xlu0 %2097
          %v2100 = vmul.f32 %v2023, %v2004
          %v2101 = vmul.f32 %v2028, %v2005
          %v2102 = vmul.f32 %v2033, %v2006
          %v2103 = vmul.f32 %v2038, %v2007
          %v2104 = vmul.f32 %v2043, %v2008
          %v2105 = vmul.f32 %v2048, %v2009
          %v2106 = vmul.f32 %v2053, %v2010
          %v2107 = vmul.f32 %v2058, %v2011
          %v2108 = vmul.f32 %v2063, %v2012
          %v2109 = vmul.f32 %v2068, %v2013
          %v2110 = vmul.f32 %v2073, %v2014
          %v2111 = vmul.f32 %v2078, %v2015
          %v2112 = vmul.f32 %v2083, %v2016
          %v2113 = vmul.f32 %v2088, %v2017
          %v2114 = vmul.f32 %v2093, %v2018
          %v2115 = vmul.f32 %v2098, %v2019
          %v2116 = vpack.c.bf16 %v1878, %v1876
          %v2117 = vpack.c.bf16 %v1882, %v1880
          %v2118 = vpack.c.bf16 %v1886, %v1884
          %v2119 = vpack.c.bf16 %v1890, %v1888
          %v2120 = vpack.c.bf16 %v1894, %v1892
          %v2121 = vpack.c.bf16 %v1898, %v1896
          %v2122 = vpack.c.bf16 %v1902, %v1900
          %v2123 = vpack.c.bf16 %v1906, %v1904
          %v2124 = vunpack.c.h.b16 %v558
          %v2125 = vunpack.c.h.b16 %v559
          %v2126 = vunpack.c.h.b16 %v560
          %v2127 = vunpack.c.h.b16 %v561
          %v2128 = vunpack.c.h.b16 %v562
          %v2129 = vunpack.c.h.b16 %v563
          %v2130 = vunpack.c.h.b16 %v564
          %v2131 = vunpack.c.h.b16 %v565
          %v2132 = vunpack.c.h.b16 %v566
          %v2133 = vunpack.c.h.b16 %v567
          %v2134 = vunpack.c.h.b16 %v568
          %v2135 = vunpack.c.h.b16 %v569
          %v2136 = vunpack.c.h.b16 %v570
          %v2137 = vunpack.c.h.b16 %v571
          %v2138 = vunpack.c.h.b16 %v572
          %v2139 = vunpack.c.h.b16 %v573
          %v2140 = vpack.c.b16 %v2125, %v2124
          %v2141 = vpack.c.b16 %v2127, %v2126
          %v2142 = vpack.c.b16 %v2129, %v2128
          %v2143 = vpack.c.b16 %v2131, %v2130
          %v2144 = vpack.c.b16 %v2133, %v2132
          %v2145 = vpack.c.b16 %v2135, %v2134
          %v2146 = vpack.c.b16 %v2137, %v2136
          %v2147 = vpack.c.b16 %v2139, %v2138
          %2156 = vmatprep.subr.bf16.mxu0 0
          %2157 = vmatpush1.bf16.msra.mxu0 %v2140
          %2158 = vmatprep.subr.bf16.mxu0 0
          %2159 = vmatpush1.bf16.msra.mxu0 %v2141
          %2160 = vmatprep.subr.bf16.mxu0 0
          %2161 = vmatpush1.bf16.msra.mxu0 %v2142
          %2162 = vmatprep.subr.bf16.mxu0 0
          %2163 = vmatpush1.bf16.msra.mxu0 %v2143
          %2164 = vmatprep.subr.bf16.mxu0 0
          %2165 = vmatpush1.bf16.msra.mxu0 %v2144
          %2166 = vmatprep.subr.bf16.mxu0 0
          %2167 = vmatpush1.bf16.msra.mxu0 %v2145
          %2168 = vmatprep.subr.bf16.mxu0 0
          %2169 = vmatpush1.bf16.msra.mxu0 %v2146
          %2170 = vmatprep.subr.bf16.mxu0 0
          %2171 = vmatpush1.bf16.msra.mxu0 %v2147
          %2172 = vmatprep.subr.bf16.mxu0 0
          %2173 = vmatpush1.bf16.msra.mxu0 0
          %2174 = vmatprep.subr.bf16.mxu0 0
          %2175 = vmatpush1.bf16.msra.mxu0 0
          %2176 = vmatprep.subr.bf16.mxu0 0
          %2177 = vmatpush1.bf16.msra.mxu0 0
          %2178 = vmatprep.subr.bf16.mxu0 0
          %2179 = vmatpush1.bf16.msra.mxu0 0
          %2180 = vmatprep.subr.bf16.mxu0 0
          %2181 = vmatpush1.bf16.msra.mxu0 0
          %2182 = vmatprep.subr.bf16.mxu0 0
          %2183 = vmatpush1.bf16.msra.mxu0 0
          %2184 = vmatprep.subr.bf16.mxu0 0
          %2185 = vmatpush1.bf16.msra.mxu0 0
          %2186 = vmatprep.subr.bf16.mxu0 0
          %2187 = vmatpush1.bf16.msra.mxu0 0
          %2188 = vmatprep.mubr.bf16.mxu0 0
          %2189 = vmatmul.mubr.bf16.gmra.mrb[0].mxu0 %v2116
          %v2190 = vpop.f32.mrb[0].mxu0
          %v2191 = vadd.f32 0.0, %v2190
          %v2192 = vpop.f32.mrb[0].mxu0
          %v2193 = vpop.f32.mrb[0].mxu0
          %v2194 = vadd.f32 0.0, %v2193
          %v2195 = vpop.f32.mrb[0].mxu0
          %2196 = vmatprep.mubr.bf16.mxu0 0
          %2197 = vmatmul.mubr.bf16.gmra.mrb[0].mxu0 %v2117
          %v2198 = vpop.f32.mrb[0].mxu0
          %v2199 = vadd.f32 0.0, %v2198
          %v2200 = vpop.f32.mrb[0].mxu0
          %v2201 = vpop.f32.mrb[0].mxu0
          %v2202 = vadd.f32 0.0, %v2201
          %v2203 = vpop.f32.mrb[0].mxu0
          %2204 = vmatprep.mubr.bf16.mxu0 0
          %2205 = vmatmul.mubr.bf16.gmra.mrb[0].mxu0 %v2118
          %v2206 = vpop.f32.mrb[0].mxu0
          %v2207 = vadd.f32 0.0, %v2206
          %v2208 = vpop.f32.mrb[0].mxu0
          %v2209 = vpop.f32.mrb[0].mxu0
          %v2210 = vadd.f32 0.0, %v2209
          %v2211 = vpop.f32.mrb[0].mxu0
          %2212 = vmatprep.mubr.bf16.mxu0 0
          %2213 = vmatmul.mubr.bf16.gmra.mrb[0].mxu0 %v2119
          %v2214 = vpop.f32.mrb[0].mxu0
          %v2215 = vadd.f32 0.0, %v2214
          %v2216 = vpop.f32.mrb[0].mxu0
          %v2217 = vpop.f32.mrb[0].mxu0
          %v2218 = vadd.f32 0.0, %v2217
          %v2219 = vpop.f32.mrb[0].mxu0
          %2220 = vmatprep.mubr.bf16.mxu0 0
          %2221 = vmatmul.mubr.bf16.gmra.mrb[0].mxu0 %v2120
          %v2222 = vpop.f32.mrb[0].mxu0
          %v2223 = vadd.f32 0.0, %v2222
          %v2224 = vpop.f32.mrb[0].mxu0
          %v2225 = vpop.f32.mrb[0].mxu0
          %v2226 = vadd.f32 0.0, %v2225
          %v2227 = vpop.f32.mrb[0].mxu0
          %2228 = vmatprep.mubr.bf16.mxu0 0
          %2229 = vmatmul.mubr.bf16.gmra.mrb[0].mxu0 %v2121
          %v2230 = vpop.f32.mrb[0].mxu0
          %v2231 = vadd.f32 0.0, %v2230
          %v2232 = vpop.f32.mrb[0].mxu0
          %v2233 = vpop.f32.mrb[0].mxu0
          %v2234 = vadd.f32 0.0, %v2233
          %v2235 = vpop.f32.mrb[0].mxu0
          %2236 = vmatprep.mubr.bf16.mxu0 0
          %2237 = vmatmul.mubr.bf16.gmra.mrb[0].mxu0 %v2122
          %v2238 = vpop.f32.mrb[0].mxu0
          %v2239 = vadd.f32 0.0, %v2238
          %v2240 = vpop.f32.mrb[0].mxu0
          %v2241 = vpop.f32.mrb[0].mxu0
          %v2242 = vadd.f32 0.0, %v2241
          %v2243 = vpop.f32.mrb[0].mxu0
          %2244 = vmatprep.mubr.bf16.mxu0 0
          %2245 = vmatmul.mubr.bf16.gmra.mrb[0].mxu0 %v2123
          %v2246 = vpop.f32.mrb[0].mxu0
          %v2247 = vadd.f32 0.0, %v2246
          %v2248 = vpop.f32.mrb[0].mxu0
          %v2249 = vpop.f32.mrb[0].mxu0
          %v2250 = vadd.f32 0.0, %v2249
          %v2251 = vpop.f32.mrb[0].mxu0
          %2252 = vdwg.mxu0
          %v2253 = vadd.f32 %v2100, %v2191
          %v2254 = vadd.f32 %v2101, %v2194
          %v2255 = vadd.f32 %v2102, %v2199
          %v2256 = vadd.f32 %v2103, %v2202
          %v2257 = vadd.f32 %v2104, %v2207
          %v2258 = vadd.f32 %v2105, %v2210
          %v2259 = vadd.f32 %v2106, %v2215
          %v2260 = vadd.f32 %v2107, %v2218
          %v2261 = vadd.f32 %v2108, %v2223
          %v2262 = vadd.f32 %v2109, %v2226
          %v2263 = vadd.f32 %v2110, %v2231
          %v2264 = vadd.f32 %v2111, %v2234
          %v2265 = vadd.f32 %v2112, %v2239
          %v2266 = vadd.f32 %v2113, %v2242
          %v2267 = vadd.f32 %v2114, %v2247
          %v2268 = vadd.f32 %v2115, %v2250
          %2269 = vst [vmem:[#allocation2 + $0x8] sm:$0xff] %v2253
          %2270 = vst [vmem:[#allocation2 + $0x18] sm:$0xff] %v2254
          %2271 = vst [vmem:[#allocation2 + $0x28] sm:$0xff] %v2255
          %2272 = vst [vmem:[#allocation2 + $0x38] sm:$0xff] %v2256
          %2273 = vst [vmem:[#allocation2 + $0x48] sm:$0xff] %v2257
          %2274 = vst [vmem:[#allocation2 + $0x58] sm:$0xff] %v2258
          %2275 = vst [vmem:[#allocation2 + $0x68] sm:$0xff] %v2259
          %2276 = vst [vmem:[#allocation2 + $0x78] sm:$0xff] %v2260
          %2277 = vst [vmem:[#allocation2 + $0x88] sm:$0xff] %v2261
          %2278 = vst [vmem:[#allocation2 + $0x98] sm:$0xff] %v2262
          %2279 = vst [vmem:[#allocation2 + $0xa8] sm:$0xff] %v2263
          %2280 = vst [vmem:[#allocation2 + $0xb8] sm:$0xff] %v2264
          %2281 = vst [vmem:[#allocation2 + $0xc8] sm:$0xff] %v2265
          %2282 = vst [vmem:[#allocation2 + $0xd8] sm:$0xff] %v2266
          %2283 = vst [vmem:[#allocation2 + $0xe8] sm:$0xff] %v2267
          %2284 = vst [vmem:[#allocation2 + $0xf8] sm:$0xff] %v2268
          %2285 = vst.msk [vmem:[%s1666] sm:$0xff] %vm1159, %v1715
          %2286 = vst.msk [vmem:[%s1666 + $0x8] sm:$0xff] %vm1159, %v1716
          %2287 = vst.msk [vmem:[%s1666 + $0x10] sm:$0xff] %vm1159, %v1717
          %2288 = vst.msk [vmem:[%s1666 + $0x18] sm:$0xff] %vm1159, %v1718
          %2289 = vst.msk [vmem:[%s1666 + $0x20] sm:$0xff] %vm1159, %v1719
          %2290 = vst.msk [vmem:[%s1666 + $0x28] sm:$0xff] %vm1159, %v1720
          %2291 = vst.msk [vmem:[%s1666 + $0x30] sm:$0xff] %vm1159, %v1721
          %2292 = vst.msk [vmem:[%s1666 + $0x38] sm:$0xff] %vm1159, %v1722
          %2293 = vst.msk [vmem:[%s1666 + $0x40] sm:$0xff] %vm1159, %v1723
          %2294 = vst.msk [vmem:[%s1666 + $0x48] sm:$0xff] %vm1159, %v1724
          %2295 = vst.msk [vmem:[%s1666 + $0x50] sm:$0xff] %vm1159, %v1725
          %2296 = vst.msk [vmem:[%s1666 + $0x58] sm:$0xff] %vm1159, %v1726
          %2297 = vst.msk [vmem:[%s1666 + $0x60] sm:$0xff] %vm1159, %v1727
          %2298 = vst.msk [vmem:[%s1666 + $0x68] sm:$0xff] %vm1159, %v1728
          %2299 = vst.msk [vmem:[%s1666 + $0x70] sm:$0xff] %vm1159, %v1729
          %2300 = vst.msk [vmem:[%s1666 + $0x78] sm:$0xff] %vm1159, %v1730
        $region68: #{attention_block.3} parent=39 // pred_fallthru
          _
        %p2301 = scmp.eq.s32.totalorder %s35, %s34
        // Predicated region
        $region69: #{attention_block.3} parent=39 // pred_check
          %p2302 = pneg %p2301
        $region70: #{attention_block.3} parent=39 // pred_check_branch
          %2304 = sbr.rel (%p2302) target = $region72
        $region71: #{attention_block.3} parent=39 // pred_region
          %v2305 = vld [vmem:[#allocation4] sm:$0xff]
          %v2306 = vld [vmem:[#allocation4 + $0x8] sm:$0xff]
          %v2307 = vld [vmem:[#allocation4 + $0x10] sm:$0xff]
          %v2308 = vld [vmem:[#allocation4 + $0x18] sm:$0xff]
          %v2309 = vld [vmem:[#allocation4 + $0x20] sm:$0xff]
          %v2310 = vld [vmem:[#allocation4 + $0x28] sm:$0xff]
          %v2311 = vld [vmem:[#allocation4 + $0x30] sm:$0xff]
          %v2312 = vld [vmem:[#allocation4 + $0x38] sm:$0xff]
          %v2313 = vld [vmem:[#allocation4 + $0x40] sm:$0xff]
          %v2314 = vld [vmem:[#allocation4 + $0x48] sm:$0xff]
          %v2315 = vld [vmem:[#allocation4 + $0x50] sm:$0xff]
          %v2316 = vld [vmem:[#allocation4 + $0x58] sm:$0xff]
          %v2317 = vld [vmem:[#allocation4 + $0x60] sm:$0xff]
          %v2318 = vld [vmem:[#allocation4 + $0x68] sm:$0xff]
          %v2319 = vld [vmem:[#allocation4 + $0x70] sm:$0xff]
          %v2320 = vld [vmem:[#allocation4 + $0x78] sm:$0xff]
          %v2321 = vrcp.pop %v2305
          %v2322 = vrcp.pop %v2306
          %v2323 = vrcp.pop %v2307
          %v2324 = vrcp.pop %v2308
          %v2325 = vrcp.pop %v2309
          %v2326 = vrcp.pop %v2310
          %v2327 = vrcp.pop %v2311
          %v2328 = vrcp.pop %v2312
          %v2329 = vrcp.pop %v2313
          %v2330 = vrcp.pop %v2314
          %v2331 = vrcp.pop %v2315
          %v2332 = vrcp.pop %v2316
          %v2333 = vrcp.pop %v2317
          %v2334 = vrcp.pop %v2318
          %v2335 = vrcp.pop %v2319
          %v2336 = vrcp.pop %v2320
          %v2337 = vld [vmem:[#allocation2] sm:$0xff]
          %v2338 = vld [vmem:[#allocation2 + $0x10] sm:$0xff]
          %v2339 = vld [vmem:[#allocation2 + $0x20] sm:$0xff]
          %v2340 = vld [vmem:[#allocation2 + $0x30] sm:$0xff]
          %v2341 = vld [vmem:[#allocation2 + $0x40] sm:$0xff]
          %v2342 = vld [vmem:[#allocation2 + $0x50] sm:$0xff]
          %v2343 = vld [vmem:[#allocation2 + $0x60] sm:$0xff]
          %v2344 = vld [vmem:[#allocation2 + $0x70] sm:$0xff]
          %v2345 = vld [vmem:[#allocation2 + $0x80] sm:$0xff]
          %v2346 = vld [vmem:[#allocation2 + $0x90] sm:$0xff]
          %v2347 = vld [vmem:[#allocation2 + $0xa0] sm:$0xff]
          %v2348 = vld [vmem:[#allocation2 + $0xb0] sm:$0xff]
          %v2349 = vld [vmem:[#allocation2 + $0xc0] sm:$0xff]
          %v2350 = vld [vmem:[#allocation2 + $0xd0] sm:$0xff]
          %v2351 = vld [vmem:[#allocation2 + $0xe0] sm:$0xff]
          %v2352 = vld [vmem:[#allocation2 + $0xf0] sm:$0xff]
          %2354 = vset.pattern.permute.xlu0 0
          %2355 = vperm.xlu0 %2354, %v2321
          %v2356 = vpop.permute.xlu0 %2355
          %2359 = vset.pattern.permute.xlu0 0
          %2360 = vperm.xlu0 %2359, %v2322
          %v2361 = vpop.permute.xlu0 %2360
          %2364 = vset.pattern.permute.xlu0 0
          %2365 = vperm.xlu0 %2364, %v2323
          %v2366 = vpop.permute.xlu0 %2365
          %2369 = vset.pattern.permute.xlu0 0
          %2370 = vperm.xlu0 %2369, %v2324
          %v2371 = vpop.permute.xlu0 %2370
          %2374 = vset.pattern.permute.xlu0 0
          %2375 = vperm.xlu0 %2374, %v2325
          %v2376 = vpop.permute.xlu0 %2375
          %2379 = vset.pattern.permute.xlu0 0
          %2380 = vperm.xlu0 %2379, %v2326
          %v2381 = vpop.permute.xlu0 %2380
          %2384 = vset.pattern.permute.xlu0 0
          %2385 = vperm.xlu0 %2384, %v2327
          %v2386 = vpop.permute.xlu0 %2385
          %2389 = vset.pattern.permute.xlu0 0
          %2390 = vperm.xlu0 %2389, %v2328
          %v2391 = vpop.permute.xlu0 %2390
          %2394 = vset.pattern.permute.xlu0 0
          %2395 = vperm.xlu0 %2394, %v2329
          %v2396 = vpop.permute.xlu0 %2395
          %2399 = vset.pattern.permute.xlu0 0
          %2400 = vperm.xlu0 %2399, %v2330
          %v2401 = vpop.permute.xlu0 %2400
          %2404 = vset.pattern.permute.xlu0 0
          %2405 = vperm.xlu0 %2404, %v2331
          %v2406 = vpop.permute.xlu0 %2405
          %2409 = vset.pattern.permute.xlu0 0
          %2410 = vperm.xlu0 %2409, %v2332
          %v2411 = vpop.permute.xlu0 %2410
          %2414 = vset.pattern.permute.xlu0 0
          %2415 = vperm.xlu0 %2414, %v2333
          %v2416 = vpop.permute.xlu0 %2415
          %2419 = vset.pattern.permute.xlu0 0
          %2420 = vperm.xlu0 %2419, %v2334
          %v2421 = vpop.permute.xlu0 %2420
          %2424 = vset.pattern.permute.xlu0 0
          %2425 = vperm.xlu0 %2424, %v2335
          %v2426 = vpop.permute.xlu0 %2425
          %2429 = vset.pattern.permute.xlu0 0
          %2430 = vperm.xlu0 %2429, %v2336
          %v2431 = vpop.permute.xlu0 %2430
          %v2433 = vmul.f32 %v2337, %v2356
          %v2434 = vmul.f32 %v2338, %v2361
          %v2435 = vmul.f32 %v2339, %v2366
          %v2436 = vmul.f32 %v2340, %v2371
          %v2437 = vmul.f32 %v2341, %v2376
          %v2438 = vmul.f32 %v2342, %v2381
          %v2439 = vmul.f32 %v2343, %v2386
          %v2440 = vmul.f32 %v2344, %v2391
          %v2441 = vmul.f32 %v2345, %v2396
          %v2442 = vmul.f32 %v2346, %v2401
          %v2443 = vmul.f32 %v2347, %v2406
          %v2444 = vmul.f32 %v2348, %v2411
          %v2445 = vmul.f32 %v2349, %v2416
          %v2446 = vmul.f32 %v2350, %v2421
          %v2447 = vmul.f32 %v2351, %v2426
          %v2448 = vmul.f32 %v2352, %v2431
          %2449 = vst [vmem:[#allocation2] sm:$0xff] %v2433
          %2450 = vst [vmem:[#allocation2 + $0x10] sm:$0xff] %v2434
          %2451 = vst [vmem:[#allocation2 + $0x20] sm:$0xff] %v2435
          %2452 = vst [vmem:[#allocation2 + $0x30] sm:$0xff] %v2436
          %2453 = vst [vmem:[#allocation2 + $0x40] sm:$0xff] %v2437
          %2454 = vst [vmem:[#allocation2 + $0x50] sm:$0xff] %v2438
          %2455 = vst [vmem:[#allocation2 + $0x60] sm:$0xff] %v2439
          %2456 = vst [vmem:[#allocation2 + $0x70] sm:$0xff] %v2440
          %2457 = vst [vmem:[#allocation2 + $0x80] sm:$0xff] %v2441
          %2458 = vst [vmem:[#allocation2 + $0x90] sm:$0xff] %v2442
          %2459 = vst [vmem:[#allocation2 + $0xa0] sm:$0xff] %v2443
          %2460 = vst [vmem:[#allocation2 + $0xb0] sm:$0xff] %v2444
          %2461 = vst [vmem:[#allocation2 + $0xc0] sm:$0xff] %v2445
          %2462 = vst [vmem:[#allocation2 + $0xd0] sm:$0xff] %v2446
          %2463 = vst [vmem:[#allocation2 + $0xe0] sm:$0xff] %v2447
          %2464 = vst [vmem:[#allocation2 + $0xf0] sm:$0xff] %v2448
          %s2465 = scalar_lea.vmem [#allocation4], 128
          %v2466 = vld [vmem:[%s2465] sm:$0xff]
          %v2467 = vld [vmem:[%s2465 + $0x8] sm:$0xff]
          %v2468 = vld [vmem:[%s2465 + $0x10] sm:$0xff]
          %v2469 = vld [vmem:[%s2465 + $0x18] sm:$0xff]
          %v2470 = vld [vmem:[%s2465 + $0x20] sm:$0xff]
          %v2471 = vld [vmem:[%s2465 + $0x28] sm:$0xff]
          %v2472 = vld [vmem:[%s2465 + $0x30] sm:$0xff]
          %v2473 = vld [vmem:[%s2465 + $0x38] sm:$0xff]
          %v2474 = vld [vmem:[%s2465 + $0x40] sm:$0xff]
          %v2475 = vld [vmem:[%s2465 + $0x48] sm:$0xff]
          %v2476 = vld [vmem:[%s2465 + $0x50] sm:$0xff]
          %v2477 = vld [vmem:[%s2465 + $0x58] sm:$0xff]
          %v2478 = vld [vmem:[%s2465 + $0x60] sm:$0xff]
          %v2479 = vld [vmem:[%s2465 + $0x68] sm:$0xff]
          %v2480 = vld [vmem:[%s2465 + $0x70] sm:$0xff]
          %v2481 = vld [vmem:[%s2465 + $0x78] sm:$0xff]
          %v2482 = vrcp.pop %v2466
          %v2483 = vrcp.pop %v2467
          %v2484 = vrcp.pop %v2468
          %v2485 = vrcp.pop %v2469
          %v2486 = vrcp.pop %v2470
          %v2487 = vrcp.pop %v2471
          %v2488 = vrcp.pop %v2472
          %v2489 = vrcp.pop %v2473
          %v2490 = vrcp.pop %v2474
          %v2491 = vrcp.pop %v2475
          %v2492 = vrcp.pop %v2476
          %v2493 = vrcp.pop %v2477
          %v2494 = vrcp.pop %v2478
          %v2495 = vrcp.pop %v2479
          %v2496 = vrcp.pop %v2480
          %v2497 = vrcp.pop %v2481
          %v2498 = vld [vmem:[#allocation2 + $0x8] sm:$0xff]
          %v2499 = vld [vmem:[#allocation2 + $0x18] sm:$0xff]
          %v2500 = vld [vmem:[#allocation2 + $0x28] sm:$0xff]
          %v2501 = vld [vmem:[#allocation2 + $0x38] sm:$0xff]
          %v2502 = vld [vmem:[#allocation2 + $0x48] sm:$0xff]
          %v2503 = vld [vmem:[#allocation2 + $0x58] sm:$0xff]
          %v2504 = vld [vmem:[#allocation2 + $0x68] sm:$0xff]
          %v2505 = vld [vmem:[#allocation2 + $0x78] sm:$0xff]
          %v2506 = vld [vmem:[#allocation2 + $0x88] sm:$0xff]
          %v2507 = vld [vmem:[#allocation2 + $0x98] sm:$0xff]
          %v2508 = vld [vmem:[#allocation2 + $0xa8] sm:$0xff]
          %v2509 = vld [vmem:[#allocation2 + $0xb8] sm:$0xff]
          %v2510 = vld [vmem:[#allocation2 + $0xc8] sm:$0xff]
          %v2511 = vld [vmem:[#allocation2 + $0xd8] sm:$0xff]
          %v2512 = vld [vmem:[#allocation2 + $0xe8] sm:$0xff]
          %v2513 = vld [vmem:[#allocation2 + $0xf8] sm:$0xff]
          %2515 = vset.pattern.permute.xlu0 0
          %2516 = vperm.xlu0 %2515, %v2482
          %v2517 = vpop.permute.xlu0 %2516
          %2520 = vset.pattern.permute.xlu0 0
          %2521 = vperm.xlu0 %2520, %v2483
          %v2522 = vpop.permute.xlu0 %2521
          %2525 = vset.pattern.permute.xlu0 0
          %2526 = vperm.xlu0 %2525, %v2484
          %v2527 = vpop.permute.xlu0 %2526
          %2530 = vset.pattern.permute.xlu0 0
          %2531 = vperm.xlu0 %2530, %v2485
          %v2532 = vpop.permute.xlu0 %2531
          %2535 = vset.pattern.permute.xlu0 0
          %2536 = vperm.xlu0 %2535, %v2486
          %v2537 = vpop.permute.xlu0 %2536
          %2540 = vset.pattern.permute.xlu0 0
          %2541 = vperm.xlu0 %2540, %v2487
          %v2542 = vpop.permute.xlu0 %2541
          %2545 = vset.pattern.permute.xlu0 0
          %2546 = vperm.xlu0 %2545, %v2488
          %v2547 = vpop.permute.xlu0 %2546
          %2550 = vset.pattern.permute.xlu0 0
          %2551 = vperm.xlu0 %2550, %v2489
          %v2552 = vpop.permute.xlu0 %2551
          %2555 = vset.pattern.permute.xlu0 0
          %2556 = vperm.xlu0 %2555, %v2490
          %v2557 = vpop.permute.xlu0 %2556
          %2560 = vset.pattern.permute.xlu0 0
          %2561 = vperm.xlu0 %2560, %v2491
          %v2562 = vpop.permute.xlu0 %2561
          %2565 = vset.pattern.permute.xlu0 0
          %2566 = vperm.xlu0 %2565, %v2492
          %v2567 = vpop.permute.xlu0 %2566
          %2570 = vset.pattern.permute.xlu0 0
          %2571 = vperm.xlu0 %2570, %v2493
          %v2572 = vpop.permute.xlu0 %2571
          %2575 = vset.pattern.permute.xlu0 0
          %2576 = vperm.xlu0 %2575, %v2494
          %v2577 = vpop.permute.xlu0 %2576
          %2580 = vset.pattern.permute.xlu0 0
          %2581 = vperm.xlu0 %2580, %v2495
          %v2582 = vpop.permute.xlu0 %2581
          %2585 = vset.pattern.permute.xlu0 0
          %2586 = vperm.xlu0 %2585, %v2496
          %v2587 = vpop.permute.xlu0 %2586
          %2590 = vset.pattern.permute.xlu0 0
          %2591 = vperm.xlu0 %2590, %v2497
          %v2592 = vpop.permute.xlu0 %2591
          %v2594 = vmul.f32 %v2498, %v2517
          %v2595 = vmul.f32 %v2499, %v2522
          %v2596 = vmul.f32 %v2500, %v2527
          %v2597 = vmul.f32 %v2501, %v2532
          %v2598 = vmul.f32 %v2502, %v2537
          %v2599 = vmul.f32 %v2503, %v2542
          %v2600 = vmul.f32 %v2504, %v2547
          %v2601 = vmul.f32 %v2505, %v2552
          %v2602 = vmul.f32 %v2506, %v2557
          %v2603 = vmul.f32 %v2507, %v2562
          %v2604 = vmul.f32 %v2508, %v2567
          %v2605 = vmul.f32 %v2509, %v2572
          %v2606 = vmul.f32 %v2510, %v2577
          %v2607 = vmul.f32 %v2511, %v2582
          %v2608 = vmul.f32 %v2512, %v2587
          %v2609 = vmul.f32 %v2513, %v2592
          %2610 = vst [vmem:[#allocation2 + $0x8] sm:$0xff] %v2594
          %2611 = vst [vmem:[#allocation2 + $0x18] sm:$0xff] %v2595
          %2612 = vst [vmem:[#allocation2 + $0x28] sm:$0xff] %v2596
          %2613 = vst [vmem:[#allocation2 + $0x38] sm:$0xff] %v2597
          %2614 = vst [vmem:[#allocation2 + $0x48] sm:$0xff] %v2598
          %2615 = vst [vmem:[#allocation2 + $0x58] sm:$0xff] %v2599
          %2616 = vst [vmem:[#allocation2 + $0x68] sm:$0xff] %v2600
          %2617 = vst [vmem:[#allocation2 + $0x78] sm:$0xff] %v2601
          %2618 = vst [vmem:[#allocation2 + $0x88] sm:$0xff] %v2602
          %2619 = vst [vmem:[#allocation2 + $0x98] sm:$0xff] %v2603
          %2620 = vst [vmem:[#allocation2 + $0xa8] sm:$0xff] %v2604
          %2621 = vst [vmem:[#allocation2 + $0xb8] sm:$0xff] %v2605
          %2622 = vst [vmem:[#allocation2 + $0xc8] sm:$0xff] %v2606
          %2623 = vst [vmem:[#allocation2 + $0xd8] sm:$0xff] %v2607
          %2624 = vst [vmem:[#allocation2 + $0xe8] sm:$0xff] %v2608
          %2625 = vst [vmem:[#allocation2 + $0xf8] sm:$0xff] %v2609
          %v2626 = vld [vmem:[#allocation2] sm:$0xff]
          %v2627 = vld [vmem:[#allocation2 + $0x8] sm:$0xff]
          %v2628 = vld [vmem:[#allocation2 + $0x10] sm:$0xff]
          %v2629 = vld [vmem:[#allocation2 + $0x18] sm:$0xff]
          %v2630 = vld [vmem:[#allocation2 + $0x20] sm:$0xff]
          %v2631 = vld [vmem:[#allocation2 + $0x28] sm:$0xff]
          %v2632 = vld [vmem:[#allocation2 + $0x30] sm:$0xff]
          %v2633 = vld [vmem:[#allocation2 + $0x38] sm:$0xff]
          %v2634 = vld [vmem:[#allocation2 + $0x40] sm:$0xff]
          %v2635 = vld [vmem:[#allocation2 + $0x48] sm:$0xff]
          %v2636 = vld [vmem:[#allocation2 + $0x50] sm:$0xff]
          %v2637 = vld [vmem:[#allocation2 + $0x58] sm:$0xff]
          %v2638 = vld [vmem:[#allocation2 + $0x60] sm:$0xff]
          %v2639 = vld [vmem:[#allocation2 + $0x68] sm:$0xff]
          %v2640 = vld [vmem:[#allocation2 + $0x70] sm:$0xff]
          %v2641 = vld [vmem:[#allocation2 + $0x78] sm:$0xff]
          %v2642 = vld [vmem:[#allocation2 + $0x80] sm:$0xff]
          %v2643 = vld [vmem:[#allocation2 + $0x88] sm:$0xff]
          %v2644 = vld [vmem:[#allocation2 + $0x90] sm:$0xff]
          %v2645 = vld [vmem:[#allocation2 + $0x98] sm:$0xff]
          %v2646 = vld [vmem:[#allocation2 + $0xa0] sm:$0xff]
          %v2647 = vld [vmem:[#allocation2 + $0xa8] sm:$0xff]
          %v2648 = vld [vmem:[#allocation2 + $0xb0] sm:$0xff]
          %v2649 = vld [vmem:[#allocation2 + $0xb8] sm:$0xff]
          %v2650 = vld [vmem:[#allocation2 + $0xc0] sm:$0xff]
          %v2651 = vld [vmem:[#allocation2 + $0xc8] sm:$0xff]
          %v2652 = vld [vmem:[#allocation2 + $0xd0] sm:$0xff]
          %v2653 = vld [vmem:[#allocation2 + $0xd8] sm:$0xff]
          %v2654 = vld [vmem:[#allocation2 + $0xe0] sm:$0xff]
          %v2655 = vld [vmem:[#allocation2 + $0xe8] sm:$0xff]
          %v2656 = vld [vmem:[#allocation2 + $0xf0] sm:$0xff]
          %v2657 = vld [vmem:[#allocation2 + $0xf8] sm:$0xff]
          %v2658 = vpack.c.bf16 %v2628, %v2626
          %v2659 = vpack.c.bf16 %v2629, %v2627
          %v2660 = vpack.c.bf16 %v2632, %v2630
          %v2661 = vpack.c.bf16 %v2633, %v2631
          %v2662 = vpack.c.bf16 %v2636, %v2634
          %v2663 = vpack.c.bf16 %v2637, %v2635
          %v2664 = vpack.c.bf16 %v2640, %v2638
          %v2665 = vpack.c.bf16 %v2641, %v2639
          %v2666 = vpack.c.bf16 %v2644, %v2642
          %v2667 = vpack.c.bf16 %v2645, %v2643
          %v2668 = vpack.c.bf16 %v2648, %v2646
          %v2669 = vpack.c.bf16 %v2649, %v2647
          %v2670 = vpack.c.bf16 %v2652, %v2650
          %v2671 = vpack.c.bf16 %v2653, %v2651
          %v2672 = vpack.c.bf16 %v2656, %v2654
          %v2673 = vpack.c.bf16 %v2657, %v2655
          %v2674 = vld [vmem:[#allocation13] sm:$0xff]
          %v2675 = vld [vmem:[#allocation13 + $0x8] sm:$0xff]
          %v2676 = vld [vmem:[#allocation13 + $0x10] sm:$0xff]
          %v2677 = vld [vmem:[#allocation13 + $0x18] sm:$0xff]
          %v2678 = vld [vmem:[#allocation13 + $0x20] sm:$0xff]
          %v2679 = vld [vmem:[#allocation13 + $0x28] sm:$0xff]
          %v2680 = vld [vmem:[#allocation13 + $0x30] sm:$0xff]
          %v2681 = vld [vmem:[#allocation13 + $0x38] sm:$0xff]
          %v2682 = vld [vmem:[#allocation13 + $0x40] sm:$0xff]
          %v2683 = vld [vmem:[#allocation13 + $0x48] sm:$0xff]
          %v2684 = vld [vmem:[#allocation13 + $0x50] sm:$0xff]
          %v2685 = vld [vmem:[#allocation13 + $0x58] sm:$0xff]
          %v2686 = vld [vmem:[#allocation13 + $0x60] sm:$0xff]
          %v2687 = vld [vmem:[#allocation13 + $0x68] sm:$0xff]
          %v2688 = vld [vmem:[#allocation13 + $0x70] sm:$0xff]
          %v2689 = vld [vmem:[#allocation13 + $0x78] sm:$0xff]
          %v2690 = vld [vmem:[#allocation13 + $0x80] sm:$0xff]
          %v2691 = vld [vmem:[#allocation13 + $0x88] sm:$0xff]
          %v2692 = vld [vmem:[#allocation13 + $0x90] sm:$0xff]
          %v2693 = vld [vmem:[#allocation13 + $0x98] sm:$0xff]
          %v2694 = vld [vmem:[#allocation13 + $0xa0] sm:$0xff]
          %v2695 = vld [vmem:[#allocation13 + $0xa8] sm:$0xff]
          %v2696 = vld [vmem:[#allocation13 + $0xb0] sm:$0xff]
          %v2697 = vld [vmem:[#allocation13 + $0xb8] sm:$0xff]
          %v2698 = vld [vmem:[#allocation13 + $0xc0] sm:$0xff]
          %v2699 = vld [vmem:[#allocation13 + $0xc8] sm:$0xff]
          %v2700 = vld [vmem:[#allocation13 + $0xd0] sm:$0xff]
          %v2701 = vld [vmem:[#allocation13 + $0xd8] sm:$0xff]
          %v2702 = vld [vmem:[#allocation13 + $0xe0] sm:$0xff]
          %v2703 = vld [vmem:[#allocation13 + $0xe8] sm:$0xff]
          %v2704 = vld [vmem:[#allocation13 + $0xf0] sm:$0xff]
          %v2705 = vld [vmem:[#allocation13 + $0xf8] sm:$0xff]
          %v2738 = vunpack.c.l.b16 %v2674
          %v2739 = vunpack.c.h.b16 %v2674
          %v2740 = vunpack.c.l.b16 %v2675
          %v2741 = vunpack.c.h.b16 %v2675
          %v2742 = vunpack.c.l.b16 %v2676
          %v2743 = vunpack.c.h.b16 %v2676
          %v2744 = vunpack.c.l.b16 %v2677
          %v2745 = vunpack.c.h.b16 %v2677
          %v2746 = vunpack.c.l.b16 %v2678
          %v2747 = vunpack.c.h.b16 %v2678
          %v2748 = vunpack.c.l.b16 %v2679
          %v2749 = vunpack.c.h.b16 %v2679
          %v2750 = vunpack.c.l.b16 %v2680
          %v2751 = vunpack.c.h.b16 %v2680
          %v2752 = vunpack.c.l.b16 %v2681
          %v2753 = vunpack.c.h.b16 %v2681
          %v2754 = vunpack.c.l.b16 %v2682
          %v2755 = vunpack.c.h.b16 %v2682
          %v2756 = vunpack.c.l.b16 %v2683
          %v2757 = vunpack.c.h.b16 %v2683
          %v2758 = vunpack.c.l.b16 %v2684
          %v2759 = vunpack.c.h.b16 %v2684
          %v2760 = vunpack.c.l.b16 %v2685
          %v2761 = vunpack.c.h.b16 %v2685
          %v2762 = vunpack.c.l.b16 %v2686
          %v2763 = vunpack.c.h.b16 %v2686
          %v2764 = vunpack.c.l.b16 %v2687
          %v2765 = vunpack.c.h.b16 %v2687
          %v2766 = vunpack.c.l.b16 %v2688
          %v2767 = vunpack.c.h.b16 %v2688
          %v2768 = vunpack.c.l.b16 %v2689
          %v2769 = vunpack.c.h.b16 %v2689
          %v2770 = vunpack.c.l.b16 %v2690
          %v2771 = vunpack.c.h.b16 %v2690
          %v2772 = vunpack.c.l.b16 %v2691
          %v2773 = vunpack.c.h.b16 %v2691
          %v2774 = vunpack.c.l.b16 %v2692
          %v2775 = vunpack.c.h.b16 %v2692
          %v2776 = vunpack.c.l.b16 %v2693
          %v2777 = vunpack.c.h.b16 %v2693
          %v2778 = vunpack.c.l.b16 %v2694
          %v2779 = vunpack.c.h.b16 %v2694
          %v2780 = vunpack.c.l.b16 %v2695
          %v2781 = vunpack.c.h.b16 %v2695
          %v2782 = vunpack.c.l.b16 %v2696
          %v2783 = vunpack.c.h.b16 %v2696
          %v2784 = vunpack.c.l.b16 %v2697
          %v2785 = vunpack.c.h.b16 %v2697
          %v2786 = vunpack.c.l.b16 %v2698
          %v2787 = vunpack.c.h.b16 %v2698
          %v2788 = vunpack.c.l.b16 %v2699
          %v2789 = vunpack.c.h.b16 %v2699
          %v2790 = vunpack.c.l.b16 %v2700
          %v2791 = vunpack.c.h.b16 %v2700
          %v2792 = vunpack.c.l.b16 %v2701
          %v2793 = vunpack.c.h.b16 %v2701
          %v2794 = vunpack.c.l.b16 %v2702
          %v2795 = vunpack.c.h.b16 %v2702
          %v2796 = vunpack.c.l.b16 %v2703
          %v2797 = vunpack.c.h.b16 %v2703
          %v2798 = vunpack.c.l.b16 %v2704
          %v2799 = vunpack.c.h.b16 %v2704
          %v2800 = vunpack.c.l.b16 %v2705
          %v2801 = vunpack.c.h.b16 %v2705
          %v2802 = vpack.c.b16 %v2740, %v2738
          %v2803 = vpack.c.b16 %v2741, %v2739
          %v2804 = vpack.c.b16 %v2744, %v2742
          %v2805 = vpack.c.b16 %v2745, %v2743
          %v2806 = vpack.c.b16 %v2748, %v2746
          %v2807 = vpack.c.b16 %v2749, %v2747
          %v2808 = vpack.c.b16 %v2752, %v2750
          %v2809 = vpack.c.b16 %v2753, %v2751
          %v2810 = vpack.c.b16 %v2756, %v2754
          %v2811 = vpack.c.b16 %v2757, %v2755
          %v2812 = vpack.c.b16 %v2760, %v2758
          %v2813 = vpack.c.b16 %v2761, %v2759
          %v2814 = vpack.c.b16 %v2764, %v2762
          %v2815 = vpack.c.b16 %v2765, %v2763
          %v2816 = vpack.c.b16 %v2768, %v2766
          %v2817 = vpack.c.b16 %v2769, %v2767
          %v2818 = vpack.c.b16 %v2772, %v2770
          %v2819 = vpack.c.b16 %v2773, %v2771
          %v2820 = vpack.c.b16 %v2776, %v2774
          %v2821 = vpack.c.b16 %v2777, %v2775
          %v2822 = vpack.c.b16 %v2780, %v2778
          %v2823 = vpack.c.b16 %v2781, %v2779
          %v2824 = vpack.c.b16 %v2784, %v2782
          %v2825 = vpack.c.b16 %v2785, %v2783
          %v2826 = vpack.c.b16 %v2788, %v2786
          %v2827 = vpack.c.b16 %v2789, %v2787
          %v2828 = vpack.c.b16 %v2792, %v2790
          %v2829 = vpack.c.b16 %v2793, %v2791
          %v2830 = vpack.c.b16 %v2796, %v2794
          %v2831 = vpack.c.b16 %v2797, %v2795
          %v2832 = vpack.c.b16 %v2800, %v2798
          %v2833 = vpack.c.b16 %v2801, %v2799
          %2866 = vmatprep.subr.bf16.mxu0 %v2803
          %2867 = vmatpush1.bf16.msra.mxu0 %v2802
          %2868 = vmatprep.subr.bf16.mxu0 %v2805
          %2869 = vmatpush1.bf16.msra.mxu0 %v2804
          %2870 = vmatprep.subr.bf16.mxu0 %v2807
          %2871 = vmatpush1.bf16.msra.mxu0 %v2806
          %2872 = vmatprep.subr.bf16.mxu0 %v2809
          %2873 = vmatpush1.bf16.msra.mxu0 %v2808
          %2874 = vmatprep.subr.bf16.mxu0 %v2811
          %2875 = vmatpush1.bf16.msra.mxu0 %v2810
          %2876 = vmatprep.subr.bf16.mxu0 %v2813
          %2877 = vmatpush1.bf16.msra.mxu0 %v2812
          %2878 = vmatprep.subr.bf16.mxu0 %v2815
          %2879 = vmatpush1.bf16.msra.mxu0 %v2814
          %2880 = vmatprep.subr.bf16.mxu0 %v2817
          %2881 = vmatpush1.bf16.msra.mxu0 %v2816
          %2882 = vmatprep.subr.bf16.mxu0 %v2819
          %2883 = vmatpush1.bf16.msra.mxu0 %v2818
          %2884 = vmatprep.subr.bf16.mxu0 %v2821
          %2885 = vmatpush1.bf16.msra.mxu0 %v2820
          %2886 = vmatprep.subr.bf16.mxu0 %v2823
          %2887 = vmatpush1.bf16.msra.mxu0 %v2822
          %2888 = vmatprep.subr.bf16.mxu0 %v2825
          %2889 = vmatpush1.bf16.msra.mxu0 %v2824
          %2890 = vmatprep.subr.bf16.mxu0 %v2827
          %2891 = vmatpush1.bf16.msra.mxu0 %v2826
          %2892 = vmatprep.subr.bf16.mxu0 %v2829
          %2893 = vmatpush1.bf16.msra.mxu0 %v2828
          %2894 = vmatprep.subr.bf16.mxu0 %v2831
          %2895 = vmatpush1.bf16.msra.mxu0 %v2830
          %2896 = vmatprep.subr.bf16.mxu0 %v2833
          %2897 = vmatpush1.bf16.msra.mxu0 %v2832
          %2898 = vmatprep.mubr.bf16.mxu0 %v2659
          %2899 = vmatmul.mubr.bf16.gmra.mrb[0].mxu0 %v2658
          %v2900 = vpop.f32.mrb[0].mxu0
          %v2901 = vadd.f32 0.0, %v2900
          %v2902 = vpop.f32.mrb[0].mxu0
          %v2903 = vadd.f32 0.0, %v2902
          %v2904 = vpop.f32.mrb[0].mxu0
          %v2905 = vadd.f32 0.0, %v2904
          %v2906 = vpop.f32.mrb[0].mxu0
          %v2907 = vadd.f32 0.0, %v2906
          %2908 = vmatprep.mubr.bf16.mxu0 %v2661
          %2909 = vmatmul.mubr.bf16.gmra.mrb[0].mxu0 %v2660
          %v2910 = vpop.f32.mrb[0].mxu0
          %v2911 = vadd.f32 0.0, %v2910
          %v2912 = vpop.f32.mrb[0].mxu0
          %v2913 = vadd.f32 0.0, %v2912
          %v2914 = vpop.f32.mrb[0].mxu0
          %v2915 = vadd.f32 0.0, %v2914
          %v2916 = vpop.f32.mrb[0].mxu0
          %v2917 = vadd.f32 0.0, %v2916
          %2918 = vmatprep.mubr.bf16.mxu0 %v2663
          %2919 = vmatmul.mubr.bf16.gmra.mrb[0].mxu0 %v2662
          %v2920 = vpop.f32.mrb[0].mxu0
          %v2921 = vadd.f32 0.0, %v2920
          %v2922 = vpop.f32.mrb[0].mxu0
          %v2923 = vadd.f32 0.0, %v2922
          %v2924 = vpop.f32.mrb[0].mxu0
          %v2925 = vadd.f32 0.0, %v2924
          %v2926 = vpop.f32.mrb[0].mxu0
          %v2927 = vadd.f32 0.0, %v2926
          %2928 = vmatprep.mubr.bf16.mxu0 %v2665
          %2929 = vmatmul.mubr.bf16.gmra.mrb[0].mxu0 %v2664
          %v2930 = vpop.f32.mrb[0].mxu0
          %v2931 = vadd.f32 0.0, %v2930
          %v2932 = vpop.f32.mrb[0].mxu0
          %v2933 = vadd.f32 0.0, %v2932
          %v2934 = vpop.f32.mrb[0].mxu0
          %v2935 = vadd.f32 0.0, %v2934
          %v2936 = vpop.f32.mrb[0].mxu0
          %v2937 = vadd.f32 0.0, %v2936
          %2938 = vmatprep.mubr.bf16.mxu0 %v2667
          %2939 = vmatmul.mubr.bf16.gmra.mrb[0].mxu0 %v2666
          %v2940 = vpop.f32.mrb[0].mxu0
          %v2941 = vadd.f32 0.0, %v2940
          %v2942 = vpop.f32.mrb[0].mxu0
          %v2943 = vadd.f32 0.0, %v2942
          %v2944 = vpop.f32.mrb[0].mxu0
          %v2945 = vadd.f32 0.0, %v2944
          %v2946 = vpop.f32.mrb[0].mxu0
          %v2947 = vadd.f32 0.0, %v2946
          %2948 = vmatprep.mubr.bf16.mxu0 %v2669
          %2949 = vmatmul.mubr.bf16.gmra.mrb[0].mxu0 %v2668
          %v2950 = vpop.f32.mrb[0].mxu0
          %v2951 = vadd.f32 0.0, %v2950
          %v2952 = vpop.f32.mrb[0].mxu0
          %v2953 = vadd.f32 0.0, %v2952
          %v2954 = vpop.f32.mrb[0].mxu0
          %v2955 = vadd.f32 0.0, %v2954
          %v2956 = vpop.f32.mrb[0].mxu0
          %v2957 = vadd.f32 0.0, %v2956
          %2958 = vmatprep.mubr.bf16.mxu0 %v2671
          %2959 = vmatmul.mubr.bf16.gmra.mrb[0].mxu0 %v2670
          %v2960 = vpop.f32.mrb[0].mxu0
          %v2961 = vadd.f32 0.0, %v2960
          %v2962 = vpop.f32.mrb[0].mxu0
          %v2963 = vadd.f32 0.0, %v2962
          %v2964 = vpop.f32.mrb[0].mxu0
          %v2965 = vadd.f32 0.0, %v2964
          %v2966 = vpop.f32.mrb[0].mxu0
          %v2967 = vadd.f32 0.0, %v2966
          %2968 = vmatprep.mubr.bf16.mxu0 %v2673
          %2969 = vmatmul.mubr.bf16.gmra.mrb[0].mxu0 %v2672
          %v2970 = vpop.f32.mrb[0].mxu0
          %v2971 = vadd.f32 0.0, %v2970
          %v2972 = vpop.f32.mrb[0].mxu0
          %v2973 = vadd.f32 0.0, %v2972
          %v2974 = vpop.f32.mrb[0].mxu0
          %v2975 = vadd.f32 0.0, %v2974
          %v2976 = vpop.f32.mrb[0].mxu0
          %v2977 = vadd.f32 0.0, %v2976
          %2978 = vdwg.mxu0
          %v2979 = vld [vmem:[%s342] sm:$0xff]
          %v2980 = vld [vmem:[%s342 + $0x8] sm:$0xff]
          %v2981 = vld [vmem:[%s342 + $0x10] sm:$0xff]
          %v2982 = vld [vmem:[%s342 + $0x18] sm:$0xff]
          %v2983 = vld [vmem:[%s342 + $0x20] sm:$0xff]
          %v2984 = vld [vmem:[%s342 + $0x28] sm:$0xff]
          %v2985 = vld [vmem:[%s342 + $0x30] sm:$0xff]
          %v2986 = vld [vmem:[%s342 + $0x38] sm:$0xff]
          %v2987 = vld [vmem:[%s342 + $0x40] sm:$0xff]
          %v2988 = vld [vmem:[%s342 + $0x48] sm:$0xff]
          %v2989 = vld [vmem:[%s342 + $0x50] sm:$0xff]
          %v2990 = vld [vmem:[%s342 + $0x58] sm:$0xff]
          %v2991 = vld [vmem:[%s342 + $0x60] sm:$0xff]
          %v2992 = vld [vmem:[%s342 + $0x68] sm:$0xff]
          %v2993 = vld [vmem:[%s342 + $0x70] sm:$0xff]
          %v2994 = vld [vmem:[%s342 + $0x78] sm:$0xff]
          %v2995 = vld [vmem:[%s342 + $0x80] sm:$0xff]
          %v2996 = vld [vmem:[%s342 + $0x88] sm:$0xff]
          %v2997 = vld [vmem:[%s342 + $0x90] sm:$0xff]
          %v2998 = vld [vmem:[%s342 + $0x98] sm:$0xff]
          %v2999 = vld [vmem:[%s342 + $0xa0] sm:$0xff]
          %v3000 = vld [vmem:[%s342 + $0xa8] sm:$0xff]
          %v3001 = vld [vmem:[%s342 + $0xb0] sm:$0xff]
          %v3002 = vld [vmem:[%s342 + $0xb8] sm:$0xff]
          %v3003 = vld [vmem:[%s342 + $0xc0] sm:$0xff]
          %v3004 = vld [vmem:[%s342 + $0xc8] sm:$0xff]
          %v3005 = vld [vmem:[%s342 + $0xd0] sm:$0xff]
          %v3006 = vld [vmem:[%s342 + $0xd8] sm:$0xff]
          %v3007 = vld [vmem:[%s342 + $0xe0] sm:$0xff]
          %v3008 = vld [vmem:[%s342 + $0xe8] sm:$0xff]
          %v3009 = vld [vmem:[%s342 + $0xf0] sm:$0xff]
          %v3010 = vld [vmem:[%s342 + $0xf8] sm:$0xff]
          %v3011 = vadd.f32 %v2979, %v2901
          %v3012 = vadd.f32 %v2980, %v2903
          %v3013 = vadd.f32 %v2981, %v2905
          %v3014 = vadd.f32 %v2982, %v2907
          %v3015 = vadd.f32 %v2983, %v2911
          %v3016 = vadd.f32 %v2984, %v2913
          %v3017 = vadd.f32 %v2985, %v2915
          %v3018 = vadd.f32 %v2986, %v2917
          %v3019 = vadd.f32 %v2987, %v2921
          %v3020 = vadd.f32 %v2988, %v2923
          %v3021 = vadd.f32 %v2989, %v2925
          %v3022 = vadd.f32 %v2990, %v2927
          %v3023 = vadd.f32 %v2991, %v2931
          %v3024 = vadd.f32 %v2992, %v2933
          %v3025 = vadd.f32 %v2993, %v2935
          %v3026 = vadd.f32 %v2994, %v2937
          %v3027 = vadd.f32 %v2995, %v2941
          %v3028 = vadd.f32 %v2996, %v2943
          %v3029 = vadd.f32 %v2997, %v2945
          %v3030 = vadd.f32 %v2998, %v2947
          %v3031 = vadd.f32 %v2999, %v2951
          %v3032 = vadd.f32 %v3000, %v2953
          %v3033 = vadd.f32 %v3001, %v2955
          %v3034 = vadd.f32 %v3002, %v2957
          %v3035 = vadd.f32 %v3003, %v2961
          %v3036 = vadd.f32 %v3004, %v2963
          %v3037 = vadd.f32 %v3005, %v2965
          %v3038 = vadd.f32 %v3006, %v2967
          %v3039 = vadd.f32 %v3007, %v2971
          %v3040 = vadd.f32 %v3008, %v2973
          %v3041 = vadd.f32 %v3009, %v2975
          %v3042 = vadd.f32 %v3010, %v2977
          %3043 = vst [vmem:[%s414] sm:$0xff] %v3011
          %3044 = vst [vmem:[%s414 + $0x8] sm:$0xff] %v3012
          %3045 = vst [vmem:[%s414 + $0x10] sm:$0xff] %v3013
          %3046 = vst [vmem:[%s414 + $0x18] sm:$0xff] %v3014
          %3047 = vst [vmem:[%s414 + $0x20] sm:$0xff] %v3015
          %3048 = vst [vmem:[%s414 + $0x28] sm:$0xff] %v3016
          %3049 = vst [vmem:[%s414 + $0x30] sm:$0xff] %v3017
          %3050 = vst [vmem:[%s414 + $0x38] sm:$0xff] %v3018
          %3051 = vst [vmem:[%s414 + $0x40] sm:$0xff] %v3019
          %3052 = vst [vmem:[%s414 + $0x48] sm:$0xff] %v3020
          %3053 = vst [vmem:[%s414 + $0x50] sm:$0xff] %v3021
          %3054 = vst [vmem:[%s414 + $0x58] sm:$0xff] %v3022
          %3055 = vst [vmem:[%s414 + $0x60] sm:$0xff] %v3023
          %3056 = vst [vmem:[%s414 + $0x68] sm:$0xff] %v3024
          %3057 = vst [vmem:[%s414 + $0x70] sm:$0xff] %v3025
          %3058 = vst [vmem:[%s414 + $0x78] sm:$0xff] %v3026
          %3059 = vst [vmem:[%s414 + $0x80] sm:$0xff] %v3027
          %3060 = vst [vmem:[%s414 + $0x88] sm:$0xff] %v3028
          %3061 = vst [vmem:[%s414 + $0x90] sm:$0xff] %v3029
          %3062 = vst [vmem:[%s414 + $0x98] sm:$0xff] %v3030
          %3063 = vst [vmem:[%s414 + $0xa0] sm:$0xff] %v3031
          %3064 = vst [vmem:[%s414 + $0xa8] sm:$0xff] %v3032
          %3065 = vst [vmem:[%s414 + $0xb0] sm:$0xff] %v3033
          %3066 = vst [vmem:[%s414 + $0xb8] sm:$0xff] %v3034
          %3067 = vst [vmem:[%s414 + $0xc0] sm:$0xff] %v3035
          %3068 = vst [vmem:[%s414 + $0xc8] sm:$0xff] %v3036
          %3069 = vst [vmem:[%s414 + $0xd0] sm:$0xff] %v3037
          %3070 = vst [vmem:[%s414 + $0xd8] sm:$0xff] %v3038
          %3071 = vst [vmem:[%s414 + $0xe0] sm:$0xff] %v3039
          %3072 = vst [vmem:[%s414 + $0xe8] sm:$0xff] %v3040
          %3073 = vst [vmem:[%s414 + $0xf0] sm:$0xff] %v3041
          %3074 = vst [vmem:[%s414 + $0xf8] sm:$0xff] %v3042
        $region72: #{attention_block.3} parent=39 // pred_fallthru
          _
        %s3075 = sand.u32 %s190, 1
        %s3076 = scalar_lea.sflag [#allocation7], %s3075
        %s3077 = sand.u32 %s190, 1
        %s3078 = smul.addr %s3077, 256
        %s3079 = scalar_lea.vmem [#allocation14], %s3078
        // Predicated region
        $region73: #{attention_block.3} parent=39 // pred_check
          %p3080 = pneg %p200
        $region74: #{attention_block.3} parent=39 // pred_check_branch
          %3082 = sbr.rel (%p3080) target = $region76
        $region75: #{attention_block.3} parent=39 // pred_region
          %s3083 = smul.u32 16, %s34
          %s3085 = ssub.s32 4096, 4096
          %3086 = vsyncadd %s3076, %s3085
          %s3087 = smul.addr %s3083, 2
          %s3088 = smul.addr %s33, 64
          %s3089 = sadd.s32 %s3087, %s3088
          %s3090 = smul.addr %s3089, 128
          %s3091 = scalar_lea.hbm %s5, %s3090
          %s3092 = sshll.u32 %s3079, 4
          %s3093 = int_to_ptr.vmem [resolvable:$true] %s3092
          %3098 = dma.vmem_to_hbm [thread:$0]  %s3093, 4096, %s3091, %s3076, 256, 256, 16
        $region76: #{attention_block.3} parent=39 // pred_fallthru
          _
      $region40: #{attention_block.3} parent=5 // pred_fallthru
        _
      %p3099 = scmp.le.s32.totalorder 2, %s23
      // Predicated region
      $region77: #{attention_block.3} parent=5 // pred_check
        %p3100 = pneg %p3099
      $region78: #{attention_block.3} parent=5 // pred_check_branch
        %3102 = sbr.rel (%p3100) target = $region80
      $region79: #{attention_block.3} parent=5 // pred_region
        %s3103 = ssub.s32 %s23, 2
        // Predicated region
        $region81: #{attention_block.3} parent=79 // pred_check
          %p3104 = pneg %p206
        $region82: #{attention_block.3} parent=79 // pred_check_branch
          %3106 = sbr.rel (%p3104) target = $region84
        $region83: #{attention_block.3} parent=79 // pred_region
          %s3107 = sand.u32 %s191, 1
          %s3108 = scalar_lea.sflag [#allocation7], %s3107
          %s3109 = sand.u32 %s191, 1
          %s3110 = smul.addr %s3109, 256
          %s3111 = scalar_lea.vmem [#allocation14], %s3110
          %3112 = dma.done %s3108, 4096
        $region84: #{attention_block.3} parent=79 // pred_fallthru
          _
      $region80: #{attention_block.3} parent=5 // pred_fallthru
        _
    $region6: #{attention_block.3} parent=1 // loop_footer
      %s27 = sadd.s32 1, %s23
    $region7: #{attention_block.3} parent=1 // loop_footer_branch
      %22 = sbr.rel target = $region3
    $region8: #{attention_block.3} parent=1 // loop_exit
      _
    %3113 = vsyncpa [#allocation6], 1
    %s3114 = scalar_lea.sflag [#allocation6], 1
    %3115 = vsyncpa %s3114, 1
    %3116 = vsyncpa [#allocation9], 1
    %s3117 = scalar_lea.sflag [#allocation9], 1
    %3118 = vsyncpa %s3117, 1
    %3119 = vsyncpa [#allocation12], 1
    %s3120 = scalar_lea.sflag [#allocation12], 1
    %3121 = vsyncpa %s3120, 1
    %3122 = vsyncpa [#allocation7], 1
    %s3123 = scalar_lea.sflag [#allocation7], 1
    %3124 = vsyncpa %s3123, 1

</llo_original>
